<compile_context>
chip_gen: v5e
topology: v5e:2x2
jax: 0.10.0
libtpu: 0.0.40
codegen_flags: <defaults>
</compile_context>

<pallas_src>
import numpy as np
import jax
import jax.numpy as jnp
from jax.experimental import pallas as pl
from jax.experimental.pallas import tpu as pltpu


def encoder_kernel(x_ref, y_ref, aw_ref, we_ref, wf_ref, bf_ref,
                   out_tilde_ref, out_enc_ref):
    """Full T-1 step DSTP-RNN-I encoder recurrence for one batch block."""
    Bb, Tm1, N = x_ref.shape
    H = we_ref.shape[1] // 4
    f32 = jnp.float32

    X = x_ref[...]                      # (Bb, Tm1, N) f32
    we = we_ref[...]                    # (2, 4H) f32: state->logit row vectors
    W_f = wf_ref[...]                   # (2N+2H, 8H) bf16 fused block-diag gates
    b_f = bf_ref[...]                   # (1, 8H) f32 (g-block pre-scaled by 2)

    # --- prologue: loop-invariant attention projections of X / y_prev -------
    # aw_ref (SMEM, (4, Tm1)): rows [w1_x, w2_x, w2_y, (b1, b2, 0, ...)].
    y = y_ref[:, 0, :]                  # (Bb, Tm1)
    proj1 = jnp.zeros((Bb, N), f32)
    proj2 = jnp.zeros((Bb, N), f32)
    py = jnp.zeros((Bb, 1), f32)
    for t in range(Tm1):
        xt = X[:, t, :]
        proj1 = proj1 + xt * aw_ref[0, t]
        proj2 = proj2 + xt * aw_ref[1, t]
        py = py + y[:, t:t + 1] * aw_ref[2, t]
    proj1 = proj1 + aw_ref[3, 0]
    proj2 = proj2 + py + aw_ref[3, 1]

    # Fused recurrent state: h_cat = [h | hs], c_cat = [s | ss]
    h_cat = jnp.zeros((Bb, 2 * H), f32)
    c_cat = jnp.zeros((Bb, 2 * H), f32)

    # TODO(synk): Tm1 is small (8) so a static unroll is fine; if T grows past
    # ~16 switch to lax.fori_loop(unroll=True chunks) to bound vreg live ranges.
    # TODO(synk): on v5e/v6e the loop-invariant 48x128 W_f could be held in the
    # MXU weight registers via pltpu.matmul_push_rhs/matmul_acc_lhs/matmul_pop;
    # left on jnp.dot here (verify in the bundle dump before hand-driving MXU).
    for t in range(Tm1):
        # --- attention state contributions: VPU mult + XLU reduce (MXU free) --
        state_cat = jnp.concatenate([h_cat, c_cat], axis=1)           # (Bb, 4H)
        e1_sc = jnp.sum(state_cat * we[0:1, :], axis=-1, keepdims=True)
        e2_sc = jnp.sum(state_cat * we[1:2, :], axis=-1, keepdims=True)

        # --- both softmaxes with ONE exp + ONE approx reciprocal -------------
        e_cat = jnp.concatenate([e1_sc + proj1, e2_sc + proj2], axis=1)  # (Bb, 2N)
        m1 = jnp.max(e_cat[:, :N], axis=-1, keepdims=True)
        m2 = jnp.max(e_cat[:, N:], axis=-1, keepdims=True)
        m_cat = jnp.concatenate([jnp.broadcast_to(m1, (Bb, N)),
                                 jnp.broadcast_to(m2, (Bb, N))], axis=1)
        p_cat = jnp.exp(e_cat - m_cat)                                 # one EUP exp
        denom = jnp.concatenate(
            [jnp.sum(p_cat[:, :N], axis=-1, keepdims=True),
             jnp.sum(p_cat[:, N:], axis=-1, keepdims=True)], axis=1)   # (Bb, 2)
        r = pl.reciprocal(denom, approx=True)                          # one EUP recip

        x_t = X[:, t, :]
        x_tilde = (p_cat[:, :N] * r[:, 0:1]) * x_t                     # drives LSTM 1
        x_tilde2 = (p_cat[:, N:] * r[:, 1:2]) * x_tilde                # drives LSTM 2

        # --- both LSTMs' gates: ONE single-pass bf16 MXU matmul (8H=128 lanes)
        inp = jnp.concatenate([x_tilde, x_tilde2, h_cat], axis=1)      # (Bb, 2N+2H)
        gates = jnp.dot(inp.astype(jnp.bfloat16), W_f,
                        preferred_element_type=f32) + b_f              # (Bb, 8H) f32
        sig = jax.nn.sigmoid(gates)          # single EUP pass covers all gates
        i_cat = sig[:, 0 * H:2 * H]          # [i1 | i2]
        f_cat = sig[:, 2 * H:4 * H]          # [f1 | f2]
        g_cat = 2.0 * sig[:, 4 * H:6 * H] - 1.0   # tanh via pre-scaled g columns
        o_cat = sig[:, 6 * H:8 * H]          # [o1 | o2]
        c_cat = f_cat * c_cat + i_cat * g_cat
        h_cat = o_cat * jnp.tanh(c_cat)

        # --- per-step stores at static lane offsets (vst slot is idle) -------
        out_tilde_ref[:, 0, t * N:(t + 1) * N] = x_tilde2
        out_enc_ref[:, 0, t * H:(t + 1) * H] = h_cat[:, H:2 * H]       # hs_n


def pack_params(params, T):
    """One-time host-side (numpy) packing of the kernel's weight operands."""
    Tm1 = T - 1
    wih1 = np.asarray(params["wih1"], np.float32)
    whh1 = np.asarray(params["whh1"], np.float32)
    bl1 = np.asarray(params["bl1"], np.float32)
    wih2 = np.asarray(params["wih2"], np.float32)
    whh2 = np.asarray(params["whh2"], np.float32)
    bl2 = np.asarray(params["bl2"], np.float32)
    w1 = np.asarray(params["w_attn1"], np.float32)
    b1 = np.asarray(params["b_attn1"], np.float32)
    w2 = np.asarray(params["w_attn2"], np.float32)
    b2 = np.asarray(params["b_attn2"], np.float32)
    N, H4 = wih1.shape
    H = H4 // 4

    # Fused block-diagonal gate matrix: rows [x_tilde | x_tilde2 | h | hs],
    # naive cols [i1 f1 g1 o1 | i2 f2 g2 o2] -> reorder to [i1 i2 f1 f2 g1 g2 o1 o2].
    w_f = np.zeros((2 * N + 2 * H, 8 * H), np.float32)
    w_f[0:N, 0:4 * H] = wih1
    w_f[N:2 * N, 4 * H:8 * H] = wih2
    w_f[2 * N:2 * N + H, 0:4 * H] = whh1
    w_f[2 * N + H:2 * N + 2 * H, 4 * H:8 * H] = whh2
    b_f = np.concatenate([bl1, bl2], axis=1)                 # (1, 8H)
    col_blocks = (0, 4, 1, 5, 2, 6, 3, 7)
    idx = np.concatenate([np.arange(c * H, (c + 1) * H) for c in col_blocks])
    w_f = w_f[:, idx]
    b_f = b_f[:, idx]
    # Pre-scale g-gate block by 2 so tanh(x) = 2*sigmoid(2x)-1 comes from the
    # single in-kernel sigmoid pass (scale by 2 is exact in bf16).
    w_f[:, 4 * H:6 * H] *= 2.0
    b_f[:, 4 * H:6 * H] *= 2.0

    # Attention state->logit row vectors, laid out like concat([h_cat, c_cat])
    # = [h | hs | s | ss]; row 0 -> e1 scalar, row 1 -> e2 scalar.
    we = np.zeros((2, 4 * H), np.float32)
    we[0, 0 * H:1 * H] = w1[0, 0:H]            # h  · w1_h
    we[0, 2 * H:3 * H] = w1[0, H:2 * H]        # s  · w1_s
    we[1, 1 * H:2 * H] = w2[0, 0:H]            # hs · w2_h
    we[1, 3 * H:4 * H] = w2[0, H:2 * H]        # ss · w2_s

    # SMEM scalar table: rows [w1_x, w2_x, w2_y, (b1, b2, 0...)].
    aw = np.zeros((4, Tm1), np.float32)
    aw[0, :] = w1[0, 2 * H:2 * H + Tm1]
    aw[1, :] = w2[0, 2 * H:2 * H + Tm1]
    aw[2, :] = w2[0, 2 * H + Tm1:2 * H + 2 * Tm1]
    aw[3, 0] = b1[0, 0]
    aw[3, 1] = b2[0, 0]

    return dict(
        aw=jnp.asarray(aw, jnp.float32),
        we=jnp.asarray(we, jnp.float32),
        wf=jnp.asarray(w_f, jnp.bfloat16),     # single-pass MXU operand
        bf=jnp.asarray(b_f, jnp.float32),
    )


def encoder_forward(X, y_prev, packed, *, num_batch_blocks=1):
    """num_batch_blocks: keep 1 (default). Only split the batch across grid
    programs on multi-TensorCore chips (v7x) AND when the per-block batch
    exceeds a sublane group (> 8 rows); on single-TC v5e/v6e a split is a
    pure serial regression."""
    B, Tm1, N = X.shape
    H = packed["we"].shape[1] // 4
    assert B % num_batch_blocks == 0
    Bb = B // num_batch_blocks

    y3 = y_prev.reshape(B, 1, Tm1)

    out_tilde, out_enc = pl.pallas_call(
        encoder_kernel,
        out_shape=(jax.ShapeDtypeStruct((B, 1, Tm1 * N), jnp.float32),
                   jax.ShapeDtypeStruct((B, 1, Tm1 * H), jnp.float32)),
        grid=(num_batch_blocks,),
        in_specs=[
            pl.BlockSpec((Bb, Tm1, N), lambda g: (g, 0, 0)),
            pl.BlockSpec((Bb, 1, Tm1), lambda g: (g, 0, 0)),
            pl.BlockSpec(memory_space=pltpu.MemorySpace.SMEM),       # aw scalars
            pl.BlockSpec((2, 4 * H), lambda g: (0, 0)),              # we
            pl.BlockSpec((2 * N + 2 * H, 8 * H), lambda g: (0, 0)),  # wf (bf16)
            pl.BlockSpec((1, 8 * H), lambda g: (0, 0)),              # bf
        ],
        out_specs=(
            pl.BlockSpec((Bb, 1, Tm1 * N), lambda g: (g, 0, 0)),
            pl.BlockSpec((Bb, 1, Tm1 * H), lambda g: (g, 0, 0)),
        ),
        compiler_params=pltpu.CompilerParams(
            dimension_semantics=("parallel",)),
    )(X, y3, packed["aw"], packed["we"], packed["wf"], packed["bf"])
    return out_tilde.reshape(B, Tm1, N), out_enc.reshape(B, Tm1, H)


encoder_forward_jit = jax.jit(encoder_forward, static_argnames=("num_batch_blocks",))


def encoder_reference(X, y_prev, params):
    """Pure-JAX f32 reference, faithful per-step math of the intended module."""
    B, Tm1, N = X.shape
    H = params["whh1"].shape[0]
    w1, b1 = params["w_attn1"], params["b_attn1"]
    w2, b2 = params["w_attn2"], params["b_attn2"]
    w1_h, w1_s, w1_x = w1[:, :H], w1[:, H:2 * H], w1[:, 2 * H:]
    w2_h, w2_s = w2[:, :H], w2[:, H:2 * H]
    w2_x, w2_y = w2[:, 2 * H:2 * H + Tm1], w2[:, 2 * H + Tm1:]
    proj_x1 = jnp.sum(X * w1_x[:, :, None], axis=1)
    proj_x2 = jnp.sum(X * w2_x[:, :, None], axis=1)
    proj_y2 = jnp.sum(y_prev * w2_y, axis=1, keepdims=True)

    def lstm(x_in, h_prev, c_prev, wih, whh, bl):
        g = x_in @ wih + h_prev @ whh + bl
        i = jax.nn.sigmoid(g[:, :H]); f = jax.nn.sigmoid(g[:, H:2 * H])
        gg = jnp.tanh(g[:, 2 * H:3 * H]); o = jax.nn.sigmoid(g[:, 3 * H:])
        c = f * c_prev + i * gg
        return o * jnp.tanh(c), c

    h = s = hs = ss = jnp.zeros((B, H), jnp.float32)
    tildes, encs = [], []
    for t in range(Tm1):
        e1 = (jnp.sum(h * w1_h, 1, keepdims=True) + jnp.sum(s * w1_s, 1, keepdims=True)
              + proj_x1 + b1)
        x_tilde = jax.nn.softmax(e1, -1) * X[:, t, :]
        h, s = lstm(x_tilde, h, s, params["wih1"], params["whh1"], params["bl1"])
        e2 = (jnp.sum(hs * w2_h, 1, keepdims=True) + jnp.sum(ss * w2_s, 1, keepdims=True)
              + proj_x2 + proj_y2 + b2)
        x_tilde2 = jax.nn.softmax(e2, -1) * x_tilde
        hs, ss = lstm(x_tilde2, hs, ss, params["wih2"], params["whh2"], params["bl2"])
        tildes.append(x_tilde2)
        encs.append(hs)
    return jnp.stack(tildes, 1), jnp.stack(encs, 1)


def init_params(key, T, input_size, hidden):
    Tm1 = T - 1
    N, H = input_size, hidden
    ks = jax.random.split(key, 12)

    def u(k, shape, bound):
        return jax.random.uniform(k, shape, jnp.float32, -bound, bound)

    lb = 1.0 / float(np.sqrt(H))
    a1 = 1.0 / float(np.sqrt(2 * H + Tm1))
    a2 = 1.0 / float(np.sqrt(2 * H + 2 * Tm1))
    return dict(
        w_attn1=u(ks[0], (1, 2 * H + Tm1), a1),
        b_attn1=u(ks[1], (1, 1), a1),
        w_attn2=u(ks[2], (1, 2 * H + 2 * Tm1), a2),
        b_attn2=u(ks[3], (1, 1), a2),
        wih1=u(ks[4], (N, 4 * H), lb),
        whh1=u(ks[5], (H, 4 * H), lb),
        bl1=u(ks[6], (1, 4 * H), lb) + u(ks[7], (1, 4 * H), lb),
        wih2=u(ks[8], (N, 4 * H), lb),
        whh2=u(ks[9], (H, 4 * H), lb),
        bl2=u(ks[10], (1, 4 * H), lb) + u(ks[11], (1, 4 * H), lb),
    )


if __name__ == "__main__":
    B, T, INPUT_SIZE, HIDDEN = 4, 9, 8, 16
    Tm1 = T - 1

    key = jax.random.PRNGKey(0)
    k_x, k_y, k_p = jax.random.split(key, 3)
    X = jax.random.normal(k_x, (B, Tm1, INPUT_SIZE), jnp.float32)
    y_prev = jax.random.normal(k_y, (B, Tm1), jnp.float32)
    params = init_params(k_p, T, INPUT_SIZE, HIDDEN)

    # One-time host-side weight packing (no per-call XLA ops).
    packed = pack_params(params, T)

    ref_tilde, ref_enc = encoder_reference(X, y_prev, params)
    jax.block_until_ready((ref_tilde, ref_enc))

    x_tilde_ii, x_encoded_ii = encoder_forward_jit(X, y_prev, packed)
    jax.block_until_ready((x_tilde_ii, x_encoded_ii))
    assert x_tilde_ii.shape == (B, Tm1, INPUT_SIZE)
    assert x_encoded_ii.shape == (B, Tm1, HIDDEN)

    # Tolerance is looser than pure-f32 because the gates matmul runs in a
    # single bf16 MXU pass (f32 accumulation) and the softmax denominator uses
    # the EUP approximate reciprocal.
    assert np.allclose(np.asarray(x_tilde_ii), np.asarray(ref_tilde), rtol=2e-2, atol=3e-3)
    assert np.allclose(np.asarray(x_encoded_ii), np.asarray(ref_enc), rtol=2e-2, atol=3e-3)

    print("KERNEL_OK")
</pallas_src>

<mosaic_0001>
module attributes {stable_mosaic.version = 11 : i64} {
  func.func @encoder_kernel(%arg0: i32, %arg1: memref<4x8x8xf32, #tpu.memory_space<vmem>>, %arg2: memref<4x1x8xf32, #tpu.memory_space<vmem>>, %arg3: memref<4x8xf32, #tpu.memory_space<smem>>, %arg4: memref<2x64xf32, #tpu.memory_space<vmem>>, %arg5: memref<48x128xbf16, #tpu.memory_space<vmem>>, %arg6: memref<1x128xf32, #tpu.memory_space<vmem>>, %arg7: memref<4x1x64xf32, #tpu.memory_space<vmem>>, %arg8: memref<4x1x128xf32, #tpu.memory_space<vmem>>) attributes {dimension_semantics = [#tpu.dimension_semantics<parallel>], iteration_bounds = array<i64: 1>, scalar_prefetch = 0 : i64, scratch_operands = 0 : i64, tpu.core_type = #tpu.core_type<tc>, window_params = [{transform_indices = @transform_0, window_bounds = array<i64: 4, 8, 8>}, {transform_indices = @transform_1, window_bounds = array<i64: 4, 1, 8>}, {transform_indices = @transform_2, window_bounds = array<i64: 4, 8>}, {pipeline_mode = #tpu.pipeline_mode<synchronous>, transform_indices = @transform_3, window_bounds = array<i64: 2, 64>}, {pipeline_mode = #tpu.pipeline_mode<synchronous>, transform_indices = @transform_4, window_bounds = array<i64: 48, 128>}, {pipeline_mode = #tpu.pipeline_mode<synchronous>, transform_indices = @transform_5, window_bounds = array<i64: 1, 128>}, {transform_indices = @transform_6, window_bounds = array<i64: 4, 1, 64>}, {transform_indices = @transform_7, window_bounds = array<i64: 4, 1, 128>}]} {
    %c0 = arith.constant 0 : index
    %c0_0 = arith.constant 0 : index
    %c0_1 = arith.constant 0 : index
    %0 = vector.load %arg1[%c0, %c0_0, %c0_1] : memref<4x8x8xf32, #tpu.memory_space<vmem>>, vector<4x8x8xf32>
    %c0_2 = arith.constant 0 : index
    %c0_3 = arith.constant 0 : index
    %1 = vector.load %arg4[%c0_2, %c0_3] : memref<2x64xf32, #tpu.memory_space<vmem>>, vector<2x64xf32>
    %c0_4 = arith.constant 0 : index
    %c0_5 = arith.constant 0 : index
    %2 = vector.load %arg5[%c0_4, %c0_5] : memref<48x128xbf16, #tpu.memory_space<vmem>>, vector<48x128xbf16>
    %c0_6 = arith.constant 0 : index
    %c0_7 = arith.constant 0 : index
    %3 = vector.load %arg6[%c0_6, %c0_7] : memref<1x128xf32, #tpu.memory_space<vmem>>, vector<1x128xf32>
    %c0_8 = arith.constant 0 : index
    %c0_9 = arith.constant 0 : index
    %c0_10 = arith.constant 0 : index
    %4 = vector.load %arg2[%c0_8, %c0_9, %c0_10] : memref<4x1x8xf32, #tpu.memory_space<vmem>>, vector<4x1x8xf32>
    %5 = vector.shape_cast %4 : vector<4x1x8xf32> to vector<4x8xf32>
    %cst = arith.constant 0.000000e+00 : f32
    %6 = vector.broadcast %cst : f32 to vector<4x8xf32>
    %cst_11 = arith.constant 0.000000e+00 : f32
    %7 = vector.broadcast %cst_11 : f32 to vector<4x8xf32>
    %cst_12 = arith.constant 0.000000e+00 : f32
    %8 = vector.broadcast %cst_12 : f32 to vector<4x1xf32>
    %9 = vector.extract_strided_slice %0 {offsets = [0, 0, 0], sizes = [4, 1, 8], strides = [1, 1, 1]} : vector<4x8x8xf32> to vector<4x1x8xf32>
    %10 = vector.shape_cast %9 : vector<4x1x8xf32> to vector<4x8xf32>
    %c0_13 = arith.constant 0 : index
    %c0_14 = arith.constant 0 : index
    %11 = memref.load %arg3[%c0_13, %c0_14] : memref<4x8xf32, #tpu.memory_space<smem>>
    %12 = vector.broadcast %11 : f32 to vector<4x8xf32>
    %13 = arith.mulf %10, %12 : vector<4x8xf32>
    %14 = arith.addf %6, %13 : vector<4x8xf32>
    %c1 = arith.constant 1 : index
    %c0_15 = arith.constant 0 : index
    %15 = memref.load %arg3[%c1, %c0_15] : memref<4x8xf32, #tpu.memory_space<smem>>
    %16 = vector.broadcast %15 : f32 to vector<4x8xf32>
    %17 = arith.mulf %10, %16 : vector<4x8xf32>
    %18 = arith.addf %7, %17 : vector<4x8xf32>
    %19 = vector.extract_strided_slice %5 {offsets = [0, 0], sizes = [4, 1], strides = [1, 1]} : vector<4x8xf32> to vector<4x1xf32>
    %c2 = arith.constant 2 : index
    %c0_16 = arith.constant 0 : index
    %20 = memref.load %arg3[%c2, %c0_16] : memref<4x8xf32, #tpu.memory_space<smem>>
    %21 = vector.broadcast %20 : f32 to vector<4x1xf32>
    %22 = arith.mulf %19, %21 : vector<4x1xf32>
    %23 = arith.addf %8, %22 : vector<4x1xf32>
    %24 = vector.extract_strided_slice %0 {offsets = [0, 1, 0], sizes = [4, 1, 8], strides = [1, 1, 1]} : vector<4x8x8xf32> to vector<4x1x8xf32>
    %25 = vector.shape_cast %24 : vector<4x1x8xf32> to vector<4x8xf32>
    %c0_17 = arith.constant 0 : index
    %c1_18 = arith.constant 1 : index
    %26 = memref.load %arg3[%c0_17, %c1_18] : memref<4x8xf32, #tpu.memory_space<smem>>
    %27 = vector.broadcast %26 : f32 to vector<4x8xf32>
    %28 = arith.mulf %25, %27 : vector<4x8xf32>
    %29 = arith.addf %14, %28 : vector<4x8xf32>
    %c1_19 = arith.constant 1 : index
    %c1_20 = arith.constant 1 : index
    %30 = memref.load %arg3[%c1_19, %c1_20] : memref<4x8xf32, #tpu.memory_space<smem>>
    %31 = vector.broadcast %30 : f32 to vector<4x8xf32>
    %32 = arith.mulf %25, %31 : vector<4x8xf32>
    %33 = arith.addf %18, %32 : vector<4x8xf32>
    %34 = vector.extract_strided_slice %5 {offsets = [0, 1], sizes = [4, 1], strides = [1, 1]} : vector<4x8xf32> to vector<4x1xf32>
    %c2_21 = arith.constant 2 : index
    %c1_22 = arith.constant 1 : index
    %35 = memref.load %arg3[%c2_21, %c1_22] : memref<4x8xf32, #tpu.memory_space<smem>>
    %36 = vector.broadcast %35 : f32 to vector<4x1xf32>
    %37 = arith.mulf %34, %36 : vector<4x1xf32>
    %38 = arith.addf %23, %37 : vector<4x1xf32>
    %39 = vector.extract_strided_slice %0 {offsets = [0, 2, 0], sizes = [4, 1, 8], strides = [1, 1, 1]} : vector<4x8x8xf32> to vector<4x1x8xf32>
    %40 = vector.shape_cast %39 : vector<4x1x8xf32> to vector<4x8xf32>
    %c0_23 = arith.constant 0 : index
    %c2_24 = arith.constant 2 : index
    %41 = memref.load %arg3[%c0_23, %c2_24] : memref<4x8xf32, #tpu.memory_space<smem>>
    %42 = vector.broadcast %41 : f32 to vector<4x8xf32>
    %43 = arith.mulf %40, %42 : vector<4x8xf32>
    %44 = arith.addf %29, %43 : vector<4x8xf32>
    %c1_25 = arith.constant 1 : index
    %c2_26 = arith.constant 2 : index
    %45 = memref.load %arg3[%c1_25, %c2_26] : memref<4x8xf32, #tpu.memory_space<smem>>
    %46 = vector.broadcast %45 : f32 to vector<4x8xf32>
    %47 = arith.mulf %40, %46 : vector<4x8xf32>
    %48 = arith.addf %33, %47 : vector<4x8xf32>
    %49 = vector.extract_strided_slice %5 {offsets = [0, 2], sizes = [4, 1], strides = [1, 1]} : vector<4x8xf32> to vector<4x1xf32>
    %c2_27 = arith.constant 2 : index
    %c2_28 = arith.constant 2 : index
    %50 = memref.load %arg3[%c2_27, %c2_28] : memref<4x8xf32, #tpu.memory_space<smem>>
    %51 = vector.broadcast %50 : f32 to vector<4x1xf32>
    %52 = arith.mulf %49, %51 : vector<4x1xf32>
    %53 = arith.addf %38, %52 : vector<4x1xf32>
    %54 = vector.extract_strided_slice %0 {offsets = [0, 3, 0], sizes = [4, 1, 8], strides = [1, 1, 1]} : vector<4x8x8xf32> to vector<4x1x8xf32>
    %55 = vector.shape_cast %54 : vector<4x1x8xf32> to vector<4x8xf32>
    %c0_29 = arith.constant 0 : index
    %c3 = arith.constant 3 : index
    %56 = memref.load %arg3[%c0_29, %c3] : memref<4x8xf32, #tpu.memory_space<smem>>
    %57 = vector.broadcast %56 : f32 to vector<4x8xf32>
    %58 = arith.mulf %55, %57 : vector<4x8xf32>
    %59 = arith.addf %44, %58 : vector<4x8xf32>
    %c1_30 = arith.constant 1 : index
    %c3_31 = arith.constant 3 : index
    %60 = memref.load %arg3[%c1_30, %c3_31] : memref<4x8xf32, #tpu.memory_space<smem>>
    %61 = vector.broadcast %60 : f32 to vector<4x8xf32>
    %62 = arith.mulf %55, %61 : vector<4x8xf32>
    %63 = arith.addf %48, %62 : vector<4x8xf32>
    %64 = vector.extract_strided_slice %5 {offsets = [0, 3], sizes = [4, 1], strides = [1, 1]} : vector<4x8xf32> to vector<4x1xf32>
    %c2_32 = arith.constant 2 : index
    %c3_33 = arith.constant 3 : index
    %65 = memref.load %arg3[%c2_32, %c3_33] : memref<4x8xf32, #tpu.memory_space<smem>>
    %66 = vector.broadcast %65 : f32 to vector<4x1xf32>
    %67 = arith.mulf %64, %66 : vector<4x1xf32>
    %68 = arith.addf %53, %67 : vector<4x1xf32>
    %69 = vector.extract_strided_slice %0 {offsets = [0, 4, 0], sizes = [4, 1, 8], strides = [1, 1, 1]} : vector<4x8x8xf32> to vector<4x1x8xf32>
    %70 = vector.shape_cast %69 : vector<4x1x8xf32> to vector<4x8xf32>
    %c0_34 = arith.constant 0 : index
    %c4 = arith.constant 4 : index
    %71 = memref.load %arg3[%c0_34, %c4] : memref<4x8xf32, #tpu.memory_space<smem>>
    %72 = vector.broadcast %71 : f32 to vector<4x8xf32>
    %73 = arith.mulf %70, %72 : vector<4x8xf32>
    %74 = arith.addf %59, %73 : vector<4x8xf32>
    %c1_35 = arith.constant 1 : index
    %c4_36 = arith.constant 4 : index
    %75 = memref.load %arg3[%c1_35, %c4_36] : memref<4x8xf32, #tpu.memory_space<smem>>
    %76 = vector.broadcast %75 : f32 to vector<4x8xf32>
    %77 = arith.mulf %70, %76 : vector<4x8xf32>
    %78 = arith.addf %63, %77 : vector<4x8xf32>
    %79 = vector.extract_strided_slice %5 {offsets = [0, 4], sizes = [4, 1], strides = [1, 1]} : vector<4x8xf32> to vector<4x1xf32>
    %c2_37 = arith.constant 2 : index
    %c4_38 = arith.constant 4 : index
    %80 = memref.load %arg3[%c2_37, %c4_38] : memref<4x8xf32, #tpu.memory_space<smem>>
    %81 = vector.broadcast %80 : f32 to vector<4x1xf32>
    %82 = arith.mulf %79, %81 : vector<4x1xf32>
    %83 = arith.addf %68, %82 : vector<4x1xf32>
    %84 = vector.extract_strided_slice %0 {offsets = [0, 5, 0], sizes = [4, 1, 8], strides = [1, 1, 1]} : vector<4x8x8xf32> to vector<4x1x8xf32>
    %85 = vector.shape_cast %84 : vector<4x1x8xf32> to vector<4x8xf32>
    %c0_39 = arith.constant 0 : index
    %c5 = arith.constant 5 : index
    %86 = memref.load %arg3[%c0_39, %c5] : memref<4x8xf32, #tpu.memory_space<smem>>
    %87 = vector.broadcast %86 : f32 to vector<4x8xf32>
    %88 = arith.mulf %85, %87 : vector<4x8xf32>
    %89 = arith.addf %74, %88 : vector<4x8xf32>
    %c1_40 = arith.constant 1 : index
    %c5_41 = arith.constant 5 : index
    %90 = memref.load %arg3[%c1_40, %c5_41] : memref<4x8xf32, #tpu.memory_space<smem>>
    %91 = vector.broadcast %90 : f32 to vector<4x8xf32>
    %92 = arith.mulf %85, %91 : vector<4x8xf32>
    %93 = arith.addf %78, %92 : vector<4x8xf32>
    %94 = vector.extract_strided_slice %5 {offsets = [0, 5], sizes = [4, 1], strides = [1, 1]} : vector<4x8xf32> to vector<4x1xf32>
    %c2_42 = arith.constant 2 : index
    %c5_43 = arith.constant 5 : index
    %95 = memref.load %arg3[%c2_42, %c5_43] : memref<4x8xf32, #tpu.memory_space<smem>>
    %96 = vector.broadcast %95 : f32 to vector<4x1xf32>
    %97 = arith.mulf %94, %96 : vector<4x1xf32>
    %98 = arith.addf %83, %97 : vector<4x1xf32>
    %99 = vector.extract_strided_slice %0 {offsets = [0, 6, 0], sizes = [4, 1, 8], strides = [1, 1, 1]} : vector<4x8x8xf32> to vector<4x1x8xf32>
    %100 = vector.shape_cast %99 : vector<4x1x8xf32> to vector<4x8xf32>
    %c0_44 = arith.constant 0 : index
    %c6 = arith.constant 6 : index
    %101 = memref.load %arg3[%c0_44, %c6] : memref<4x8xf32, #tpu.memory_space<smem>>
    %102 = vector.broadcast %101 : f32 to vector<4x8xf32>
    %103 = arith.mulf %100, %102 : vector<4x8xf32>
    %104 = arith.addf %89, %103 : vector<4x8xf32>
    %c1_45 = arith.constant 1 : index
    %c6_46 = arith.constant 6 : index
    %105 = memref.load %arg3[%c1_45, %c6_46] : memref<4x8xf32, #tpu.memory_space<smem>>
    %106 = vector.broadcast %105 : f32 to vector<4x8xf32>
    %107 = arith.mulf %100, %106 : vector<4x8xf32>
    %108 = arith.addf %93, %107 : vector<4x8xf32>
    %109 = vector.extract_strided_slice %5 {offsets = [0, 6], sizes = [4, 1], strides = [1, 1]} : vector<4x8xf32> to vector<4x1xf32>
    %c2_47 = arith.constant 2 : index
    %c6_48 = arith.constant 6 : index
    %110 = memref.load %arg3[%c2_47, %c6_48] : memref<4x8xf32, #tpu.memory_space<smem>>
    %111 = vector.broadcast %110 : f32 to vector<4x1xf32>
    %112 = arith.mulf %109, %111 : vector<4x1xf32>
    %113 = arith.addf %98, %112 : vector<4x1xf32>
    %114 = vector.extract_strided_slice %0 {offsets = [0, 7, 0], sizes = [4, 1, 8], strides = [1, 1, 1]} : vector<4x8x8xf32> to vector<4x1x8xf32>
    %115 = vector.shape_cast %114 : vector<4x1x8xf32> to vector<4x8xf32>
    %c0_49 = arith.constant 0 : index
    %c7 = arith.constant 7 : index
    %116 = memref.load %arg3[%c0_49, %c7] : memref<4x8xf32, #tpu.memory_space<smem>>
    %117 = vector.broadcast %116 : f32 to vector<4x8xf32>
    %118 = arith.mulf %115, %117 : vector<4x8xf32>
    %119 = arith.addf %104, %118 : vector<4x8xf32>
    %c1_50 = arith.constant 1 : index
    %c7_51 = arith.constant 7 : index
    %120 = memref.load %arg3[%c1_50, %c7_51] : memref<4x8xf32, #tpu.memory_space<smem>>
    %121 = vector.broadcast %120 : f32 to vector<4x8xf32>
    %122 = arith.mulf %115, %121 : vector<4x8xf32>
    %123 = arith.addf %108, %122 : vector<4x8xf32>
    %124 = vector.extract_strided_slice %5 {offsets = [0, 7], sizes = [4, 1], strides = [1, 1]} : vector<4x8xf32> to vector<4x1xf32>
    %c2_52 = arith.constant 2 : index
    %c7_53 = arith.constant 7 : index
    %125 = memref.load %arg3[%c2_52, %c7_53] : memref<4x8xf32, #tpu.memory_space<smem>>
    %126 = vector.broadcast %125 : f32 to vector<4x1xf32>
    %127 = arith.mulf %124, %126 : vector<4x1xf32>
    %128 = arith.addf %113, %127 : vector<4x1xf32>
    %c3_54 = arith.constant 3 : index
    %c0_55 = arith.constant 0 : index
    %129 = memref.load %arg3[%c3_54, %c0_55] : memref<4x8xf32, #tpu.memory_space<smem>>
    %130 = vector.broadcast %129 : f32 to vector<4x8xf32>
    %131 = arith.addf %119, %130 : vector<4x8xf32>
    %132 = vector.broadcast %128 : vector<4x1xf32> to vector<4x8xf32>
    %133 = arith.addf %123, %132 : vector<4x8xf32>
    %c3_56 = arith.constant 3 : index
    %c1_57 = arith.constant 1 : index
    %134 = memref.load %arg3[%c3_56, %c1_57] : memref<4x8xf32, #tpu.memory_space<smem>>
    %135 = vector.broadcast %134 : f32 to vector<4x8xf32>
    %136 = arith.addf %133, %135 : vector<4x8xf32>
    %cst_58 = arith.constant 0.000000e+00 : f32
    %137 = vector.broadcast %cst_58 : f32 to vector<4x32xf32>
    %cst_59 = arith.constant 0.000000e+00 : f32
    %138 = vector.broadcast %cst_59 : f32 to vector<4x32xf32>
    %139 = tpu.concatenate %137, %138 in 1 : vector<4x32xf32>, vector<4x32xf32> -> vector<4x64xf32>
    %140 = vector.extract_strided_slice %1 {offsets = [0, 0], sizes = [1, 64], strides = [1, 1]} : vector<2x64xf32> to vector<1x64xf32>
    %141 = vector.broadcast %140 : vector<1x64xf32> to vector<4x64xf32>
    %142 = arith.mulf %139, %141 : vector<4x64xf32>
    %cst_60 = arith.constant dense<0.000000e+00> : vector<4xf32>
    %143 = vector.multi_reduction <add>, %142, %cst_60 [1] : vector<4x64xf32> to vector<4xf32>
    %144 = vector.shape_cast %143 : vector<4xf32> to vector<4x1xf32>
    %145 = vector.extract_strided_slice %1 {offsets = [1, 0], sizes = [1, 64], strides = [1, 1]} : vector<2x64xf32> to vector<1x64xf32>
    %146 = vector.broadcast %145 : vector<1x64xf32> to vector<4x64xf32>
    %147 = arith.mulf %139, %146 : vector<4x64xf32>
    %cst_61 = arith.constant dense<0.000000e+00> : vector<4xf32>
    %148 = vector.multi_reduction <add>, %147, %cst_61 [1] : vector<4x64xf32> to vector<4xf32>
    %149 = vector.shape_cast %148 : vector<4xf32> to vector<4x1xf32>
    %150 = vector.broadcast %144 : vector<4x1xf32> to vector<4x8xf32>
    %151 = arith.addf %150, %131 : vector<4x8xf32>
    %152 = vector.broadcast %149 : vector<4x1xf32> to vector<4x8xf32>
    %153 = arith.addf %152, %136 : vector<4x8xf32>
    %154 = tpu.concatenate %151, %153 in 1 : vector<4x8xf32>, vector<4x8xf32> -> vector<4x16xf32>
    %155 = vector.extract_strided_slice %154 {offsets = [0, 0], sizes = [4, 8], strides = [1, 1]} : vector<4x16xf32> to vector<4x8xf32>
    %cst_62 = arith.constant dense<0xFF800000> : vector<4xf32>
    %156 = vector.multi_reduction <maximumf>, %155, %cst_62 [1] : vector<4x8xf32> to vector<4xf32>
    %157 = vector.shape_cast %156 : vector<4xf32> to vector<4x1xf32>
    %158 = vector.extract_strided_slice %154 {offsets = [0, 8], sizes = [4, 8], strides = [1, 1]} : vector<4x16xf32> to vector<4x8xf32>
    %cst_63 = arith.constant dense<0xFF800000> : vector<4xf32>
    %159 = vector.multi_reduction <maximumf>, %158, %cst_63 [1] : vector<4x8xf32> to vector<4xf32>
    %160 = vector.shape_cast %159 : vector<4xf32> to vector<4x1xf32>
    %161 = vector.shape_cast %157 : vector<4x1xf32> to vector<4x1xf32>
    %162 = vector.broadcast %161 : vector<4x1xf32> to vector<4x8xf32>
    %163 = vector.shape_cast %160 : vector<4x1xf32> to vector<4x1xf32>
    %164 = vector.broadcast %163 : vector<4x1xf32> to vector<4x8xf32>
    %165 = tpu.concatenate %162, %164 in 1 : vector<4x8xf32>, vector<4x8xf32> -> vector<4x16xf32>
    %166 = arith.subf %154, %165 : vector<4x16xf32>
    %167 = math.exp %166 : vector<4x16xf32>
    %168 = vector.extract_strided_slice %167 {offsets = [0, 0], sizes = [4, 8], strides = [1, 1]} : vector<4x16xf32> to vector<4x8xf32>
    %cst_64 = arith.constant dense<0.000000e+00> : vector<4xf32>
    %169 = vector.multi_reduction <add>, %168, %cst_64 [1] : vector<4x8xf32> to vector<4xf32>
    %170 = vector.shape_cast %169 : vector<4xf32> to vector<4x1xf32>
    %171 = vector.extract_strided_slice %167 {offsets = [0, 8], sizes = [4, 8], strides = [1, 1]} : vector<4x16xf32> to vector<4x8xf32>
    %cst_65 = arith.constant dense<0.000000e+00> : vector<4xf32>
    %172 = vector.multi_reduction <add>, %171, %cst_65 [1] : vector<4x8xf32> to vector<4xf32>
    %173 = vector.shape_cast %172 : vector<4xf32> to vector<4x1xf32>
    %174 = tpu.concatenate %170, %173 in 1 : vector<4x1xf32>, vector<4x1xf32> -> vector<4x2xf32>
    %175 = tpu.reciprocal %174 {approx = true} : vector<4x2xf32> -> vector<4x2xf32>
    %176 = vector.extract_strided_slice %0 {offsets = [0, 0, 0], sizes = [4, 1, 8], strides = [1, 1, 1]} : vector<4x8x8xf32> to vector<4x1x8xf32>
    %177 = vector.shape_cast %176 : vector<4x1x8xf32> to vector<4x8xf32>
    %178 = vector.extract_strided_slice %167 {offsets = [0, 0], sizes = [4, 8], strides = [1, 1]} : vector<4x16xf32> to vector<4x8xf32>
    %179 = vector.extract_strided_slice %175 {offsets = [0, 0], sizes = [4, 1], strides = [1, 1]} : vector<4x2xf32> to vector<4x1xf32>
    %180 = vector.broadcast %179 : vector<4x1xf32> to vector<4x8xf32>
    %181 = arith.mulf %178, %180 : vector<4x8xf32>
    %182 = arith.mulf %181, %177 : vector<4x8xf32>
    %183 = vector.extract_strided_slice %167 {offsets = [0, 8], sizes = [4, 8], strides = [1, 1]} : vector<4x16xf32> to vector<4x8xf32>
    %184 = vector.extract_strided_slice %175 {offsets = [0, 1], sizes = [4, 1], strides = [1, 1]} : vector<4x2xf32> to vector<4x1xf32>
    %185 = vector.broadcast %184 : vector<4x1xf32> to vector<4x8xf32>
    %186 = arith.mulf %183, %185 : vector<4x8xf32>
    %187 = arith.mulf %186, %182 : vector<4x8xf32>
    %188 = tpu.concatenate %182, %187, %137 in 1 : vector<4x8xf32>, vector<4x8xf32>, vector<4x32xf32> -> vector<4x48xf32>
    %189 = arith.truncf %188 : vector<4x48xf32> to vector<4x48xbf16>
    %cst_66 = arith.constant dense<0.000000e+00> : vector<4x128xf32>
    %190 = tpu.matmul %189, %2, %cst_66 {dimension_numbers = #tpu.dot_dimension_numbers<[1], [0], [0], [1], [0, 0, 1, 1], [], []>} : vector<4x48xbf16>, vector<48x128xbf16>, vector<4x128xf32> -> vector<4x128xf32>
    %191 = vector.broadcast %3 : vector<1x128xf32> to vector<4x128xf32>
    %192 = arith.addf %190, %191 : vector<4x128xf32>
    %193 = arith.negf %192 : vector<4x128xf32>
    %194 = math.exp %193 : vector<4x128xf32>
    %cst_67 = arith.constant 1.000000e+00 : f32
    %195 = vector.broadcast %cst_67 : f32 to vector<4x128xf32>
    %196 = arith.addf %195, %194 : vector<4x128xf32>
    %197 = arith.divf %195, %196 : vector<4x128xf32>
    %198 = vector.extract_strided_slice %197 {offsets = [0, 0], sizes = [4, 32], strides = [1, 1]} : vector<4x128xf32> to vector<4x32xf32>
    %199 = vector.extract_strided_slice %197 {offsets = [0, 32], sizes = [4, 32], strides = [1, 1]} : vector<4x128xf32> to vector<4x32xf32>
    %200 = vector.extract_strided_slice %197 {offsets = [0, 64], sizes = [4, 32], strides = [1, 1]} : vector<4x128xf32> to vector<4x32xf32>
    %cst_68 = arith.constant 2.000000e+00 : f32
    %201 = vector.broadcast %cst_68 : f32 to vector<4x32xf32>
    %202 = arith.mulf %201, %200 : vector<4x32xf32>
    %cst_69 = arith.constant 1.000000e+00 : f32
    %203 = vector.broadcast %cst_69 : f32 to vector<4x32xf32>
    %204 = arith.subf %202, %203 : vector<4x32xf32>
    %205 = vector.extract_strided_slice %197 {offsets = [0, 96], sizes = [4, 32], strides = [1, 1]} : vector<4x128xf32> to vector<4x32xf32>
    %206 = arith.mulf %199, %138 : vector<4x32xf32>
    %207 = arith.mulf %198, %204 : vector<4x32xf32>
    %208 = arith.addf %206, %207 : vector<4x32xf32>
    %209 = math.tanh %208 : vector<4x32xf32>
    %210 = arith.mulf %205, %209 : vector<4x32xf32>
    %c0_70 = arith.constant 0 : index
    %c0_71 = arith.constant 0 : index
    %c0_72 = arith.constant 0 : index
    %211 = vector.load %arg7[%c0_70, %c0_71, %c0_72] : memref<4x1x64xf32, #tpu.memory_space<vmem>>, vector<4x1x8xf32>
    %212 = vector.shape_cast %211 : vector<4x1x8xf32> to vector<4x8xf32>
    %213 = vector.shape_cast %187 : vector<4x8xf32> to vector<4x1x8xf32>
    tpu.vector_store %arg7[%c0_70, %c0_71, %c0_72], %213 {strides = array<i32>} : memref<4x1x64xf32, #tpu.memory_space<vmem>>, vector<4x1x8xf32>,
    %214 = vector.extract_strided_slice %210 {offsets = [0, 16], sizes = [4, 16], strides = [1, 1]} : vector<4x32xf32> to vector<4x16xf32>
    %c0_73 = arith.constant 0 : index
    %c0_74 = arith.constant 0 : index
    %c0_75 = arith.constant 0 : index
    %215 = vector.load %arg8[%c0_73, %c0_74, %c0_75] : memref<4x1x128xf32, #tpu.memory_space<vmem>>, vector<4x1x16xf32>
    %216 = vector.shape_cast %215 : vector<4x1x16xf32> to vector<4x16xf32>
    %217 = vector.shape_cast %214 : vector<4x16xf32> to vector<4x1x16xf32>
    tpu.vector_store %arg8[%c0_73, %c0_74, %c0_75], %217 {strides = array<i32>} : memref<4x1x128xf32, #tpu.memory_space<vmem>>, vector<4x1x16xf32>,
    %218 = tpu.concatenate %210, %208 in 1 : vector<4x32xf32>, vector<4x32xf32> -> vector<4x64xf32>
    %219 = vector.extract_strided_slice %1 {offsets = [0, 0], sizes = [1, 64], strides = [1, 1]} : vector<2x64xf32> to vector<1x64xf32>
    %220 = vector.broadcast %219 : vector<1x64xf32> to vector<4x64xf32>
    %221 = arith.mulf %218, %220 : vector<4x64xf32>
    %cst_76 = arith.constant dense<0.000000e+00> : vector<4xf32>
    %222 = vector.multi_reduction <add>, %221, %cst_76 [1] : vector<4x64xf32> to vector<4xf32>
    %223 = vector.shape_cast %222 : vector<4xf32> to vector<4x1xf32>
    %224 = vector.extract_strided_slice %1 {offsets = [1, 0], sizes = [1, 64], strides = [1, 1]} : vector<2x64xf32> to vector<1x64xf32>
    %225 = vector.broadcast %224 : vector<1x64xf32> to vector<4x64xf32>
    %226 = arith.mulf %218, %225 : vector<4x64xf32>
    %cst_77 = arith.constant dense<0.000000e+00> : vector<4xf32>
    %227 = vector.multi_reduction <add>, %226, %cst_77 [1] : vector<4x64xf32> to vector<4xf32>
    %228 = vector.shape_cast %227 : vector<4xf32> to vector<4x1xf32>
    %229 = vector.broadcast %223 : vector<4x1xf32> to vector<4x8xf32>
    %230 = arith.addf %229, %131 : vector<4x8xf32>
    %231 = vector.broadcast %228 : vector<4x1xf32> to vector<4x8xf32>
    %232 = arith.addf %231, %136 : vector<4x8xf32>
    %233 = tpu.concatenate %230, %232 in 1 : vector<4x8xf32>, vector<4x8xf32> -> vector<4x16xf32>
    %234 = vector.extract_strided_slice %233 {offsets = [0, 0], sizes = [4, 8], strides = [1, 1]} : vector<4x16xf32> to vector<4x8xf32>
    %cst_78 = arith.constant dense<0xFF800000> : vector<4xf32>
    %235 = vector.multi_reduction <maximumf>, %234, %cst_78 [1] : vector<4x8xf32> to vector<4xf32>
    %236 = vector.shape_cast %235 : vector<4xf32> to vector<4x1xf32>
    %237 = vector.extract_strided_slice %233 {offsets = [0, 8], sizes = [4, 8], strides = [1, 1]} : vector<4x16xf32> to vector<4x8xf32>
    %cst_79 = arith.constant dense<0xFF800000> : vector<4xf32>
    %238 = vector.multi_reduction <maximumf>, %237, %cst_79 [1] : vector<4x8xf32> to vector<4xf32>
    %239 = vector.shape_cast %238 : vector<4xf32> to vector<4x1xf32>
    %240 = vector.shape_cast %236 : vector<4x1xf32> to vector<4x1xf32>
    %241 = vector.broadcast %240 : vector<4x1xf32> to vector<4x8xf32>
    %242 = vector.shape_cast %239 : vector<4x1xf32> to vector<4x1xf32>
    %243 = vector.broadcast %242 : vector<4x1xf32> to vector<4x8xf32>
    %244 = tpu.concatenate %241, %243 in 1 : vector<4x8xf32>, vector<4x8xf32> -> vector<4x16xf32>
    %245 = arith.subf %233, %244 : vector<4x16xf32>
    %246 = math.exp %245 : vector<4x16xf32>
    %247 = vector.extract_strided_slice %246 {offsets = [0, 0], sizes = [4, 8], strides = [1, 1]} : vector<4x16xf32> to vector<4x8xf32>
    %cst_80 = arith.constant dense<0.000000e+00> : vector<4xf32>
    %248 = vector.multi_reduction <add>, %247, %cst_80 [1] : vector<4x8xf32> to vector<4xf32>
    %249 = vector.shape_cast %248 : vector<4xf32> to vector<4x1xf32>
    %250 = vector.extract_strided_slice %246 {offsets = [0, 8], sizes = [4, 8], strides = [1, 1]} : vector<4x16xf32> to vector<4x8xf32>
    %cst_81 = arith.constant dense<0.000000e+00> : vector<4xf32>
    %251 = vector.multi_reduction <add>, %250, %cst_81 [1] : vector<4x8xf32> to vector<4xf32>
    %252 = vector.shape_cast %251 : vector<4xf32> to vector<4x1xf32>
    %253 = tpu.concatenate %249, %252 in 1 : vector<4x1xf32>, vector<4x1xf32> -> vector<4x2xf32>
    %254 = tpu.reciprocal %253 {approx = true} : vector<4x2xf32> -> vector<4x2xf32>
    %255 = vector.extract_strided_slice %0 {offsets = [0, 1, 0], sizes = [4, 1, 8], strides = [1, 1, 1]} : vector<4x8x8xf32> to vector<4x1x8xf32>
    %256 = vector.shape_cast %255 : vector<4x1x8xf32> to vector<4x8xf32>
    %257 = vector.extract_strided_slice %246 {offsets = [0, 0], sizes = [4, 8], strides = [1, 1]} : vector<4x16xf32> to vector<4x8xf32>
    %258 = vector.extract_strided_slice %254 {offsets = [0, 0], sizes = [4, 1], strides = [1, 1]} : vector<4x2xf32> to vector<4x1xf32>
    %259 = vector.broadcast %258 : vector<4x1xf32> to vector<4x8xf32>
    %260 = arith.mulf %257, %259 : vector<4x8xf32>
    %261 = arith.mulf %260, %256 : vector<4x8xf32>
    %262 = vector.extract_strided_slice %246 {offsets = [0, 8], sizes = [4, 8], strides = [1, 1]} : vector<4x16xf32> to vector<4x8xf32>
    %263 = vector.extract_strided_slice %254 {offsets = [0, 1], sizes = [4, 1], strides = [1, 1]} : vector<4x2xf32> to vector<4x1xf32>
    %264 = vector.broadcast %263 : vector<4x1xf32> to vector<4x8xf32>
    %265 = arith.mulf %262, %264 : vector<4x8xf32>
    %266 = arith.mulf %265, %261 : vector<4x8xf32>
    %267 = tpu.concatenate %261, %266, %210 in 1 : vector<4x8xf32>, vector<4x8xf32>, vector<4x32xf32> -> vector<4x48xf32>
    %268 = arith.truncf %267 : vector<4x48xf32> to vector<4x48xbf16>
    %cst_82 = arith.constant dense<0.000000e+00> : vector<4x128xf32>
    %269 = tpu.matmul %268, %2, %cst_82 {dimension_numbers = #tpu.dot_dimension_numbers<[1], [0], [0], [1], [0, 0, 1, 1], [], []>} : vector<4x48xbf16>, vector<48x128xbf16>, vector<4x128xf32> -> vector<4x128xf32>
    %270 = vector.broadcast %3 : vector<1x128xf32> to vector<4x128xf32>
    %271 = arith.addf %269, %270 : vector<4x128xf32>
    %272 = arith.negf %271 : vector<4x128xf32>
    %273 = math.exp %272 : vector<4x128xf32>
    %cst_83 = arith.constant 1.000000e+00 : f32
    %274 = vector.broadcast %cst_83 : f32 to vector<4x128xf32>
    %275 = arith.addf %274, %273 : vector<4x128xf32>
    %276 = arith.divf %274, %275 : vector<4x128xf32>
    %277 = vector.extract_strided_slice %276 {offsets = [0, 0], sizes = [4, 32], strides = [1, 1]} : vector<4x128xf32> to vector<4x32xf32>
    %278 = vector.extract_strided_slice %276 {offsets = [0, 32], sizes = [4, 32], strides = [1, 1]} : vector<4x128xf32> to vector<4x32xf32>
    %279 = vector.extract_strided_slice %276 {offsets = [0, 64], sizes = [4, 32], strides = [1, 1]} : vector<4x128xf32> to vector<4x32xf32>
    %cst_84 = arith.constant 2.000000e+00 : f32
    %280 = vector.broadcast %cst_84 : f32 to vector<4x32xf32>
    %281 = arith.mulf %280, %279 : vector<4x32xf32>
    %cst_85 = arith.constant 1.000000e+00 : f32
    %282 = vector.broadcast %cst_85 : f32 to vector<4x32xf32>
    %283 = arith.subf %281, %282 : vector<4x32xf32>
    %284 = vector.extract_strided_slice %276 {offsets = [0, 96], sizes = [4, 32], strides = [1, 1]} : vector<4x128xf32> to vector<4x32xf32>
    %285 = arith.mulf %278, %208 : vector<4x32xf32>
    %286 = arith.mulf %277, %283 : vector<4x32xf32>
    %287 = arith.addf %285, %286 : vector<4x32xf32>
    %288 = math.tanh %287 : vector<4x32xf32>
    %289 = arith.mulf %284, %288 : vector<4x32xf32>
    %c0_86 = arith.constant 0 : index
    %c0_87 = arith.constant 0 : index
    %c8 = arith.constant 8 : index
    %290 = vector.load %arg7[%c0_86, %c0_87, %c8] : memref<4x1x64xf32, #tpu.memory_space<vmem>>, vector<4x1x8xf32>
    %291 = vector.shape_cast %290 : vector<4x1x8xf32> to vector<4x8xf32>
    %292 = vector.shape_cast %266 : vector<4x8xf32> to vector<4x1x8xf32>
    tpu.vector_store %arg7[%c0_86, %c0_87, %c8], %292 {strides = array<i32>} : memref<4x1x64xf32, #tpu.memory_space<vmem>>, vector<4x1x8xf32>,
    %293 = vector.extract_strided_slice %289 {offsets = [0, 16], sizes = [4, 16], strides = [1, 1]} : vector<4x32xf32> to vector<4x16xf32>
    %c0_88 = arith.constant 0 : index
    %c0_89 = arith.constant 0 : index
    %c16 = arith.constant 16 : index
    %294 = vector.load %arg8[%c0_88, %c0_89, %c16] : memref<4x1x128xf32, #tpu.memory_space<vmem>>, vector<4x1x16xf32>
    %295 = vector.shape_cast %294 : vector<4x1x16xf32> to vector<4x16xf32>
    %296 = vector.shape_cast %293 : vector<4x16xf32> to vector<4x1x16xf32>
    tpu.vector_store %arg8[%c0_88, %c0_89, %c16], %296 {strides = array<i32>} : memref<4x1x128xf32, #tpu.memory_space<vmem>>, vector<4x1x16xf32>,
    %297 = tpu.concatenate %289, %287 in 1 : vector<4x32xf32>, vector<4x32xf32> -> vector<4x64xf32>
    %298 = vector.extract_strided_slice %1 {offsets = [0, 0], sizes = [1, 64], strides = [1, 1]} : vector<2x64xf32> to vector<1x64xf32>
    %299 = vector.broadcast %298 : vector<1x64xf32> to vector<4x64xf32>
    %300 = arith.mulf %297, %299 : vector<4x64xf32>
    %cst_90 = arith.constant dense<0.000000e+00> : vector<4xf32>
    %301 = vector.multi_reduction <add>, %300, %cst_90 [1] : vector<4x64xf32> to vector<4xf32>
    %302 = vector.shape_cast %301 : vector<4xf32> to vector<4x1xf32>
    %303 = vector.extract_strided_slice %1 {offsets = [1, 0], sizes = [1, 64], strides = [1, 1]} : vector<2x64xf32> to vector<1x64xf32>
    %304 = vector.broadcast %303 : vector<1x64xf32> to vector<4x64xf32>
    %305 = arith.mulf %297, %304 : vector<4x64xf32>
    %cst_91 = arith.constant dense<0.000000e+00> : vector<4xf32>
    %306 = vector.multi_reduction <add>, %305, %cst_91 [1] : vector<4x64xf32> to vector<4xf32>
    %307 = vector.shape_cast %306 : vector<4xf32> to vector<4x1xf32>
    %308 = vector.broadcast %302 : vector<4x1xf32> to vector<4x8xf32>
    %309 = arith.addf %308, %131 : vector<4x8xf32>
    %310 = vector.broadcast %307 : vector<4x1xf32> to vector<4x8xf32>
    %311 = arith.addf %310, %136 : vector<4x8xf32>
    %312 = tpu.concatenate %309, %311 in 1 : vector<4x8xf32>, vector<4x8xf32> -> vector<4x16xf32>
    %313 = vector.extract_strided_slice %312 {offsets = [0, 0], sizes = [4, 8], strides = [1, 1]} : vector<4x16xf32> to vector<4x8xf32>
    %cst_92 = arith.constant dense<0xFF800000> : vector<4xf32>
    %314 = vector.multi_reduction <maximumf>, %313, %cst_92 [1] : vector<4x8xf32> to vector<4xf32>
    %315 = vector.shape_cast %314 : vector<4xf32> to vector<4x1xf32>
    %316 = vector.extract_strided_slice %312 {offsets = [0, 8], sizes = [4, 8], strides = [1, 1]} : vector<4x16xf32> to vector<4x8xf32>
    %cst_93 = arith.constant dense<0xFF800000> : vector<4xf32>
    %317 = vector.multi_reduction <maximumf>, %316, %cst_93 [1] : vector<4x8xf32> to vector<4xf32>
    %318 = vector.shape_cast %317 : vector<4xf32> to vector<4x1xf32>
    %319 = vector.shape_cast %315 : vector<4x1xf32> to vector<4x1xf32>
    %320 = vector.broadcast %319 : vector<4x1xf32> to vector<4x8xf32>
    %321 = vector.shape_cast %318 : vector<4x1xf32> to vector<4x1xf32>
    %322 = vector.broadcast %321 : vector<4x1xf32> to vector<4x8xf32>
    %323 = tpu.concatenate %320, %322 in 1 : vector<4x8xf32>, vector<4x8xf32> -> vector<4x16xf32>
    %324 = arith.subf %312, %323 : vector<4x16xf32>
    %325 = math.exp %324 : vector<4x16xf32>
    %326 = vector.extract_strided_slice %325 {offsets = [0, 0], sizes = [4, 8], strides = [1, 1]} : vector<4x16xf32> to vector<4x8xf32>
    %cst_94 = arith.constant dense<0.000000e+00> : vector<4xf32>
    %327 = vector.multi_reduction <add>, %326, %cst_94 [1] : vector<4x8xf32> to vector<4xf32>
    %328 = vector.shape_cast %327 : vector<4xf32> to vector<4x1xf32>
    %329 = vector.extract_strided_slice %325 {offsets = [0, 8], sizes = [4, 8], strides = [1, 1]} : vector<4x16xf32> to vector<4x8xf32>
    %cst_95 = arith.constant dense<0.000000e+00> : vector<4xf32>
    %330 = vector.multi_reduction <add>, %329, %cst_95 [1] : vector<4x8xf32> to vector<4xf32>
    %331 = vector.shape_cast %330 : vector<4xf32> to vector<4x1xf32>
    %332 = tpu.concatenate %328, %331 in 1 : vector<4x1xf32>, vector<4x1xf32> -> vector<4x2xf32>
    %333 = tpu.reciprocal %332 {approx = true} : vector<4x2xf32> -> vector<4x2xf32>
    %334 = vector.extract_strided_slice %0 {offsets = [0, 2, 0], sizes = [4, 1, 8], strides = [1, 1, 1]} : vector<4x8x8xf32> to vector<4x1x8xf32>
    %335 = vector.shape_cast %334 : vector<4x1x8xf32> to vector<4x8xf32>
    %336 = vector.extract_strided_slice %325 {offsets = [0, 0], sizes = [4, 8], strides = [1, 1]} : vector<4x16xf32> to vector<4x8xf32>
    %337 = vector.extract_strided_slice %333 {offsets = [0, 0], sizes = [4, 1], strides = [1, 1]} : vector<4x2xf32> to vector<4x1xf32>
    %338 = vector.broadcast %337 : vector<4x1xf32> to vector<4x8xf32>
    %339 = arith.mulf %336, %338 : vector<4x8xf32>
    %340 = arith.mulf %339, %335 : vector<4x8xf32>
    %341 = vector.extract_strided_slice %325 {offsets = [0, 8], sizes = [4, 8], strides = [1, 1]} : vector<4x16xf32> to vector<4x8xf32>
    %342 = vector.extract_strided_slice %333 {offsets = [0, 1], sizes = [4, 1], strides = [1, 1]} : vector<4x2xf32> to vector<4x1xf32>
    %343 = vector.broadcast %342 : vector<4x1xf32> to vector<4x8xf32>
    %344 = arith.mulf %341, %343 : vector<4x8xf32>
    %345 = arith.mulf %344, %340 : vector<4x8xf32>
    %346 = tpu.concatenate %340, %345, %289 in 1 : vector<4x8xf32>, vector<4x8xf32>, vector<4x32xf32> -> vector<4x48xf32>
    %347 = arith.truncf %346 : vector<4x48xf32> to vector<4x48xbf16>
    %cst_96 = arith.constant dense<0.000000e+00> : vector<4x128xf32>
    %348 = tpu.matmul %347, %2, %cst_96 {dimension_numbers = #tpu.dot_dimension_numbers<[1], [0], [0], [1], [0, 0, 1, 1], [], []>} : vector<4x48xbf16>, vector<48x128xbf16>, vector<4x128xf32> -> vector<4x128xf32>
    %349 = vector.broadcast %3 : vector<1x128xf32> to vector<4x128xf32>
    %350 = arith.addf %348, %349 : vector<4x128xf32>
    %351 = arith.negf %350 : vector<4x128xf32>
    %352 = math.exp %351 : vector<4x128xf32>
    %cst_97 = arith.constant 1.000000e+00 : f32
    %353 = vector.broadcast %cst_97 : f32 to vector<4x128xf32>
    %354 = arith.addf %353, %352 : vector<4x128xf32>
    %355 = arith.divf %353, %354 : vector<4x128xf32>
    %356 = vector.extract_strided_slice %355 {offsets = [0, 0], sizes = [4, 32], strides = [1, 1]} : vector<4x128xf32> to vector<4x32xf32>
    %357 = vector.extract_strided_slice %355 {offsets = [0, 32], sizes = [4, 32], strides = [1, 1]} : vector<4x128xf32> to vector<4x32xf32>
    %358 = vector.extract_strided_slice %355 {offsets = [0, 64], sizes = [4, 32], strides = [1, 1]} : vector<4x128xf32> to vector<4x32xf32>
    %cst_98 = arith.constant 2.000000e+00 : f32
    %359 = vector.broadcast %cst_98 : f32 to vector<4x32xf32>
    %360 = arith.mulf %359, %358 : vector<4x32xf32>
    %cst_99 = arith.constant 1.000000e+00 : f32
    %361 = vector.broadcast %cst_99 : f32 to vector<4x32xf32>
    %362 = arith.subf %360, %361 : vector<4x32xf32>
    %363 = vector.extract_strided_slice %355 {offsets = [0, 96], sizes = [4, 32], strides = [1, 1]} : vector<4x128xf32> to vector<4x32xf32>
    %364 = arith.mulf %357, %287 : vector<4x32xf32>
    %365 = arith.mulf %356, %362 : vector<4x32xf32>
    %366 = arith.addf %364, %365 : vector<4x32xf32>
    %367 = math.tanh %366 : vector<4x32xf32>
    %368 = arith.mulf %363, %367 : vector<4x32xf32>
    %c0_100 = arith.constant 0 : index
    %c0_101 = arith.constant 0 : index
    %c16_102 = arith.constant 16 : index
    %369 = vector.load %arg7[%c0_100, %c0_101, %c16_102] : memref<4x1x64xf32, #tpu.memory_space<vmem>>, vector<4x1x8xf32>
    %370 = vector.shape_cast %369 : vector<4x1x8xf32> to vector<4x8xf32>
    %371 = vector.shape_cast %345 : vector<4x8xf32> to vector<4x1x8xf32>
    tpu.vector_store %arg7[%c0_100, %c0_101, %c16_102], %371 {strides = array<i32>} : memref<4x1x64xf32, #tpu.memory_space<vmem>>, vector<4x1x8xf32>,
    %372 = vector.extract_strided_slice %368 {offsets = [0, 16], sizes = [4, 16], strides = [1, 1]} : vector<4x32xf32> to vector<4x16xf32>
    %c0_103 = arith.constant 0 : index
    %c0_104 = arith.constant 0 : index
    %c32 = arith.constant 32 : index
    %373 = vector.load %arg8[%c0_103, %c0_104, %c32] : memref<4x1x128xf32, #tpu.memory_space<vmem>>, vector<4x1x16xf32>
    %374 = vector.shape_cast %373 : vector<4x1x16xf32> to vector<4x16xf32>
    %375 = vector.shape_cast %372 : vector<4x16xf32> to vector<4x1x16xf32>
    tpu.vector_store %arg8[%c0_103, %c0_104, %c32], %375 {strides = array<i32>} : memref<4x1x128xf32, #tpu.memory_space<vmem>>, vector<4x1x16xf32>,
    %376 = tpu.concatenate %368, %366 in 1 : vector<4x32xf32>, vector<4x32xf32> -> vector<4x64xf32>
    %377 = vector.extract_strided_slice %1 {offsets = [0, 0], sizes = [1, 64], strides = [1, 1]} : vector<2x64xf32> to vector<1x64xf32>
    %378 = vector.broadcast %377 : vector<1x64xf32> to vector<4x64xf32>
    %379 = arith.mulf %376, %378 : vector<4x64xf32>
    %cst_105 = arith.constant dense<0.000000e+00> : vector<4xf32>
    %380 = vector.multi_reduction <add>, %379, %cst_105 [1] : vector<4x64xf32> to vector<4xf32>
    %381 = vector.shape_cast %380 : vector<4xf32> to vector<4x1xf32>
    %382 = vector.extract_strided_slice %1 {offsets = [1, 0], sizes = [1, 64], strides = [1, 1]} : vector<2x64xf32> to vector<1x64xf32>
    %383 = vector.broadcast %382 : vector<1x64xf32> to vector<4x64xf32>
    %384 = arith.mulf %376, %383 : vector<4x64xf32>
    %cst_106 = arith.constant dense<0.000000e+00> : vector<4xf32>
    %385 = vector.multi_reduction <add>, %384, %cst_106 [1] : vector<4x64xf32> to vector<4xf32>
    %386 = vector.shape_cast %385 : vector<4xf32> to vector<4x1xf32>
    %387 = vector.broadcast %381 : vector<4x1xf32> to vector<4x8xf32>
    %388 = arith.addf %387, %131 : vector<4x8xf32>
    %389 = vector.broadcast %386 : vector<4x1xf32> to vector<4x8xf32>
    %390 = arith.addf %389, %136 : vector<4x8xf32>
    %391 = tpu.concatenate %388, %390 in 1 : vector<4x8xf32>, vector<4x8xf32> -> vector<4x16xf32>
    %392 = vector.extract_strided_slice %391 {offsets = [0, 0], sizes = [4, 8], strides = [1, 1]} : vector<4x16xf32> to vector<4x8xf32>
    %cst_107 = arith.constant dense<0xFF800000> : vector<4xf32>
    %393 = vector.multi_reduction <maximumf>, %392, %cst_107 [1] : vector<4x8xf32> to vector<4xf32>
    %394 = vector.shape_cast %393 : vector<4xf32> to vector<4x1xf32>
    %395 = vector.extract_strided_slice %391 {offsets = [0, 8], sizes = [4, 8], strides = [1, 1]} : vector<4x16xf32> to vector<4x8xf32>
    %cst_108 = arith.constant dense<0xFF800000> : vector<4xf32>
    %396 = vector.multi_reduction <maximumf>, %395, %cst_108 [1] : vector<4x8xf32> to vector<4xf32>
    %397 = vector.shape_cast %396 : vector<4xf32> to vector<4x1xf32>
    %398 = vector.shape_cast %394 : vector<4x1xf32> to vector<4x1xf32>
    %399 = vector.broadcast %398 : vector<4x1xf32> to vector<4x8xf32>
    %400 = vector.shape_cast %397 : vector<4x1xf32> to vector<4x1xf32>
    %401 = vector.broadcast %400 : vector<4x1xf32> to vector<4x8xf32>
    %402 = tpu.concatenate %399, %401 in 1 : vector<4x8xf32>, vector<4x8xf32> -> vector<4x16xf32>
    %403 = arith.subf %391, %402 : vector<4x16xf32>
    %404 = math.exp %403 : vector<4x16xf32>
    %405 = vector.extract_strided_slice %404 {offsets = [0, 0], sizes = [4, 8], strides = [1, 1]} : vector<4x16xf32> to vector<4x8xf32>
    %cst_109 = arith.constant dense<0.000000e+00> : vector<4xf32>
    %406 = vector.multi_reduction <add>, %405, %cst_109 [1] : vector<4x8xf32> to vector<4xf32>
    %407 = vector.shape_cast %406 : vector<4xf32> to vector<4x1xf32>
    %408 = vector.extract_strided_slice %404 {offsets = [0, 8], sizes = [4, 8], strides = [1, 1]} : vector<4x16xf32> to vector<4x8xf32>
    %cst_110 = arith.constant dense<0.000000e+00> : vector<4xf32>
    %409 = vector.multi_reduction <add>, %408, %cst_110 [1] : vector<4x8xf32> to vector<4xf32>
    %410 = vector.shape_cast %409 : vector<4xf32> to vector<4x1xf32>
    %411 = tpu.concatenate %407, %410 in 1 : vector<4x1xf32>, vector<4x1xf32> -> vector<4x2xf32>
    %412 = tpu.reciprocal %411 {approx = true} : vector<4x2xf32> -> vector<4x2xf32>
    %413 = vector.extract_strided_slice %0 {offsets = [0, 3, 0], sizes = [4, 1, 8], strides = [1, 1, 1]} : vector<4x8x8xf32> to vector<4x1x8xf32>
    %414 = vector.shape_cast %413 : vector<4x1x8xf32> to vector<4x8xf32>
    %415 = vector.extract_strided_slice %404 {offsets = [0, 0], sizes = [4, 8], strides = [1, 1]} : vector<4x16xf32> to vector<4x8xf32>
    %416 = vector.extract_strided_slice %412 {offsets = [0, 0], sizes = [4, 1], strides = [1, 1]} : vector<4x2xf32> to vector<4x1xf32>
    %417 = vector.broadcast %416 : vector<4x1xf32> to vector<4x8xf32>
    %418 = arith.mulf %415, %417 : vector<4x8xf32>
    %419 = arith.mulf %418, %414 : vector<4x8xf32>
    %420 = vector.extract_strided_slice %404 {offsets = [0, 8], sizes = [4, 8], strides = [1, 1]} : vector<4x16xf32> to vector<4x8xf32>
    %421 = vector.extract_strided_slice %412 {offsets = [0, 1], sizes = [4, 1], strides = [1, 1]} : vector<4x2xf32> to vector<4x1xf32>
    %422 = vector.broadcast %421 : vector<4x1xf32> to vector<4x8xf32>
    %423 = arith.mulf %420, %422 : vector<4x8xf32>
    %424 = arith.mulf %423, %419 : vector<4x8xf32>
    %425 = tpu.concatenate %419, %424, %368 in 1 : vector<4x8xf32>, vector<4x8xf32>, vector<4x32xf32> -> vector<4x48xf32>
    %426 = arith.truncf %425 : vector<4x48xf32> to vector<4x48xbf16>
    %cst_111 = arith.constant dense<0.000000e+00> : vector<4x128xf32>
    %427 = tpu.matmul %426, %2, %cst_111 {dimension_numbers = #tpu.dot_dimension_numbers<[1], [0], [0], [1], [0, 0, 1, 1], [], []>} : vector<4x48xbf16>, vector<48x128xbf16>, vector<4x128xf32> -> vector<4x128xf32>
    %428 = vector.broadcast %3 : vector<1x128xf32> to vector<4x128xf32>
    %429 = arith.addf %427, %428 : vector<4x128xf32>
    %430 = arith.negf %429 : vector<4x128xf32>
    %431 = math.exp %430 : vector<4x128xf32>
    %cst_112 = arith.constant 1.000000e+00 : f32
    %432 = vector.broadcast %cst_112 : f32 to vector<4x128xf32>
    %433 = arith.addf %432, %431 : vector<4x128xf32>
    %434 = arith.divf %432, %433 : vector<4x128xf32>
    %435 = vector.extract_strided_slice %434 {offsets = [0, 0], sizes = [4, 32], strides = [1, 1]} : vector<4x128xf32> to vector<4x32xf32>
    %436 = vector.extract_strided_slice %434 {offsets = [0, 32], sizes = [4, 32], strides = [1, 1]} : vector<4x128xf32> to vector<4x32xf32>
    %437 = vector.extract_strided_slice %434 {offsets = [0, 64], sizes = [4, 32], strides = [1, 1]} : vector<4x128xf32> to vector<4x32xf32>
    %cst_113 = arith.constant 2.000000e+00 : f32
    %438 = vector.broadcast %cst_113 : f32 to vector<4x32xf32>
    %439 = arith.mulf %438, %437 : vector<4x32xf32>
    %cst_114 = arith.constant 1.000000e+00 : f32
    %440 = vector.broadcast %cst_114 : f32 to vector<4x32xf32>
    %441 = arith.subf %439, %440 : vector<4x32xf32>
    %442 = vector.extract_strided_slice %434 {offsets = [0, 96], sizes = [4, 32], strides = [1, 1]} : vector<4x128xf32> to vector<4x32xf32>
    %443 = arith.mulf %436, %366 : vector<4x32xf32>
    %444 = arith.mulf %435, %441 : vector<4x32xf32>
    %445 = arith.addf %443, %444 : vector<4x32xf32>
    %446 = math.tanh %445 : vector<4x32xf32>
    %447 = arith.mulf %442, %446 : vector<4x32xf32>
    %c0_115 = arith.constant 0 : index
    %c0_116 = arith.constant 0 : index
    %c24 = arith.constant 24 : index
    %448 = vector.load %arg7[%c0_115, %c0_116, %c24] : memref<4x1x64xf32, #tpu.memory_space<vmem>>, vector<4x1x8xf32>
    %449 = vector.shape_cast %448 : vector<4x1x8xf32> to vector<4x8xf32>
    %450 = vector.shape_cast %424 : vector<4x8xf32> to vector<4x1x8xf32>
    tpu.vector_store %arg7[%c0_115, %c0_116, %c24], %450 {strides = array<i32>} : memref<4x1x64xf32, #tpu.memory_space<vmem>>, vector<4x1x8xf32>,
    %451 = vector.extract_strided_slice %447 {offsets = [0, 16], sizes = [4, 16], strides = [1, 1]} : vector<4x32xf32> to vector<4x16xf32>
    %c0_117 = arith.constant 0 : index
    %c0_118 = arith.constant 0 : index
    %c48 = arith.constant 48 : index
    %452 = vector.load %arg8[%c0_117, %c0_118, %c48] : memref<4x1x128xf32, #tpu.memory_space<vmem>>, vector<4x1x16xf32>
    %453 = vector.shape_cast %452 : vector<4x1x16xf32> to vector<4x16xf32>
    %454 = vector.shape_cast %451 : vector<4x16xf32> to vector<4x1x16xf32>
    tpu.vector_store %arg8[%c0_117, %c0_118, %c48], %454 {strides = array<i32>} : memref<4x1x128xf32, #tpu.memory_space<vmem>>, vector<4x1x16xf32>,
    %455 = tpu.concatenate %447, %445 in 1 : vector<4x32xf32>, vector<4x32xf32> -> vector<4x64xf32>
    %456 = vector.extract_strided_slice %1 {offsets = [0, 0], sizes = [1, 64], strides = [1, 1]} : vector<2x64xf32> to vector<1x64xf32>
    %457 = vector.broadcast %456 : vector<1x64xf32> to vector<4x64xf32>
    %458 = arith.mulf %455, %457 : vector<4x64xf32>
    %cst_119 = arith.constant dense<0.000000e+00> : vector<4xf32>
    %459 = vector.multi_reduction <add>, %458, %cst_119 [1] : vector<4x64xf32> to vector<4xf32>
    %460 = vector.shape_cast %459 : vector<4xf32> to vector<4x1xf32>
    %461 = vector.extract_strided_slice %1 {offsets = [1, 0], sizes = [1, 64], strides = [1, 1]} : vector<2x64xf32> to vector<1x64xf32>
    %462 = vector.broadcast %461 : vector<1x64xf32> to vector<4x64xf32>
    %463 = arith.mulf %455, %462 : vector<4x64xf32>
    %cst_120 = arith.constant dense<0.000000e+00> : vector<4xf32>
    %464 = vector.multi_reduction <add>, %463, %cst_120 [1] : vector<4x64xf32> to vector<4xf32>
    %465 = vector.shape_cast %464 : vector<4xf32> to vector<4x1xf32>
    %466 = vector.broadcast %460 : vector<4x1xf32> to vector<4x8xf32>
    %467 = arith.addf %466, %131 : vector<4x8xf32>
    %468 = vector.broadcast %465 : vector<4x1xf32> to vector<4x8xf32>
    %469 = arith.addf %468, %136 : vector<4x8xf32>
    %470 = tpu.concatenate %467, %469 in 1 : vector<4x8xf32>, vector<4x8xf32> -> vector<4x16xf32>
    %471 = vector.extract_strided_slice %470 {offsets = [0, 0], sizes = [4, 8], strides = [1, 1]} : vector<4x16xf32> to vector<4x8xf32>
    %cst_121 = arith.constant dense<0xFF800000> : vector<4xf32>
    %472 = vector.multi_reduction <maximumf>, %471, %cst_121 [1] : vector<4x8xf32> to vector<4xf32>
    %473 = vector.shape_cast %472 : vector<4xf32> to vector<4x1xf32>
    %474 = vector.extract_strided_slice %470 {offsets = [0, 8], sizes = [4, 8], strides = [1, 1]} : vector<4x16xf32> to vector<4x8xf32>
    %cst_122 = arith.constant dense<0xFF800000> : vector<4xf32>
    %475 = vector.multi_reduction <maximumf>, %474, %cst_122 [1] : vector<4x8xf32> to vector<4xf32>
    %476 = vector.shape_cast %475 : vector<4xf32> to vector<4x1xf32>
    %477 = vector.shape_cast %473 : vector<4x1xf32> to vector<4x1xf32>
    %478 = vector.broadcast %477 : vector<4x1xf32> to vector<4x8xf32>
    %479 = vector.shape_cast %476 : vector<4x1xf32> to vector<4x1xf32>
    %480 = vector.broadcast %479 : vector<4x1xf32> to vector<4x8xf32>
    %481 = tpu.concatenate %478, %480 in 1 : vector<4x8xf32>, vector<4x8xf32> -> vector<4x16xf32>
    %482 = arith.subf %470, %481 : vector<4x16xf32>
    %483 = math.exp %482 : vector<4x16xf32>
    %484 = vector.extract_strided_slice %483 {offsets = [0, 0], sizes = [4, 8], strides = [1, 1]} : vector<4x16xf32> to vector<4x8xf32>
    %cst_123 = arith.constant dense<0.000000e+00> : vector<4xf32>
    %485 = vector.multi_reduction <add>, %484, %cst_123 [1] : vector<4x8xf32> to vector<4xf32>
    %486 = vector.shape_cast %485 : vector<4xf32> to vector<4x1xf32>
    %487 = vector.extract_strided_slice %483 {offsets = [0, 8], sizes = [4, 8], strides = [1, 1]} : vector<4x16xf32> to vector<4x8xf32>
    %cst_124 = arith.constant dense<0.000000e+00> : vector<4xf32>
    %488 = vector.multi_reduction <add>, %487, %cst_124 [1] : vector<4x8xf32> to vector<4xf32>
    %489 = vector.shape_cast %488 : vector<4xf32> to vector<4x1xf32>
    %490 = tpu.concatenate %486, %489 in 1 : vector<4x1xf32>, vector<4x1xf32> -> vector<4x2xf32>
    %491 = tpu.reciprocal %490 {approx = true} : vector<4x2xf32> -> vector<4x2xf32>
    %492 = vector.extract_strided_slice %0 {offsets = [0, 4, 0], sizes = [4, 1, 8], strides = [1, 1, 1]} : vector<4x8x8xf32> to vector<4x1x8xf32>
    %493 = vector.shape_cast %492 : vector<4x1x8xf32> to vector<4x8xf32>
    %494 = vector.extract_strided_slice %483 {offsets = [0, 0], sizes = [4, 8], strides = [1, 1]} : vector<4x16xf32> to vector<4x8xf32>
    %495 = vector.extract_strided_slice %491 {offsets = [0, 0], sizes = [4, 1], strides = [1, 1]} : vector<4x2xf32> to vector<4x1xf32>
    %496 = vector.broadcast %495 : vector<4x1xf32> to vector<4x8xf32>
    %497 = arith.mulf %494, %496 : vector<4x8xf32>
    %498 = arith.mulf %497, %493 : vector<4x8xf32>
    %499 = vector.extract_strided_slice %483 {offsets = [0, 8], sizes = [4, 8], strides = [1, 1]} : vector<4x16xf32> to vector<4x8xf32>
    %500 = vector.extract_strided_slice %491 {offsets = [0, 1], sizes = [4, 1], strides = [1, 1]} : vector<4x2xf32> to vector<4x1xf32>
    %501 = vector.broadcast %500 : vector<4x1xf32> to vector<4x8xf32>
    %502 = arith.mulf %499, %501 : vector<4x8xf32>
    %503 = arith.mulf %502, %498 : vector<4x8xf32>
    %504 = tpu.concatenate %498, %503, %447 in 1 : vector<4x8xf32>, vector<4x8xf32>, vector<4x32xf32> -> vector<4x48xf32>
    %505 = arith.truncf %504 : vector<4x48xf32> to vector<4x48xbf16>
    %cst_125 = arith.constant dense<0.000000e+00> : vector<4x128xf32>
    %506 = tpu.matmul %505, %2, %cst_125 {dimension_numbers = #tpu.dot_dimension_numbers<[1], [0], [0], [1], [0, 0, 1, 1], [], []>} : vector<4x48xbf16>, vector<48x128xbf16>, vector<4x128xf32> -> vector<4x128xf32>
    %507 = vector.broadcast %3 : vector<1x128xf32> to vector<4x128xf32>
    %508 = arith.addf %506, %507 : vector<4x128xf32>
    %509 = arith.negf %508 : vector<4x128xf32>
    %510 = math.exp %509 : vector<4x128xf32>
    %cst_126 = arith.constant 1.000000e+00 : f32
    %511 = vector.broadcast %cst_126 : f32 to vector<4x128xf32>
    %512 = arith.addf %511, %510 : vector<4x128xf32>
    %513 = arith.divf %511, %512 : vector<4x128xf32>
    %514 = vector.extract_strided_slice %513 {offsets = [0, 0], sizes = [4, 32], strides = [1, 1]} : vector<4x128xf32> to vector<4x32xf32>
    %515 = vector.extract_strided_slice %513 {offsets = [0, 32], sizes = [4, 32], strides = [1, 1]} : vector<4x128xf32> to vector<4x32xf32>
    %516 = vector.extract_strided_slice %513 {offsets = [0, 64], sizes = [4, 32], strides = [1, 1]} : vector<4x128xf32> to vector<4x32xf32>
    %cst_127 = arith.constant 2.000000e+00 : f32
    %517 = vector.broadcast %cst_127 : f32 to vector<4x32xf32>
    %518 = arith.mulf %517, %516 : vector<4x32xf32>
    %cst_128 = arith.constant 1.000000e+00 : f32
    %519 = vector.broadcast %cst_128 : f32 to vector<4x32xf32>
    %520 = arith.subf %518, %519 : vector<4x32xf32>
    %521 = vector.extract_strided_slice %513 {offsets = [0, 96], sizes = [4, 32], strides = [1, 1]} : vector<4x128xf32> to vector<4x32xf32>
    %522 = arith.mulf %515, %445 : vector<4x32xf32>
    %523 = arith.mulf %514, %520 : vector<4x32xf32>
    %524 = arith.addf %522, %523 : vector<4x32xf32>
    %525 = math.tanh %524 : vector<4x32xf32>
    %526 = arith.mulf %521, %525 : vector<4x32xf32>
    %c0_129 = arith.constant 0 : index
    %c0_130 = arith.constant 0 : index
    %c32_131 = arith.constant 32 : index
    %527 = vector.load %arg7[%c0_129, %c0_130, %c32_131] : memref<4x1x64xf32, #tpu.memory_space<vmem>>, vector<4x1x8xf32>
    %528 = vector.shape_cast %527 : vector<4x1x8xf32> to vector<4x8xf32>
    %529 = vector.shape_cast %503 : vector<4x8xf32> to vector<4x1x8xf32>
    tpu.vector_store %arg7[%c0_129, %c0_130, %c32_131], %529 {strides = array<i32>} : memref<4x1x64xf32, #tpu.memory_space<vmem>>, vector<4x1x8xf32>,
    %530 = vector.extract_strided_slice %526 {offsets = [0, 16], sizes = [4, 16], strides = [1, 1]} : vector<4x32xf32> to vector<4x16xf32>
    %c0_132 = arith.constant 0 : index
    %c0_133 = arith.constant 0 : index
    %c64 = arith.constant 64 : index
    %531 = vector.load %arg8[%c0_132, %c0_133, %c64] : memref<4x1x128xf32, #tpu.memory_space<vmem>>, vector<4x1x16xf32>
    %532 = vector.shape_cast %531 : vector<4x1x16xf32> to vector<4x16xf32>
    %533 = vector.shape_cast %530 : vector<4x16xf32> to vector<4x1x16xf32>
    tpu.vector_store %arg8[%c0_132, %c0_133, %c64], %533 {strides = array<i32>} : memref<4x1x128xf32, #tpu.memory_space<vmem>>, vector<4x1x16xf32>,
    %534 = tpu.concatenate %526, %524 in 1 : vector<4x32xf32>, vector<4x32xf32> -> vector<4x64xf32>
    %535 = vector.extract_strided_slice %1 {offsets = [0, 0], sizes = [1, 64], strides = [1, 1]} : vector<2x64xf32> to vector<1x64xf32>
    %536 = vector.broadcast %535 : vector<1x64xf32> to vector<4x64xf32>
    %537 = arith.mulf %534, %536 : vector<4x64xf32>
    %cst_134 = arith.constant dense<0.000000e+00> : vector<4xf32>
    %538 = vector.multi_reduction <add>, %537, %cst_134 [1] : vector<4x64xf32> to vector<4xf32>
    %539 = vector.shape_cast %538 : vector<4xf32> to vector<4x1xf32>
    %540 = vector.extract_strided_slice %1 {offsets = [1, 0], sizes = [1, 64], strides = [1, 1]} : vector<2x64xf32> to vector<1x64xf32>
    %541 = vector.broadcast %540 : vector<1x64xf32> to vector<4x64xf32>
    %542 = arith.mulf %534, %541 : vector<4x64xf32>
    %cst_135 = arith.constant dense<0.000000e+00> : vector<4xf32>
    %543 = vector.multi_reduction <add>, %542, %cst_135 [1] : vector<4x64xf32> to vector<4xf32>
    %544 = vector.shape_cast %543 : vector<4xf32> to vector<4x1xf32>
    %545 = vector.broadcast %539 : vector<4x1xf32> to vector<4x8xf32>
    %546 = arith.addf %545, %131 : vector<4x8xf32>
    %547 = vector.broadcast %544 : vector<4x1xf32> to vector<4x8xf32>
    %548 = arith.addf %547, %136 : vector<4x8xf32>
    %549 = tpu.concatenate %546, %548 in 1 : vector<4x8xf32>, vector<4x8xf32> -> vector<4x16xf32>
    %550 = vector.extract_strided_slice %549 {offsets = [0, 0], sizes = [4, 8], strides = [1, 1]} : vector<4x16xf32> to vector<4x8xf32>
    %cst_136 = arith.constant dense<0xFF800000> : vector<4xf32>
    %551 = vector.multi_reduction <maximumf>, %550, %cst_136 [1] : vector<4x8xf32> to vector<4xf32>
    %552 = vector.shape_cast %551 : vector<4xf32> to vector<4x1xf32>
    %553 = vector.extract_strided_slice %549 {offsets = [0, 8], sizes = [4, 8], strides = [1, 1]} : vector<4x16xf32> to vector<4x8xf32>
    %cst_137 = arith.constant dense<0xFF800000> : vector<4xf32>
    %554 = vector.multi_reduction <maximumf>, %553, %cst_137 [1] : vector<4x8xf32> to vector<4xf32>
    %555 = vector.shape_cast %554 : vector<4xf32> to vector<4x1xf32>
    %556 = vector.shape_cast %552 : vector<4x1xf32> to vector<4x1xf32>
    %557 = vector.broadcast %556 : vector<4x1xf32> to vector<4x8xf32>
    %558 = vector.shape_cast %555 : vector<4x1xf32> to vector<4x1xf32>
    %559 = vector.broadcast %558 : vector<4x1xf32> to vector<4x8xf32>
    %560 = tpu.concatenate %557, %559 in 1 : vector<4x8xf32>, vector<4x8xf32> -> vector<4x16xf32>
    %561 = arith.subf %549, %560 : vector<4x16xf32>
    %562 = math.exp %561 : vector<4x16xf32>
    %563 = vector.extract_strided_slice %562 {offsets = [0, 0], sizes = [4, 8], strides = [1, 1]} : vector<4x16xf32> to vector<4x8xf32>
    %cst_138 = arith.constant dense<0.000000e+00> : vector<4xf32>
    %564 = vector.multi_reduction <add>, %563, %cst_138 [1] : vector<4x8xf32> to vector<4xf32>
    %565 = vector.shape_cast %564 : vector<4xf32> to vector<4x1xf32>
    %566 = vector.extract_strided_slice %562 {offsets = [0, 8], sizes = [4, 8], strides = [1, 1]} : vector<4x16xf32> to vector<4x8xf32>
    %cst_139 = arith.constant dense<0.000000e+00> : vector<4xf32>
    %567 = vector.multi_reduction <add>, %566, %cst_139 [1] : vector<4x8xf32> to vector<4xf32>
    %568 = vector.shape_cast %567 : vector<4xf32> to vector<4x1xf32>
    %569 = tpu.concatenate %565, %568 in 1 : vector<4x1xf32>, vector<4x1xf32> -> vector<4x2xf32>
    %570 = tpu.reciprocal %569 {approx = true} : vector<4x2xf32> -> vector<4x2xf32>
    %571 = vector.extract_strided_slice %0 {offsets = [0, 5, 0], sizes = [4, 1, 8], strides = [1, 1, 1]} : vector<4x8x8xf32> to vector<4x1x8xf32>
    %572 = vector.shape_cast %571 : vector<4x1x8xf32> to vector<4x8xf32>
    %573 = vector.extract_strided_slice %562 {offsets = [0, 0], sizes = [4, 8], strides = [1, 1]} : vector<4x16xf32> to vector<4x8xf32>
    %574 = vector.extract_strided_slice %570 {offsets = [0, 0], sizes = [4, 1], strides = [1, 1]} : vector<4x2xf32> to vector<4x1xf32>
    %575 = vector.broadcast %574 : vector<4x1xf32> to vector<4x8xf32>
    %576 = arith.mulf %573, %575 : vector<4x8xf32>
    %577 = arith.mulf %576, %572 : vector<4x8xf32>
    %578 = vector.extract_strided_slice %562 {offsets = [0, 8], sizes = [4, 8], strides = [1, 1]} : vector<4x16xf32> to vector<4x8xf32>
    %579 = vector.extract_strided_slice %570 {offsets = [0, 1], sizes = [4, 1], strides = [1, 1]} : vector<4x2xf32> to vector<4x1xf32>
    %580 = vector.broadcast %579 : vector<4x1xf32> to vector<4x8xf32>
    %581 = arith.mulf %578, %580 : vector<4x8xf32>
    %582 = arith.mulf %581, %577 : vector<4x8xf32>
    %583 = tpu.concatenate %577, %582, %526 in 1 : vector<4x8xf32>, vector<4x8xf32>, vector<4x32xf32> -> vector<4x48xf32>
    %584 = arith.truncf %583 : vector<4x48xf32> to vector<4x48xbf16>
    %cst_140 = arith.constant dense<0.000000e+00> : vector<4x128xf32>
    %585 = tpu.matmul %584, %2, %cst_140 {dimension_numbers = #tpu.dot_dimension_numbers<[1], [0], [0], [1], [0, 0, 1, 1], [], []>} : vector<4x48xbf16>, vector<48x128xbf16>, vector<4x128xf32> -> vector<4x128xf32>
    %586 = vector.broadcast %3 : vector<1x128xf32> to vector<4x128xf32>
    %587 = arith.addf %585, %586 : vector<4x128xf32>
    %588 = arith.negf %587 : vector<4x128xf32>
    %589 = math.exp %588 : vector<4x128xf32>
    %cst_141 = arith.constant 1.000000e+00 : f32
    %590 = vector.broadcast %cst_141 : f32 to vector<4x128xf32>
    %591 = arith.addf %590, %589 : vector<4x128xf32>
    %592 = arith.divf %590, %591 : vector<4x128xf32>
    %593 = vector.extract_strided_slice %592 {offsets = [0, 0], sizes = [4, 32], strides = [1, 1]} : vector<4x128xf32> to vector<4x32xf32>
    %594 = vector.extract_strided_slice %592 {offsets = [0, 32], sizes = [4, 32], strides = [1, 1]} : vector<4x128xf32> to vector<4x32xf32>
    %595 = vector.extract_strided_slice %592 {offsets = [0, 64], sizes = [4, 32], strides = [1, 1]} : vector<4x128xf32> to vector<4x32xf32>
    %cst_142 = arith.constant 2.000000e+00 : f32
    %596 = vector.broadcast %cst_142 : f32 to vector<4x32xf32>
    %597 = arith.mulf %596, %595 : vector<4x32xf32>
    %cst_143 = arith.constant 1.000000e+00 : f32
    %598 = vector.broadcast %cst_143 : f32 to vector<4x32xf32>
    %599 = arith.subf %597, %598 : vector<4x32xf32>
    %600 = vector.extract_strided_slice %592 {offsets = [0, 96], sizes = [4, 32], strides = [1, 1]} : vector<4x128xf32> to vector<4x32xf32>
    %601 = arith.mulf %594, %524 : vector<4x32xf32>
    %602 = arith.mulf %593, %599 : vector<4x32xf32>
    %603 = arith.addf %601, %602 : vector<4x32xf32>
    %604 = math.tanh %603 : vector<4x32xf32>
    %605 = arith.mulf %600, %604 : vector<4x32xf32>
    %c0_144 = arith.constant 0 : index
    %c0_145 = arith.constant 0 : index
    %c40 = arith.constant 40 : index
    %606 = vector.load %arg7[%c0_144, %c0_145, %c40] : memref<4x1x64xf32, #tpu.memory_space<vmem>>, vector<4x1x8xf32>
    %607 = vector.shape_cast %606 : vector<4x1x8xf32> to vector<4x8xf32>
    %608 = vector.shape_cast %582 : vector<4x8xf32> to vector<4x1x8xf32>
    tpu.vector_store %arg7[%c0_144, %c0_145, %c40], %608 {strides = array<i32>} : memref<4x1x64xf32, #tpu.memory_space<vmem>>, vector<4x1x8xf32>,
    %609 = vector.extract_strided_slice %605 {offsets = [0, 16], sizes = [4, 16], strides = [1, 1]} : vector<4x32xf32> to vector<4x16xf32>
    %c0_146 = arith.constant 0 : index
    %c0_147 = arith.constant 0 : index
    %c80 = arith.constant 80 : index
    %610 = vector.load %arg8[%c0_146, %c0_147, %c80] : memref<4x1x128xf32, #tpu.memory_space<vmem>>, vector<4x1x16xf32>
    %611 = vector.shape_cast %610 : vector<4x1x16xf32> to vector<4x16xf32>
    %612 = vector.shape_cast %609 : vector<4x16xf32> to vector<4x1x16xf32>
    tpu.vector_store %arg8[%c0_146, %c0_147, %c80], %612 {strides = array<i32>} : memref<4x1x128xf32, #tpu.memory_space<vmem>>, vector<4x1x16xf32>,
    %613 = tpu.concatenate %605, %603 in 1 : vector<4x32xf32>, vector<4x32xf32> -> vector<4x64xf32>
    %614 = vector.extract_strided_slice %1 {offsets = [0, 0], sizes = [1, 64], strides = [1, 1]} : vector<2x64xf32> to vector<1x64xf32>
    %615 = vector.broadcast %614 : vector<1x64xf32> to vector<4x64xf32>
    %616 = arith.mulf %613, %615 : vector<4x64xf32>
    %cst_148 = arith.constant dense<0.000000e+00> : vector<4xf32>
    %617 = vector.multi_reduction <add>, %616, %cst_148 [1] : vector<4x64xf32> to vector<4xf32>
    %618 = vector.shape_cast %617 : vector<4xf32> to vector<4x1xf32>
    %619 = vector.extract_strided_slice %1 {offsets = [1, 0], sizes = [1, 64], strides = [1, 1]} : vector<2x64xf32> to vector<1x64xf32>
    %620 = vector.broadcast %619 : vector<1x64xf32> to vector<4x64xf32>
    %621 = arith.mulf %613, %620 : vector<4x64xf32>
    %cst_149 = arith.constant dense<0.000000e+00> : vector<4xf32>
    %622 = vector.multi_reduction <add>, %621, %cst_149 [1] : vector<4x64xf32> to vector<4xf32>
    %623 = vector.shape_cast %622 : vector<4xf32> to vector<4x1xf32>
    %624 = vector.broadcast %618 : vector<4x1xf32> to vector<4x8xf32>
    %625 = arith.addf %624, %131 : vector<4x8xf32>
    %626 = vector.broadcast %623 : vector<4x1xf32> to vector<4x8xf32>
    %627 = arith.addf %626, %136 : vector<4x8xf32>
    %628 = tpu.concatenate %625, %627 in 1 : vector<4x8xf32>, vector<4x8xf32> -> vector<4x16xf32>
    %629 = vector.extract_strided_slice %628 {offsets = [0, 0], sizes = [4, 8], strides = [1, 1]} : vector<4x16xf32> to vector<4x8xf32>
    %cst_150 = arith.constant dense<0xFF800000> : vector<4xf32>
    %630 = vector.multi_reduction <maximumf>, %629, %cst_150 [1] : vector<4x8xf32> to vector<4xf32>
    %631 = vector.shape_cast %630 : vector<4xf32> to vector<4x1xf32>
    %632 = vector.extract_strided_slice %628 {offsets = [0, 8], sizes = [4, 8], strides = [1, 1]} : vector<4x16xf32> to vector<4x8xf32>
    %cst_151 = arith.constant dense<0xFF800000> : vector<4xf32>
    %633 = vector.multi_reduction <maximumf>, %632, %cst_151 [1] : vector<4x8xf32> to vector<4xf32>
    %634 = vector.shape_cast %633 : vector<4xf32> to vector<4x1xf32>
    %635 = vector.shape_cast %631 : vector<4x1xf32> to vector<4x1xf32>
    %636 = vector.broadcast %635 : vector<4x1xf32> to vector<4x8xf32>
    %637 = vector.shape_cast %634 : vector<4x1xf32> to vector<4x1xf32>
    %638 = vector.broadcast %637 : vector<4x1xf32> to vector<4x8xf32>
    %639 = tpu.concatenate %636, %638 in 1 : vector<4x8xf32>, vector<4x8xf32> -> vector<4x16xf32>
    %640 = arith.subf %628, %639 : vector<4x16xf32>
    %641 = math.exp %640 : vector<4x16xf32>
    %642 = vector.extract_strided_slice %641 {offsets = [0, 0], sizes = [4, 8], strides = [1, 1]} : vector<4x16xf32> to vector<4x8xf32>
    %cst_152 = arith.constant dense<0.000000e+00> : vector<4xf32>
    %643 = vector.multi_reduction <add>, %642, %cst_152 [1] : vector<4x8xf32> to vector<4xf32>
    %644 = vector.shape_cast %643 : vector<4xf32> to vector<4x1xf32>
    %645 = vector.extract_strided_slice %641 {offsets = [0, 8], sizes = [4, 8], strides = [1, 1]} : vector<4x16xf32> to vector<4x8xf32>
    %cst_153 = arith.constant dense<0.000000e+00> : vector<4xf32>
    %646 = vector.multi_reduction <add>, %645, %cst_153 [1] : vector<4x8xf32> to vector<4xf32>
    %647 = vector.shape_cast %646 : vector<4xf32> to vector<4x1xf32>
    %648 = tpu.concatenate %644, %647 in 1 : vector<4x1xf32>, vector<4x1xf32> -> vector<4x2xf32>
    %649 = tpu.reciprocal %648 {approx = true} : vector<4x2xf32> -> vector<4x2xf32>
    %650 = vector.extract_strided_slice %0 {offsets = [0, 6, 0], sizes = [4, 1, 8], strides = [1, 1, 1]} : vector<4x8x8xf32> to vector<4x1x8xf32>
    %651 = vector.shape_cast %650 : vector<4x1x8xf32> to vector<4x8xf32>
    %652 = vector.extract_strided_slice %641 {offsets = [0, 0], sizes = [4, 8], strides = [1, 1]} : vector<4x16xf32> to vector<4x8xf32>
    %653 = vector.extract_strided_slice %649 {offsets = [0, 0], sizes = [4, 1], strides = [1, 1]} : vector<4x2xf32> to vector<4x1xf32>
    %654 = vector.broadcast %653 : vector<4x1xf32> to vector<4x8xf32>
    %655 = arith.mulf %652, %654 : vector<4x8xf32>
    %656 = arith.mulf %655, %651 : vector<4x8xf32>
    %657 = vector.extract_strided_slice %641 {offsets = [0, 8], sizes = [4, 8], strides = [1, 1]} : vector<4x16xf32> to vector<4x8xf32>
    %658 = vector.extract_strided_slice %649 {offsets = [0, 1], sizes = [4, 1], strides = [1, 1]} : vector<4x2xf32> to vector<4x1xf32>
    %659 = vector.broadcast %658 : vector<4x1xf32> to vector<4x8xf32>
    %660 = arith.mulf %657, %659 : vector<4x8xf32>
    %661 = arith.mulf %660, %656 : vector<4x8xf32>
    %662 = tpu.concatenate %656, %661, %605 in 1 : vector<4x8xf32>, vector<4x8xf32>, vector<4x32xf32> -> vector<4x48xf32>
    %663 = arith.truncf %662 : vector<4x48xf32> to vector<4x48xbf16>
    %cst_154 = arith.constant dense<0.000000e+00> : vector<4x128xf32>
    %664 = tpu.matmul %663, %2, %cst_154 {dimension_numbers = #tpu.dot_dimension_numbers<[1], [0], [0], [1], [0, 0, 1, 1], [], []>} : vector<4x48xbf16>, vector<48x128xbf16>, vector<4x128xf32> -> vector<4x128xf32>
    %665 = vector.broadcast %3 : vector<1x128xf32> to vector<4x128xf32>
    %666 = arith.addf %664, %665 : vector<4x128xf32>
    %667 = arith.negf %666 : vector<4x128xf32>
    %668 = math.exp %667 : vector<4x128xf32>
    %cst_155 = arith.constant 1.000000e+00 : f32
    %669 = vector.broadcast %cst_155 : f32 to vector<4x128xf32>
    %670 = arith.addf %669, %668 : vector<4x128xf32>
    %671 = arith.divf %669, %670 : vector<4x128xf32>
    %672 = vector.extract_strided_slice %671 {offsets = [0, 0], sizes = [4, 32], strides = [1, 1]} : vector<4x128xf32> to vector<4x32xf32>
    %673 = vector.extract_strided_slice %671 {offsets = [0, 32], sizes = [4, 32], strides = [1, 1]} : vector<4x128xf32> to vector<4x32xf32>
    %674 = vector.extract_strided_slice %671 {offsets = [0, 64], sizes = [4, 32], strides = [1, 1]} : vector<4x128xf32> to vector<4x32xf32>
    %cst_156 = arith.constant 2.000000e+00 : f32
    %675 = vector.broadcast %cst_156 : f32 to vector<4x32xf32>
    %676 = arith.mulf %675, %674 : vector<4x32xf32>
    %cst_157 = arith.constant 1.000000e+00 : f32
    %677 = vector.broadcast %cst_157 : f32 to vector<4x32xf32>
    %678 = arith.subf %676, %677 : vector<4x32xf32>
    %679 = vector.extract_strided_slice %671 {offsets = [0, 96], sizes = [4, 32], strides = [1, 1]} : vector<4x128xf32> to vector<4x32xf32>
    %680 = arith.mulf %673, %603 : vector<4x32xf32>
    %681 = arith.mulf %672, %678 : vector<4x32xf32>
    %682 = arith.addf %680, %681 : vector<4x32xf32>
    %683 = math.tanh %682 : vector<4x32xf32>
    %684 = arith.mulf %679, %683 : vector<4x32xf32>
    %c0_158 = arith.constant 0 : index
    %c0_159 = arith.constant 0 : index
    %c48_160 = arith.constant 48 : index
    %685 = vector.load %arg7[%c0_158, %c0_159, %c48_160] : memref<4x1x64xf32, #tpu.memory_space<vmem>>, vector<4x1x8xf32>
    %686 = vector.shape_cast %685 : vector<4x1x8xf32> to vector<4x8xf32>
    %687 = vector.shape_cast %661 : vector<4x8xf32> to vector<4x1x8xf32>
    tpu.vector_store %arg7[%c0_158, %c0_159, %c48_160], %687 {strides = array<i32>} : memref<4x1x64xf32, #tpu.memory_space<vmem>>, vector<4x1x8xf32>,
    %688 = vector.extract_strided_slice %684 {offsets = [0, 16], sizes = [4, 16], strides = [1, 1]} : vector<4x32xf32> to vector<4x16xf32>
    %c0_161 = arith.constant 0 : index
    %c0_162 = arith.constant 0 : index
    %c96 = arith.constant 96 : index
    %689 = vector.load %arg8[%c0_161, %c0_162, %c96] : memref<4x1x128xf32, #tpu.memory_space<vmem>>, vector<4x1x16xf32>
    %690 = vector.shape_cast %689 : vector<4x1x16xf32> to vector<4x16xf32>
    %691 = vector.shape_cast %688 : vector<4x16xf32> to vector<4x1x16xf32>
    tpu.vector_store %arg8[%c0_161, %c0_162, %c96], %691 {strides = array<i32>} : memref<4x1x128xf32, #tpu.memory_space<vmem>>, vector<4x1x16xf32>,
    %692 = tpu.concatenate %684, %682 in 1 : vector<4x32xf32>, vector<4x32xf32> -> vector<4x64xf32>
    %693 = vector.extract_strided_slice %1 {offsets = [0, 0], sizes = [1, 64], strides = [1, 1]} : vector<2x64xf32> to vector<1x64xf32>
    %694 = vector.broadcast %693 : vector<1x64xf32> to vector<4x64xf32>
    %695 = arith.mulf %692, %694 : vector<4x64xf32>
    %cst_163 = arith.constant dense<0.000000e+00> : vector<4xf32>
    %696 = vector.multi_reduction <add>, %695, %cst_163 [1] : vector<4x64xf32> to vector<4xf32>
    %697 = vector.shape_cast %696 : vector<4xf32> to vector<4x1xf32>
    %698 = vector.extract_strided_slice %1 {offsets = [1, 0], sizes = [1, 64], strides = [1, 1]} : vector<2x64xf32> to vector<1x64xf32>
    %699 = vector.broadcast %698 : vector<1x64xf32> to vector<4x64xf32>
    %700 = arith.mulf %692, %699 : vector<4x64xf32>
    %cst_164 = arith.constant dense<0.000000e+00> : vector<4xf32>
    %701 = vector.multi_reduction <add>, %700, %cst_164 [1] : vector<4x64xf32> to vector<4xf32>
    %702 = vector.shape_cast %701 : vector<4xf32> to vector<4x1xf32>
    %703 = vector.broadcast %697 : vector<4x1xf32> to vector<4x8xf32>
    %704 = arith.addf %703, %131 : vector<4x8xf32>
    %705 = vector.broadcast %702 : vector<4x1xf32> to vector<4x8xf32>
    %706 = arith.addf %705, %136 : vector<4x8xf32>
    %707 = tpu.concatenate %704, %706 in 1 : vector<4x8xf32>, vector<4x8xf32> -> vector<4x16xf32>
    %708 = vector.extract_strided_slice %707 {offsets = [0, 0], sizes = [4, 8], strides = [1, 1]} : vector<4x16xf32> to vector<4x8xf32>
    %cst_165 = arith.constant dense<0xFF800000> : vector<4xf32>
    %709 = vector.multi_reduction <maximumf>, %708, %cst_165 [1] : vector<4x8xf32> to vector<4xf32>
    %710 = vector.shape_cast %709 : vector<4xf32> to vector<4x1xf32>
    %711 = vector.extract_strided_slice %707 {offsets = [0, 8], sizes = [4, 8], strides = [1, 1]} : vector<4x16xf32> to vector<4x8xf32>
    %cst_166 = arith.constant dense<0xFF800000> : vector<4xf32>
    %712 = vector.multi_reduction <maximumf>, %711, %cst_166 [1] : vector<4x8xf32> to vector<4xf32>
    %713 = vector.shape_cast %712 : vector<4xf32> to vector<4x1xf32>
    %714 = vector.shape_cast %710 : vector<4x1xf32> to vector<4x1xf32>
    %715 = vector.broadcast %714 : vector<4x1xf32> to vector<4x8xf32>
    %716 = vector.shape_cast %713 : vector<4x1xf32> to vector<4x1xf32>
    %717 = vector.broadcast %716 : vector<4x1xf32> to vector<4x8xf32>
    %718 = tpu.concatenate %715, %717 in 1 : vector<4x8xf32>, vector<4x8xf32> -> vector<4x16xf32>
    %719 = arith.subf %707, %718 : vector<4x16xf32>
    %720 = math.exp %719 : vector<4x16xf32>
    %721 = vector.extract_strided_slice %720 {offsets = [0, 0], sizes = [4, 8], strides = [1, 1]} : vector<4x16xf32> to vector<4x8xf32>
    %cst_167 = arith.constant dense<0.000000e+00> : vector<4xf32>
    %722 = vector.multi_reduction <add>, %721, %cst_167 [1] : vector<4x8xf32> to vector<4xf32>
    %723 = vector.shape_cast %722 : vector<4xf32> to vector<4x1xf32>
    %724 = vector.extract_strided_slice %720 {offsets = [0, 8], sizes = [4, 8], strides = [1, 1]} : vector<4x16xf32> to vector<4x8xf32>
    %cst_168 = arith.constant dense<0.000000e+00> : vector<4xf32>
    %725 = vector.multi_reduction <add>, %724, %cst_168 [1] : vector<4x8xf32> to vector<4xf32>
    %726 = vector.shape_cast %725 : vector<4xf32> to vector<4x1xf32>
    %727 = tpu.concatenate %723, %726 in 1 : vector<4x1xf32>, vector<4x1xf32> -> vector<4x2xf32>
    %728 = tpu.reciprocal %727 {approx = true} : vector<4x2xf32> -> vector<4x2xf32>
    %729 = vector.extract_strided_slice %0 {offsets = [0, 7, 0], sizes = [4, 1, 8], strides = [1, 1, 1]} : vector<4x8x8xf32> to vector<4x1x8xf32>
    %730 = vector.shape_cast %729 : vector<4x1x8xf32> to vector<4x8xf32>
    %731 = vector.extract_strided_slice %720 {offsets = [0, 0], sizes = [4, 8], strides = [1, 1]} : vector<4x16xf32> to vector<4x8xf32>
    %732 = vector.extract_strided_slice %728 {offsets = [0, 0], sizes = [4, 1], strides = [1, 1]} : vector<4x2xf32> to vector<4x1xf32>
    %733 = vector.broadcast %732 : vector<4x1xf32> to vector<4x8xf32>
    %734 = arith.mulf %731, %733 : vector<4x8xf32>
    %735 = arith.mulf %734, %730 : vector<4x8xf32>
    %736 = vector.extract_strided_slice %720 {offsets = [0, 8], sizes = [4, 8], strides = [1, 1]} : vector<4x16xf32> to vector<4x8xf32>
    %737 = vector.extract_strided_slice %728 {offsets = [0, 1], sizes = [4, 1], strides = [1, 1]} : vector<4x2xf32> to vector<4x1xf32>
    %738 = vector.broadcast %737 : vector<4x1xf32> to vector<4x8xf32>
    %739 = arith.mulf %736, %738 : vector<4x8xf32>
    %740 = arith.mulf %739, %735 : vector<4x8xf32>
    %741 = tpu.concatenate %735, %740, %684 in 1 : vector<4x8xf32>, vector<4x8xf32>, vector<4x32xf32> -> vector<4x48xf32>
    %742 = arith.truncf %741 : vector<4x48xf32> to vector<4x48xbf16>
    %cst_169 = arith.constant dense<0.000000e+00> : vector<4x128xf32>
    %743 = tpu.matmul %742, %2, %cst_169 {dimension_numbers = #tpu.dot_dimension_numbers<[1], [0], [0], [1], [0, 0, 1, 1], [], []>} : vector<4x48xbf16>, vector<48x128xbf16>, vector<4x128xf32> -> vector<4x128xf32>
    %744 = vector.broadcast %3 : vector<1x128xf32> to vector<4x128xf32>
    %745 = arith.addf %743, %744 : vector<4x128xf32>
    %746 = arith.negf %745 : vector<4x128xf32>
    %747 = math.exp %746 : vector<4x128xf32>
    %cst_170 = arith.constant 1.000000e+00 : f32
    %748 = vector.broadcast %cst_170 : f32 to vector<4x128xf32>
    %749 = arith.addf %748, %747 : vector<4x128xf32>
    %750 = arith.divf %748, %749 : vector<4x128xf32>
    %751 = vector.extract_strided_slice %750 {offsets = [0, 0], sizes = [4, 32], strides = [1, 1]} : vector<4x128xf32> to vector<4x32xf32>
    %752 = vector.extract_strided_slice %750 {offsets = [0, 32], sizes = [4, 32], strides = [1, 1]} : vector<4x128xf32> to vector<4x32xf32>
    %753 = vector.extract_strided_slice %750 {offsets = [0, 64], sizes = [4, 32], strides = [1, 1]} : vector<4x128xf32> to vector<4x32xf32>
    %cst_171 = arith.constant 2.000000e+00 : f32
    %754 = vector.broadcast %cst_171 : f32 to vector<4x32xf32>
    %755 = arith.mulf %754, %753 : vector<4x32xf32>
    %cst_172 = arith.constant 1.000000e+00 : f32
    %756 = vector.broadcast %cst_172 : f32 to vector<4x32xf32>
    %757 = arith.subf %755, %756 : vector<4x32xf32>
    %758 = vector.extract_strided_slice %750 {offsets = [0, 96], sizes = [4, 32], strides = [1, 1]} : vector<4x128xf32> to vector<4x32xf32>
    %759 = arith.mulf %752, %682 : vector<4x32xf32>
    %760 = arith.mulf %751, %757 : vector<4x32xf32>
    %761 = arith.addf %759, %760 : vector<4x32xf32>
    %762 = math.tanh %761 : vector<4x32xf32>
    %763 = arith.mulf %758, %762 : vector<4x32xf32>
    %c0_173 = arith.constant 0 : index
    %c0_174 = arith.constant 0 : index
    %c56 = arith.constant 56 : index
    %764 = vector.load %arg7[%c0_173, %c0_174, %c56] : memref<4x1x64xf32, #tpu.memory_space<vmem>>, vector<4x1x8xf32>
    %765 = vector.shape_cast %764 : vector<4x1x8xf32> to vector<4x8xf32>
    %766 = vector.shape_cast %740 : vector<4x8xf32> to vector<4x1x8xf32>
    tpu.vector_store %arg7[%c0_173, %c0_174, %c56], %766 {strides = array<i32>} : memref<4x1x64xf32, #tpu.memory_space<vmem>>, vector<4x1x8xf32>,
    %767 = vector.extract_strided_slice %763 {offsets = [0, 16], sizes = [4, 16], strides = [1, 1]} : vector<4x32xf32> to vector<4x16xf32>
    %c0_175 = arith.constant 0 : index
    %c0_176 = arith.constant 0 : index
    %c112 = arith.constant 112 : index
    %768 = vector.load %arg8[%c0_175, %c0_176, %c112] : memref<4x1x128xf32, #tpu.memory_space<vmem>>, vector<4x1x16xf32>
    %769 = vector.shape_cast %768 : vector<4x1x16xf32> to vector<4x16xf32>
    %770 = vector.shape_cast %767 : vector<4x16xf32> to vector<4x1x16xf32>
    tpu.vector_store %arg8[%c0_175, %c0_176, %c112], %770 {strides = array<i32>} : memref<4x1x128xf32, #tpu.memory_space<vmem>>, vector<4x1x16xf32>,
    return
  }
  func.func @transform_0(%arg0: i32) -> (i32, i32, i32) {
    %c0_i32 = arith.constant 0 : i32
    %c0_i32_0 = arith.constant 0 : i32
    %c0_i32_1 = arith.constant 0 : i32
    return %arg0, %c0_i32, %c0_i32_0 : i32, i32, i32
  }
  func.func @transform_1(%arg0: i32) -> (i32, i32, i32) {
    %c0_i32 = arith.constant 0 : i32
    %c0_i32_0 = arith.constant 0 : i32
    %c0_i32_1 = arith.constant 0 : i32
    return %arg0, %c0_i32, %c0_i32_0 : i32, i32, i32
  }
  func.func @transform_2(%arg0: i32) -> (i32, i32) {
    %c0_i32 = arith.constant 0 : i32
    %c0_i32_0 = arith.constant 0 : i32
    %c0_i32_1 = arith.constant 0 : i32
    return %c0_i32, %c0_i32_0 : i32, i32
  }
  func.func @transform_3(%arg0: i32) -> (i32, i32) {
    %c0_i32 = arith.constant 0 : i32
    %c0_i32_0 = arith.constant 0 : i32
    %c0_i32_1 = arith.constant 0 : i32
    return %c0_i32, %c0_i32_0 : i32, i32
  }
  func.func @transform_4(%arg0: i32) -> (i32, i32) {
    %c0_i32 = arith.constant 0 : i32
    %c0_i32_0 = arith.constant 0 : i32
    %c0_i32_1 = arith.constant 0 : i32
    return %c0_i32, %c0_i32_0 : i32, i32
  }
  func.func @transform_5(%arg0: i32) -> (i32, i32) {
    %c0_i32 = arith.constant 0 : i32
    %c0_i32_0 = arith.constant 0 : i32
    %c0_i32_1 = arith.constant 0 : i32
    return %c0_i32, %c0_i32_0 : i32, i32
  }
  func.func @transform_6(%arg0: i32) -> (i32, i32, i32) {
    %c0_i32 = arith.constant 0 : i32
    %c0_i32_0 = arith.constant 0 : i32
    %c0_i32_1 = arith.constant 0 : i32
    return %arg0, %c0_i32, %c0_i32_0 : i32, i32, i32
  }
  func.func @transform_7(%arg0: i32) -> (i32, i32, i32) {
    %c0_i32 = arith.constant 0 : i32
    %c0_i32_0 = arith.constant 0 : i32
    %c0_i32_1 = arith.constant 0 : i32
    return %arg0, %c0_i32, %c0_i32_0 : i32, i32, i32
  }
}

</mosaic_0001>

<llo_original>
// kernel: encoder_forward.1
$region0: #{encoder_forward.1}
  #allocation0 [shape = 'u32[]', space=smem, size = 0x4, offset = 0x4, fixed_abs, tag = 'smem constant byte address 0x4 - core index']
  #allocation1 [shape = 'u32[72,128]{1,0:T(1,128)}', space=vmem, size = 0x9000, scoped, tag = 'internal scratch']
  %s0 = inlined_call_operand.hbm [shape: f32[4,8,8], index: 0, kind: input, shape index: {}]
  %s1 = inlined_call_operand.hbm [shape: f32[4,1,8], index: 1, kind: input, shape index: {}]
  %s2 = inlined_call_operand.hbm [shape: f32[4,8], index: 2, kind: input, shape index: {}]
  %s3 = inlined_call_operand.vmem [shape: f32[2,64], index: 3, kind: input, shape index: {}]
  %s4 = inlined_call_operand.hbm [shape: bf16[48,128], index: 4, kind: input, shape index: {}]
  %s5 = inlined_call_operand.vmem [shape: f32[1,128], index: 5, kind: input, shape index: {}]
  %s6 = inlined_call_operand.vmem [shape: f32[4,1,64], index: 6, kind: output, shape index: {0}]
  %s7 = inlined_call_operand.vmem [shape: f32[4,1,128], index: 7, kind: output, shape index: {1}]
  %8 = xla_tuple %s6, %s7
  %s9 = sld [smem:[#allocation0]]
  $region58: #{encoder_forward.1} parent=0
    _
  %s11 = ssub.s32 1, %s9
  %s12 = scalar_select 0, %s11, %s9
  $region1: #{encoder_forward.1} parent=0
    #allocation2 [shape = 'u8[16384]{0}', space=vmem, size = 0x4000, scoped, tag = 'input window, operand 0, single buffered']
    #allocation3 [shape = 's32[1]{0}', space=sflag, size = 0x4, scoped, tag = 'scoped memory for encoder_forward.1']
    #allocation4 [shape = 's32[1]{0}', space=sflag, size = 0x4, scoped, tag = 'scoped memory for encoder_forward.1']
    #allocation5 [shape = 'u8[2048]{0}', space=vmem, size = 0x800, scoped, tag = 'input window, operand 1, single buffered']
    #allocation6 [shape = 's32[1]{0}', space=sflag, size = 0x4, scoped, tag = 'scoped memory for encoder_forward.1']
    #allocation7 [shape = 'u8[2048]{0}', space=smem, size = 0x800, scoped, tag = 'input window, operand 2, single buffered']
    #allocation8 [shape = 'u8[12288]{0}', space=vmem, size = 0x3000, scoped, tag = 'input window, operand 4, single buffered']
    %13 = vsyncpa [#allocation3], 0
    %14 = vsyncpa [#allocation6], 0
    %15 = vsyncpa [#allocation4], 0
    // Predicated region
    $region2: #{encoder_forward.1} parent=1 // pred_check
      _
    $region3: #{encoder_forward.1} parent=1 // pred_check_branch
      %17 = sbr.rel (0) target = $region5
    $region4: #{encoder_forward.1} parent=1 // pred_region
      %19 = vsyncadd [#allocation3], 0
      %s20 = sshll.u32 %s0, 4
      %s21 = int_to_ptr.hbm [resolvable:$true] %s20
      %s22 = sshll.u32 [#allocation2], 4
      %s23 = int_to_ptr.vmem [resolvable:$true] %s22
      %28 = dma.hbm_to_vmem [thread:$0]  %s21, 512, %s23, [#allocation3], 128, 128, 8
    $region5: #{encoder_forward.1} parent=1 // pred_fallthru
      _
    // Predicated region
    $region6: #{encoder_forward.1} parent=1 // pred_check
      _
    $region7: #{encoder_forward.1} parent=1 // pred_check_branch
      %30 = sbr.rel (0) target = $region9
    $region8: #{encoder_forward.1} parent=1 // pred_region
      %32 = vsyncadd [#allocation6], 0
      %s33 = sshll.u32 %s1, 4
      %s34 = int_to_ptr.hbm [resolvable:$true] %s33
      %s35 = sshll.u32 [#allocation5], 4
      %s36 = int_to_ptr.vmem [resolvable:$true] %s35
      %41 = dma.hbm_to_vmem [thread:$0]  %s34, 64, %s36, [#allocation6], 16, 16, 1
    $region9: #{encoder_forward.1} parent=1 // pred_fallthru
      _
    // Predicated region
    $region10: #{encoder_forward.1} parent=1 // pred_check
      _
    $region11: #{encoder_forward.1} parent=1 // pred_check_branch
      %43 = sbr.rel (0) target = $region13
    $region12: #{encoder_forward.1} parent=1 // pred_region
      %45 = vsyncadd [#allocation4], 0
      %s47 = sshll.u32 %s2, 4
      %s48 = int_to_ptr.hbm [resolvable:$true] %s47
      %50 = dma.hbm_to_smem %s48, 64, [#allocation7], [#allocation4]
    $region13: #{encoder_forward.1} parent=1 // pred_fallthru
      _
    // Predicated region
    $region14: #{encoder_forward.1} parent=1 // pred_check
      _
    $region15: #{encoder_forward.1} parent=1 // pred_check_branch
      %52 = sbr.rel (0) target = $region17
    $region16: #{encoder_forward.1} parent=1 // pred_region
      _
    $region17: #{encoder_forward.1} parent=1 // pred_fallthru
      _
    // Predicated region
    $region18: #{encoder_forward.1} parent=1 // pred_check
      _
    $region19: #{encoder_forward.1} parent=1 // pred_check_branch
      %54 = sbr.rel (0) target = $region21
    $region20: #{encoder_forward.1} parent=1 // pred_region
      %56 = vsyncadd [#allocation6], 0
      %s57 = sshll.u32 %s4, 4
      %s58 = int_to_ptr.hbm [resolvable:$true] %s57
      %s59 = sshll.u32 [#allocation8], 4
      %s60 = int_to_ptr.vmem [resolvable:$true] %s59
      %65 = dma.hbm_to_vmem [thread:$0]  %s58, 384, %s60, [#allocation6], 64, 64, 4
    $region21: #{encoder_forward.1} parent=1 // pred_fallthru
      _
    // Predicated region
    $region22: #{encoder_forward.1} parent=1 // pred_check
      _
    $region23: #{encoder_forward.1} parent=1 // pred_check_branch
      %67 = sbr.rel (0) target = $region25
    $region24: #{encoder_forward.1} parent=1 // pred_region
      _
    $region25: #{encoder_forward.1} parent=1 // pred_fallthru
      _
    // Predicated region
    $region26: #{encoder_forward.1} parent=1 // pred_check
      _
    $region27: #{encoder_forward.1} parent=1 // pred_check_branch
      %69 = sbr.rel (0) target = $region29
    $region28: #{encoder_forward.1} parent=1 // pred_region
      %71 = dma.done [#allocation3], 512
    $region29: #{encoder_forward.1} parent=1 // pred_fallthru
      _
    // Predicated region
    $region30: #{encoder_forward.1} parent=1 // pred_check
      _
    $region31: #{encoder_forward.1} parent=1 // pred_check_branch
      %73 = sbr.rel (0) target = $region33
    $region32: #{encoder_forward.1} parent=1 // pred_region
      %75 = dma.done [#allocation6], 64
    $region33: #{encoder_forward.1} parent=1 // pred_fallthru
      _
    // Predicated region
    $region34: #{encoder_forward.1} parent=1 // pred_check
      _
    $region35: #{encoder_forward.1} parent=1 // pred_check_branch
      %77 = sbr.rel (0) target = $region37
    $region36: #{encoder_forward.1} parent=1 // pred_region
      %79 = dma.done [#allocation4], 64
    $region37: #{encoder_forward.1} parent=1 // pred_fallthru
      _
    // Predicated region
    $region38: #{encoder_forward.1} parent=1 // pred_check
      _
    $region39: #{encoder_forward.1} parent=1 // pred_check_branch
      %81 = sbr.rel (0) target = $region41
    $region40: #{encoder_forward.1} parent=1 // pred_region
      %83 = dma.done [#allocation6], 384
    $region41: #{encoder_forward.1} parent=1 // pred_fallthru
      _
    %84 = sfence
    %v86 = vld [vmem:[#allocation2] sm:$0xff]
    %v87 = vld [vmem:[#allocation2 + $0x8] sm:$0xff]
    %v88 = vld [vmem:[#allocation2 + $0x10] sm:$0xff]
    %v89 = vld [vmem:[#allocation2 + $0x18] sm:$0xff]
    %v90 = vld [vmem:[%s3] sm:$0x3]
    %v91 = vld [vmem:[#allocation8] sm:$0xf]
    %v92 = vld [vmem:[#allocation8 + $0x4] sm:$0xf]
    %v93 = vld [vmem:[#allocation8 + $0x8] sm:$0xf]
    %v94 = vld [vmem:[#allocation8 + $0xc] sm:$0xf]
    %v95 = vld [vmem:[#allocation8 + $0x10] sm:$0xf]
    %v96 = vld [vmem:[#allocation8 + $0x14] sm:$0xf]
    %v97 = vld [vmem:[%s5] sm:$0x1]
    %v98 = vld [vmem:[#allocation5] sm:$0x1]
    %v99 = vld [vmem:[#allocation5 + $0x1] sm:$0x1]
    %v100 = vld [vmem:[#allocation5 + $0x2] sm:$0x1]
    %v101 = vld [vmem:[#allocation5 + $0x3] sm:$0x1]
    %s102 = sld [smem:[#allocation7]]
    %v103 = vstv %s102
    %v104 = vmul.f32 %v86, %v103
    %v105 = vmul.f32 %v87, %v103
    %v106 = vmul.f32 %v88, %v103
    %v107 = vmul.f32 %v89, %v103
    %v108 = vadd.f32 %v104, 0.0
    %v109 = vadd.f32 %v105, 0.0
    %v110 = vadd.f32 %v106, 0.0
    %v111 = vadd.f32 %v107, 0.0
    %s112 = sld [smem:[#allocation7 + $0x80]]
    %v113 = vstv %s112
    %v114 = vmul.f32 %v86, %v113
    %v115 = vmul.f32 %v87, %v113
    %v116 = vmul.f32 %v88, %v113
    %v117 = vmul.f32 %v89, %v113
    %v118 = vadd.f32 %v114, 0.0
    %v119 = vadd.f32 %v115, 0.0
    %v120 = vadd.f32 %v116, 0.0
    %v121 = vadd.f32 %v117, 0.0
    %s122 = sld [smem:[#allocation7 + $0x100]]
    %v123 = vstv %s122
    %v124 = vmul.f32 %v98, %v123
    %v125 = vmul.f32 %v99, %v123
    %v126 = vmul.f32 %v100, %v123
    %v127 = vmul.f32 %v101, %v123
    %v128 = vadd.f32 %v124, 0.0
    %v129 = vadd.f32 %v125, 0.0
    %v130 = vadd.f32 %v126, 0.0
    %v131 = vadd.f32 %v127, 0.0
    %s132 = sld [smem:[#allocation7 + $0x1]]
    %v133 = vstv %s132
    %v134 = vmul.f32 %v86, %v133
    %v135 = vmul.f32 %v87, %v133
    %v136 = vmul.f32 %v88, %v133
    %v137 = vmul.f32 %v89, %v133
    %v142 = vrot.slane %v134, 1
    %v143 = vrot.slane %v135, 1
    %v144 = vrot.slane %v136, 1
    %v145 = vrot.slane %v137, 1
    %v150 = vadd.f32 %v108, %v142
    %v151 = vadd.f32 %v109, %v143
    %v152 = vadd.f32 %v110, %v144
    %v153 = vadd.f32 %v111, %v145
    %s154 = sld [smem:[#allocation7 + $0x81]]
    %v155 = vstv %s154
    %v156 = vmul.f32 %v86, %v155
    %v157 = vmul.f32 %v87, %v155
    %v158 = vmul.f32 %v88, %v155
    %v159 = vmul.f32 %v89, %v155
    %v164 = vrot.slane %v156, 1
    %v165 = vrot.slane %v157, 1
    %v166 = vrot.slane %v158, 1
    %v167 = vrot.slane %v159, 1
    %v172 = vadd.f32 %v118, %v164
    %v173 = vadd.f32 %v119, %v165
    %v174 = vadd.f32 %v120, %v166
    %v175 = vadd.f32 %v121, %v167
    %s176 = sld [smem:[#allocation7 + $0x101]]
    %v177 = vstv %s176
    %v178 = vmul.f32 %v98, %v177
    %v179 = vmul.f32 %v99, %v177
    %v180 = vmul.f32 %v100, %v177
    %v181 = vmul.f32 %v101, %v177
    %186 = vrot.lane.b32.xlu0 %v178, 127
    %v187 = vpop.permute.xlu0 %186
    %188 = vrot.lane.b32.xlu0 %v179, 127
    %v189 = vpop.permute.xlu0 %188
    %190 = vrot.lane.b32.xlu0 %v180, 127
    %v191 = vpop.permute.xlu0 %190
    %192 = vrot.lane.b32.xlu0 %v181, 127
    %v193 = vpop.permute.xlu0 %192
    %v198 = vadd.f32 %v128, %v187
    %v199 = vadd.f32 %v129, %v189
    %v200 = vadd.f32 %v130, %v191
    %v201 = vadd.f32 %v131, %v193
    %s202 = sld [smem:[#allocation7 + $0x2]]
    %v203 = vstv %s202
    %v204 = vmul.f32 %v86, %v203
    %v205 = vmul.f32 %v87, %v203
    %v206 = vmul.f32 %v88, %v203
    %v207 = vmul.f32 %v89, %v203
    %v212 = vrot.slane %v204, 2
    %v213 = vrot.slane %v205, 2
    %v214 = vrot.slane %v206, 2
    %v215 = vrot.slane %v207, 2
    %v220 = vadd.f32 %v150, %v212
    %v221 = vadd.f32 %v151, %v213
    %v222 = vadd.f32 %v152, %v214
    %v223 = vadd.f32 %v153, %v215
    %s224 = sld [smem:[#allocation7 + $0x82]]
    %v225 = vstv %s224
    %v226 = vmul.f32 %v86, %v225
    %v227 = vmul.f32 %v87, %v225
    %v228 = vmul.f32 %v88, %v225
    %v229 = vmul.f32 %v89, %v225
    %v234 = vrot.slane %v226, 2
    %v235 = vrot.slane %v227, 2
    %v236 = vrot.slane %v228, 2
    %v237 = vrot.slane %v229, 2
    %v242 = vadd.f32 %v172, %v234
    %v243 = vadd.f32 %v173, %v235
    %v244 = vadd.f32 %v174, %v236
    %v245 = vadd.f32 %v175, %v237
    %s246 = sld [smem:[#allocation7 + $0x102]]
    %v247 = vstv %s246
    %v248 = vmul.f32 %v98, %v247
    %v249 = vmul.f32 %v99, %v247
    %v250 = vmul.f32 %v100, %v247
    %v251 = vmul.f32 %v101, %v247
    %256 = vrot.lane.b32.xlu0 %v248, 126
    %v257 = vpop.permute.xlu0 %256
    %258 = vrot.lane.b32.xlu0 %v249, 126
    %v259 = vpop.permute.xlu0 %258
    %260 = vrot.lane.b32.xlu0 %v250, 126
    %v261 = vpop.permute.xlu0 %260
    %262 = vrot.lane.b32.xlu0 %v251, 126
    %v263 = vpop.permute.xlu0 %262
    %v268 = vadd.f32 %v198, %v257
    %v269 = vadd.f32 %v199, %v259
    %v270 = vadd.f32 %v200, %v261
    %v271 = vadd.f32 %v201, %v263
    %s272 = sld [smem:[#allocation7 + $0x3]]
    %v273 = vstv %s272
    %v274 = vmul.f32 %v86, %v273
    %v275 = vmul.f32 %v87, %v273
    %v276 = vmul.f32 %v88, %v273
    %v277 = vmul.f32 %v89, %v273
    %v282 = vrot.slane %v274, 3
    %v283 = vrot.slane %v275, 3
    %v284 = vrot.slane %v276, 3
    %v285 = vrot.slane %v277, 3
    %v290 = vadd.f32 %v220, %v282
    %v291 = vadd.f32 %v221, %v283
    %v292 = vadd.f32 %v222, %v284
    %v293 = vadd.f32 %v223, %v285
    %s294 = sld [smem:[#allocation7 + $0x83]]
    %v295 = vstv %s294
    %v296 = vmul.f32 %v86, %v295
    %v297 = vmul.f32 %v87, %v295
    %v298 = vmul.f32 %v88, %v295
    %v299 = vmul.f32 %v89, %v295
    %v304 = vrot.slane %v296, 3
    %v305 = vrot.slane %v297, 3
    %v306 = vrot.slane %v298, 3
    %v307 = vrot.slane %v299, 3
    %v312 = vadd.f32 %v242, %v304
    %v313 = vadd.f32 %v243, %v305
    %v314 = vadd.f32 %v244, %v306
    %v315 = vadd.f32 %v245, %v307
    %s316 = sld [smem:[#allocation7 + $0x103]]
    %v317 = vstv %s316
    %v318 = vmul.f32 %v98, %v317
    %v319 = vmul.f32 %v99, %v317
    %v320 = vmul.f32 %v100, %v317
    %v321 = vmul.f32 %v101, %v317
    %326 = vrot.lane.b32.xlu0 %v318, 125
    %v327 = vpop.permute.xlu0 %326
    %328 = vrot.lane.b32.xlu0 %v319, 125
    %v329 = vpop.permute.xlu0 %328
    %330 = vrot.lane.b32.xlu0 %v320, 125
    %v331 = vpop.permute.xlu0 %330
    %332 = vrot.lane.b32.xlu0 %v321, 125
    %v333 = vpop.permute.xlu0 %332
    %v338 = vadd.f32 %v268, %v327
    %v339 = vadd.f32 %v269, %v329
    %v340 = vadd.f32 %v270, %v331
    %v341 = vadd.f32 %v271, %v333
    %s342 = sld [smem:[#allocation7 + $0x4]]
    %v343 = vstv %s342
    %v344 = vmul.f32 %v86, %v343
    %v345 = vmul.f32 %v87, %v343
    %v346 = vmul.f32 %v88, %v343
    %v347 = vmul.f32 %v89, %v343
    %v352 = vrot.slane %v344, 4
    %v353 = vrot.slane %v345, 4
    %v354 = vrot.slane %v346, 4
    %v355 = vrot.slane %v347, 4
    %v360 = vadd.f32 %v290, %v352
    %v361 = vadd.f32 %v291, %v353
    %v362 = vadd.f32 %v292, %v354
    %v363 = vadd.f32 %v293, %v355
    %s364 = sld [smem:[#allocation7 + $0x84]]
    %v365 = vstv %s364
    %v366 = vmul.f32 %v86, %v365
    %v367 = vmul.f32 %v87, %v365
    %v368 = vmul.f32 %v88, %v365
    %v369 = vmul.f32 %v89, %v365
    %v374 = vrot.slane %v366, 4
    %v375 = vrot.slane %v367, 4
    %v376 = vrot.slane %v368, 4
    %v377 = vrot.slane %v369, 4
    %v382 = vadd.f32 %v312, %v374
    %v383 = vadd.f32 %v313, %v375
    %v384 = vadd.f32 %v314, %v376
    %v385 = vadd.f32 %v315, %v377
    %s386 = sld [smem:[#allocation7 + $0x104]]
    %v387 = vstv %s386
    %v388 = vmul.f32 %v98, %v387
    %v389 = vmul.f32 %v99, %v387
    %v390 = vmul.f32 %v100, %v387
    %v391 = vmul.f32 %v101, %v387
    %396 = vrot.lane.b32.xlu0 %v388, 124
    %v397 = vpop.permute.xlu0 %396
    %398 = vrot.lane.b32.xlu0 %v389, 124
    %v399 = vpop.permute.xlu0 %398
    %400 = vrot.lane.b32.xlu0 %v390, 124
    %v401 = vpop.permute.xlu0 %400
    %402 = vrot.lane.b32.xlu0 %v391, 124
    %v403 = vpop.permute.xlu0 %402
    %v408 = vadd.f32 %v338, %v397
    %v409 = vadd.f32 %v339, %v399
    %v410 = vadd.f32 %v340, %v401
    %v411 = vadd.f32 %v341, %v403
    %s412 = sld [smem:[#allocation7 + $0x5]]
    %v413 = vstv %s412
    %v414 = vmul.f32 %v86, %v413
    %v415 = vmul.f32 %v87, %v413
    %v416 = vmul.f32 %v88, %v413
    %v417 = vmul.f32 %v89, %v413
    %v422 = vrot.slane %v414, 5
    %v423 = vrot.slane %v415, 5
    %v424 = vrot.slane %v416, 5
    %v425 = vrot.slane %v417, 5
    %v430 = vadd.f32 %v360, %v422
    %v431 = vadd.f32 %v361, %v423
    %v432 = vadd.f32 %v362, %v424
    %v433 = vadd.f32 %v363, %v425
    %s434 = sld [smem:[#allocation7 + $0x85]]
    %v435 = vstv %s434
    %v436 = vmul.f32 %v86, %v435
    %v437 = vmul.f32 %v87, %v435
    %v438 = vmul.f32 %v88, %v435
    %v439 = vmul.f32 %v89, %v435
    %v444 = vrot.slane %v436, 5
    %v445 = vrot.slane %v437, 5
    %v446 = vrot.slane %v438, 5
    %v447 = vrot.slane %v439, 5
    %v452 = vadd.f32 %v382, %v444
    %v453 = vadd.f32 %v383, %v445
    %v454 = vadd.f32 %v384, %v446
    %v455 = vadd.f32 %v385, %v447
    %s456 = sld [smem:[#allocation7 + $0x105]]
    %v457 = vstv %s456
    %v458 = vmul.f32 %v98, %v457
    %v459 = vmul.f32 %v99, %v457
    %v460 = vmul.f32 %v100, %v457
    %v461 = vmul.f32 %v101, %v457
    %466 = vrot.lane.b32.xlu0 %v458, 123
    %v467 = vpop.permute.xlu0 %466
    %468 = vrot.lane.b32.xlu0 %v459, 123
    %v469 = vpop.permute.xlu0 %468
    %470 = vrot.lane.b32.xlu0 %v460, 123
    %v471 = vpop.permute.xlu0 %470
    %472 = vrot.lane.b32.xlu0 %v461, 123
    %v473 = vpop.permute.xlu0 %472
    %v478 = vadd.f32 %v408, %v467
    %v479 = vadd.f32 %v409, %v469
    %v480 = vadd.f32 %v410, %v471
    %v481 = vadd.f32 %v411, %v473
    %s482 = sld [smem:[#allocation7 + $0x6]]
    %v483 = vstv %s482
    %v484 = vmul.f32 %v86, %v483
    %v485 = vmul.f32 %v87, %v483
    %v486 = vmul.f32 %v88, %v483
    %v487 = vmul.f32 %v89, %v483
    %v492 = vrot.slane %v484, 6
    %v493 = vrot.slane %v485, 6
    %v494 = vrot.slane %v486, 6
    %v495 = vrot.slane %v487, 6
    %v500 = vadd.f32 %v430, %v492
    %v501 = vadd.f32 %v431, %v493
    %v502 = vadd.f32 %v432, %v494
    %v503 = vadd.f32 %v433, %v495
    %s504 = sld [smem:[#allocation7 + $0x86]]
    %v505 = vstv %s504
    %v506 = vmul.f32 %v86, %v505
    %v507 = vmul.f32 %v87, %v505
    %v508 = vmul.f32 %v88, %v505
    %v509 = vmul.f32 %v89, %v505
    %v514 = vrot.slane %v506, 6
    %v515 = vrot.slane %v507, 6
    %v516 = vrot.slane %v508, 6
    %v517 = vrot.slane %v509, 6
    %v522 = vadd.f32 %v452, %v514
    %v523 = vadd.f32 %v453, %v515
    %v524 = vadd.f32 %v454, %v516
    %v525 = vadd.f32 %v455, %v517
    %s526 = sld [smem:[#allocation7 + $0x106]]
    %v527 = vstv %s526
    %v528 = vmul.f32 %v98, %v527
    %v529 = vmul.f32 %v99, %v527
    %v530 = vmul.f32 %v100, %v527
    %v531 = vmul.f32 %v101, %v527
    %536 = vrot.lane.b32.xlu0 %v528, 122
    %v537 = vpop.permute.xlu0 %536
    %538 = vrot.lane.b32.xlu0 %v529, 122
    %v539 = vpop.permute.xlu0 %538
    %540 = vrot.lane.b32.xlu0 %v530, 122
    %v541 = vpop.permute.xlu0 %540
    %542 = vrot.lane.b32.xlu0 %v531, 122
    %v543 = vpop.permute.xlu0 %542
    %v548 = vadd.f32 %v478, %v537
    %v549 = vadd.f32 %v479, %v539
    %v550 = vadd.f32 %v480, %v541
    %v551 = vadd.f32 %v481, %v543
    %s552 = sld [smem:[#allocation7 + $0x7]]
    %v553 = vstv %s552
    %v554 = vmul.f32 %v86, %v553
    %v555 = vmul.f32 %v87, %v553
    %v556 = vmul.f32 %v88, %v553
    %v557 = vmul.f32 %v89, %v553
    %v562 = vrot.slane %v554, 7
    %v563 = vrot.slane %v555, 7
    %v564 = vrot.slane %v556, 7
    %v565 = vrot.slane %v557, 7
    %v570 = vadd.f32 %v500, %v562
    %v571 = vadd.f32 %v501, %v563
    %v572 = vadd.f32 %v502, %v564
    %v573 = vadd.f32 %v503, %v565
    %s574 = sld [smem:[#allocation7 + $0x87]]
    %v575 = vstv %s574
    %v576 = vmul.f32 %v86, %v575
    %v577 = vmul.f32 %v87, %v575
    %v578 = vmul.f32 %v88, %v575
    %v579 = vmul.f32 %v89, %v575
    %v584 = vrot.slane %v576, 7
    %v585 = vrot.slane %v577, 7
    %v586 = vrot.slane %v578, 7
    %v587 = vrot.slane %v579, 7
    %v592 = vadd.f32 %v522, %v584
    %v593 = vadd.f32 %v523, %v585
    %v594 = vadd.f32 %v524, %v586
    %v595 = vadd.f32 %v525, %v587
    %s596 = sld [smem:[#allocation7 + $0x107]]
    %v597 = vstv %s596
    %v598 = vmul.f32 %v98, %v597
    %v599 = vmul.f32 %v99, %v597
    %v600 = vmul.f32 %v100, %v597
    %v601 = vmul.f32 %v101, %v597
    %606 = vrot.lane.b32.xlu0 %v598, 121
    %v607 = vpop.permute.xlu0 %606
    %608 = vrot.lane.b32.xlu0 %v599, 121
    %v609 = vpop.permute.xlu0 %608
    %610 = vrot.lane.b32.xlu0 %v600, 121
    %v611 = vpop.permute.xlu0 %610
    %612 = vrot.lane.b32.xlu0 %v601, 121
    %v613 = vpop.permute.xlu0 %612
    %v618 = vadd.f32 %v548, %v607
    %v619 = vadd.f32 %v549, %v609
    %v620 = vadd.f32 %v550, %v611
    %v621 = vadd.f32 %v551, %v613
    %s622 = sld [smem:[#allocation7 + $0x180]]
    %v623 = vstv %s622
    %v624 = vadd.f32 %v570, %v623
    %v625 = vadd.f32 %v571, %v623
    %v626 = vadd.f32 %v572, %v623
    %v627 = vadd.f32 %v573, %v623
    %629 = vset.pattern.permute.xlu0 0
    %630 = vperm.xlu0 %629, %v618
    %v631 = vpop.permute.xlu0 %630
    %v633 = vperm.slane %v631, 0
    %635 = vset.pattern.permute.xlu0 0
    %636 = vperm.xlu0 %635, %v619
    %v637 = vpop.permute.xlu0 %636
    %v639 = vperm.slane %v637, 0
    %641 = vset.pattern.permute.xlu0 0
    %642 = vperm.xlu0 %641, %v620
    %v643 = vpop.permute.xlu0 %642
    %v645 = vperm.slane %v643, 0
    %647 = vset.pattern.permute.xlu0 0
    %648 = vperm.xlu0 %647, %v621
    %v649 = vpop.permute.xlu0 %648
    %v651 = vperm.slane %v649, 0
    %v652 = vadd.f32 %v592, %v633
    %v653 = vadd.f32 %v593, %v639
    %v654 = vadd.f32 %v594, %v645
    %v655 = vadd.f32 %v595, %v651
    %s656 = sld [smem:[#allocation7 + $0x181]]
    %v657 = vstv %s656
    %v658 = vadd.f32 %v652, %v657
    %v659 = vadd.f32 %v653, %v657
    %v660 = vadd.f32 %v654, %v657
    %v661 = vadd.f32 %v655, %v657
    %v662 = vperm.slane %v90, 0
    %v663 = vmul.f32 %v662, 0.0
    %vm664 = vcmask 519168
    %v665 = vsel %vm664, %v663, 0.0
    %666 = vadd.xlane.f32.xlu0 %v665
    %v667 = vpop.xlane.xlu0 %666
    %v668 = vperm.slane %v90, 1
    %v669 = vmul.f32 %v668, 0.0
    %v670 = vsel %vm664, %v669, 0.0
    %671 = vadd.xlane.f32.xlu0 %v670
    %v672 = vpop.xlane.xlu0 %671
    %v677 = vrot.slane %v625, 7
    %vm678 = vcmask 1041409
    %v679 = vsel %vm678, %v677, %v624
    %v680 = vrot.slane %v626, 6
    %vm681 = vcmask 1042434
    %v682 = vsel %vm681, %v680, %v679
    %v683 = vrot.slane %v627, 5
    %vm684 = vcmask 1043459
    %v685 = vsel %vm684, %v683, %v682
    %v687 = vadd.f32 %v667, %v685
    %v692 = vrot.slane %v659, 7
    %v693 = vsel %vm678, %v692, %v658
    %v694 = vrot.slane %v660, 6
    %v695 = vsel %vm681, %v694, %v693
    %v696 = vrot.slane %v661, 5
    %v697 = vsel %vm684, %v696, %v695
    %v699 = vadd.f32 %v672, %v697
    %701 = vrot.lane.b32.xlu0 %v699, 8
    %v702 = vpop.permute.xlu0 %701
    %vm704 = vcmask 64512
    %v705 = vsel %vm704, %v687, %v702
    %vm706 = vcmask 60416
    %v707 = vsel %vm706, %v705, -inf
    %708 = vmax.xlane.f32.xlu0 %v707
    %v709 = vpop.xlane.xlu0 %708
    %vm710 = vcmask 126016
    %v711 = vsel %vm710, %v705, -inf
    %712 = vmax.xlane.f32.xlu0 %v711
    %v713 = vpop.xlane.xlu0 %712
    %v714 = vsel %vm704, %v709, %v713
    %v715 = vsub.f32 %v705, %v714
    %v716 = vmul.f32 %v715, 1.442695
    %v717 = vpow.pop %v716
    %v718 = vsel %vm706, %v717, 0.0
    %719 = vadd.xlane.f32.xlu0 %v718
    %v720 = vpop.xlane.xlu0 %719
    %722 = vrot.lane.b32.xlu0 %v717, 120
    %v723 = vpop.permute.xlu0 %722
    %v725 = vsel %vm706, %v723, 0.0
    %726 = vadd.xlane.f32.xlu0 %v725
    %v727 = vpop.xlane.xlu0 %726
    %vm728 = vcmask 7168
    %v729 = vsel %vm728, %v720, %v727
    %v730 = vrcp.pop %v729
    %732 = vset.pattern.permute.xlu0 0
    %733 = vperm.xlu0 %732, %v730
    %v734 = vpop.permute.xlu0 %733
    %v736 = vmul.f32 %v717, %v734
    %v741 = vrot.slane %v87, 7
    %v742 = vsel %vm678, %v741, %v86
    %v743 = vrot.slane %v88, 6
    %v744 = vsel %vm681, %v743, %v742
    %v745 = vrot.slane %v89, 5
    %v746 = vsel %vm684, %v745, %v744
    %v748 = vmul.f32 %v736, %v746
    %749 = vset.pattern.permute.xlu0 1
    %750 = vperm.xlu0 %749, %v730
    %v751 = vpop.permute.xlu0 %750
    %v753 = vmul.f32 %v717, %v751
    %755 = vrot.lane.b32.xlu0 %v748, 8
    %v756 = vpop.permute.xlu0 %755
    %v758 = vmul.f32 %v753, %v756
    %v759 = vsel %vm704, %v748, %v758
    %vm760 = vcmask 130048
    %v761 = vsel %vm760, %v759, 0.0
    %v762 = vpack.c.bf16 %v761, %v761
    %v764 = vperm.slane %v97, 0
    %v772 = vunpack.c.l.b16 %v91
    %v773 = vunpack.c.l.b16 %v92
    %v774 = vunpack.c.l.b16 %v93
    %v775 = vunpack.c.l.b16 %v94
    %v776 = vunpack.c.l.b16 %v95
    %v777 = vunpack.c.l.b16 %v96
    %v778 = vpack.c.b16 %v773, %v772
    %v779 = vpack.c.b16 %v775, %v774
    %v780 = vpack.c.b16 %v777, %v776
    %vm784 = vcmask 392192
    %v786 = vsel %vm784, %v762, 0
    %788 = vmatpush.bf16.msra.mxu0 0
    %789 = vmatpush.bf16.msra.mxu0 0
    %790 = vmatpush.bf16.msra.mxu0 0
    %791 = vmatpush.bf16.msra.mxu0 0
    %792 = vmatpush.bf16.msra.mxu0 0
    %793 = vmatpush.bf16.msra.mxu0 %v780
    %794 = vmatpush.bf16.msra.mxu0 %v779
    %795 = vmatpush.bf16.msra.mxu0 %v778
    %796 = vmatmul.bf16.gmra.mxu0 %v786
    %v797 = vpop.f32.mrf.mxu0
    %v798 = vadd.f32 %v764, %v797
    %v799 = vpop.f32.mrf.mxu0
    %800 = vdwg.mxu0
    %v801 = vxor.u32 %v798, 2147483648
    %v802 = vmul.f32 %v801, 1.442695
    %v803 = vpow.pop %v802
    %v804 = vadd.f32 %v803, 1.0
    %v805 = vrcp.pop %v804
    %v806 = vmul.f32 %v804, %v805
    %v807 = vsub.f32 1.0, %v806
    %v808 = vmul.f32 %v805, %v807
    %v809 = vadd.f32 %v805, %v808
    %vm810 = vweird.f32 %v804
    %vm811 = vweird.f32 %v805
    %vm812 = vmor %vm810, %vm811
    %v813 = vsel %vm812, %v805, %v809
    %v814 = vand.u32 2147483647, %v804
    %vm815 = vcmp.eq.f32.partialorder %v814, 8.507059e+37
    %v816 = vand.u32 %v804, 2147483648
    %v817 = vor.u32 1.1754944e-38, %v816
    %v818 = vsel %vm815, %v817, %v813
    %v819 = vmul.f32 1.0, %v818
    %v820 = vmul.f32 %v819, 2.0
    %v821 = vsub.f32 %v820, 1.0
    %v822 = vmul.f32 %v819, 0.0
    %824 = vrot.lane.b32.xlu0 %v821, 64
    %v825 = vpop.permute.xlu0 %824
    %v827 = vmul.f32 %v819, %v825
    %829 = vrot.lane.b32.xlu0 %v827, 32
    %v830 = vpop.permute.xlu0 %829
    %v832 = vadd.f32 %v822, %v830
    %v833 = vtanh.pop %v832
    %835 = vrot.lane.b32.xlu0 %v833, 64
    %v836 = vpop.permute.xlu0 %835
    %v838 = vmul.f32 %v819, %v836
    %v840 = vrot.slane %v758, 1
    %v841 = vrot.slane %v758, 2
    %v842 = vrot.slane %v758, 3
    %v843 = vperm.slane %v758, 0
    %v844 = vperm.slane %v840, 0
    %v845 = vperm.slane %v841, 0
    %v846 = vperm.slane %v842, 0
    %847 = vrot.lane.b32.xlu0 %v843, 120
    %v848 = vpop.permute.xlu0 %847
    %849 = vrot.lane.b32.xlu0 %v844, 120
    %v850 = vpop.permute.xlu0 %849
    %851 = vrot.lane.b32.xlu0 %v845, 120
    %v852 = vpop.permute.xlu0 %851
    %853 = vrot.lane.b32.xlu0 %v846, 120
    %v854 = vpop.permute.xlu0 %853
    %vm859 = vcmask 57344
    %860 = vst.msk [vmem:[%s6] sm:$0x1] %vm859, %v848
    %861 = vst.msk [vmem:[%s6 + $0x1] sm:$0x1] %vm859, %v850
    %862 = vst.msk [vmem:[%s6 + $0x2] sm:$0x1] %vm859, %v852
    %863 = vst.msk [vmem:[%s6 + $0x3] sm:$0x1] %vm859, %v854
    %v865 = vrot.slane %v838, 1
    %v866 = vrot.slane %v838, 2
    %v867 = vrot.slane %v838, 3
    %v868 = vperm.slane %v838, 0
    %v869 = vperm.slane %v865, 0
    %v870 = vperm.slane %v866, 0
    %v871 = vperm.slane %v867, 0
    %872 = vrot.lane.b32.xlu0 %v868, 16
    %v873 = vpop.permute.xlu0 %872
    %874 = vrot.lane.b32.xlu0 %v869, 16
    %v875 = vpop.permute.xlu0 %874
    %876 = vrot.lane.b32.xlu0 %v870, 16
    %v877 = vpop.permute.xlu0 %876
    %878 = vrot.lane.b32.xlu0 %v871, 16
    %v879 = vpop.permute.xlu0 %878
    %vm884 = vcmask 122880
    %885 = vst.msk [vmem:[%s7] sm:$0x1] %vm884, %v873
    %886 = vst.msk [vmem:[%s7 + $0x1] sm:$0x1] %vm884, %v875
    %887 = vst.msk [vmem:[%s7 + $0x2] sm:$0x1] %vm884, %v877
    %888 = vst.msk [vmem:[%s7 + $0x3] sm:$0x1] %vm884, %v879
    %889 = vrot.lane.b32.xlu0 %v838, 32
    %v890 = vpop.permute.xlu0 %889
    %vm892 = vcmask 261120
    %v893 = vsel %vm892, %v890, %v832
    %v894 = vmul.f32 %v893, %v662
    %v895 = vsel %vm664, %v894, 0.0
    %896 = vadd.xlane.f32.xlu0 %v895
    %v897 = vpop.xlane.xlu0 %896
    %v898 = vmul.f32 %v893, %v668
    %v899 = vsel %vm664, %v898, 0.0
    %900 = vadd.xlane.f32.xlu0 %v899
    %v901 = vpop.xlane.xlu0 %900
    %v902 = vadd.f32 %v897, %v685
    %v903 = vadd.f32 %v901, %v697
    %905 = vrot.lane.b32.xlu0 %v903, 8
    %v906 = vpop.permute.xlu0 %905
    %v908 = vsel %vm704, %v902, %v906
    %v909 = vsel %vm706, %v908, -inf
    %910 = vmax.xlane.f32.xlu0 %v909
    %v911 = vpop.xlane.xlu0 %910
    %v912 = vsel %vm710, %v908, -inf
    %913 = vmax.xlane.f32.xlu0 %v912
    %v914 = vpop.xlane.xlu0 %913
    %v915 = vsel %vm704, %v911, %v914
    %v916 = vsub.f32 %v908, %v915
    %v917 = vmul.f32 %v916, 1.442695
    %v918 = vpow.pop %v917
    %v919 = vsel %vm706, %v918, 0.0
    %920 = vadd.xlane.f32.xlu0 %v919
    %v921 = vpop.xlane.xlu0 %920
    %923 = vrot.lane.b32.xlu0 %v918, 120
    %v924 = vpop.permute.xlu0 %923
    %v926 = vsel %vm706, %v924, 0.0
    %927 = vadd.xlane.f32.xlu0 %v926
    %v928 = vpop.xlane.xlu0 %927
    %v929 = vsel %vm728, %v921, %v928
    %v930 = vrcp.pop %v929
    %932 = vset.pattern.permute.xlu0 0
    %933 = vperm.xlu0 %932, %v930
    %v934 = vpop.permute.xlu0 %933
    %v936 = vmul.f32 %v918, %v934
    %v937 = vrot.slane %v86, 1
    %v938 = vsel %vm678, %v87, %v937
    %v939 = vrot.slane %v88, 7
    %v940 = vsel %vm681, %v939, %v938
    %v941 = vrot.slane %v89, 6
    %v942 = vsel %vm684, %v941, %v940
    %v944 = vmul.f32 %v936, %v942
    %945 = vset.pattern.permute.xlu0 1
    %946 = vperm.xlu0 %945, %v930
    %v947 = vpop.permute.xlu0 %946
    %v949 = vmul.f32 %v918, %v947
    %951 = vrot.lane.b32.xlu0 %v944, 8
    %v952 = vpop.permute.xlu0 %951
    %v954 = vmul.f32 %v949, %v952
    %955 = vrot.lane.b32.xlu0 %v838, 48
    %v956 = vpop.permute.xlu0 %955
    %v958 = vsel %vm704, %v944, %v954
    %v959 = vsel %vm760, %v958, %v956
    %v960 = vpack.c.bf16 %v959, %v959
    %v962 = vsel %vm784, %v960, 0
    %964 = vmatpush.bf16.msra.mxu0 0
    %965 = vmatpush.bf16.msra.mxu0 0
    %966 = vmatpush.bf16.msra.mxu0 0
    %967 = vmatpush.bf16.msra.mxu0 0
    %968 = vmatpush.bf16.msra.mxu0 0
    %969 = vmatpush.bf16.msra.mxu0 %v780
    %970 = vmatpush.bf16.msra.mxu0 %v779
    %971 = vmatpush.bf16.msra.mxu0 %v778
    %972 = vmatmul.bf16.gmra.mxu0 %v962
    %v973 = vpop.f32.mrf.mxu0
    %v974 = vadd.f32 %v764, %v973
    %v975 = vpop.f32.mrf.mxu0
    %976 = vdwg.mxu0
    %v977 = vxor.u32 %v974, 2147483648
    %v978 = vmul.f32 %v977, 1.442695
    %v979 = vpow.pop %v978
    %v980 = vadd.f32 %v979, 1.0
    %v981 = vrcp.pop %v980
    %v982 = vmul.f32 %v980, %v981
    %v983 = vsub.f32 1.0, %v982
    %v984 = vmul.f32 %v981, %v983
    %v985 = vadd.f32 %v981, %v984
    %vm986 = vweird.f32 %v980
    %vm987 = vweird.f32 %v981
    %vm988 = vmor %vm986, %vm987
    %v989 = vsel %vm988, %v981, %v985
    %v990 = vand.u32 2147483647, %v980
    %vm991 = vcmp.eq.f32.partialorder %v990, 8.507059e+37
    %v992 = vand.u32 %v980, 2147483648
    %v993 = vor.u32 1.1754944e-38, %v992
    %v994 = vsel %vm991, %v993, %v989
    %v995 = vmul.f32 1.0, %v994
    %v996 = vmul.f32 %v995, 2.0
    %v997 = vsub.f32 %v996, 1.0
    %v998 = vmul.f32 %v995, %v832
    %1000 = vrot.lane.b32.xlu0 %v997, 64
    %v1001 = vpop.permute.xlu0 %1000
    %v1003 = vmul.f32 %v995, %v1001
    %1005 = vrot.lane.b32.xlu0 %v1003, 32
    %v1006 = vpop.permute.xlu0 %1005
    %v1008 = vadd.f32 %v998, %v1006
    %v1009 = vtanh.pop %v1008
    %1011 = vrot.lane.b32.xlu0 %v1009, 64
    %v1012 = vpop.permute.xlu0 %1011
    %v1014 = vmul.f32 %v995, %v1012
    %v1016 = vrot.slane %v954, 1
    %v1017 = vrot.slane %v954, 2
    %v1018 = vrot.slane %v954, 3
    %vm1022 = vcmask 122944
    %1023 = vst.msk [vmem:[%s6] sm:$0x1] %vm1022, %v954
    %1024 = vst.msk [vmem:[%s6 + $0x1] sm:$0x1] %vm1022, %v1016
    %1025 = vst.msk [vmem:[%s6 + $0x2] sm:$0x1] %vm1022, %v1017
    %1026 = vst.msk [vmem:[%s6 + $0x3] sm:$0x1] %vm1022, %v1018
    %v1028 = vrot.slane %v1014, 1
    %v1029 = vrot.slane %v1014, 2
    %v1030 = vrot.slane %v1014, 3
    %v1031 = vperm.slane %v1014, 0
    %v1032 = vperm.slane %v1028, 0
    %v1033 = vperm.slane %v1029, 0
    %v1034 = vperm.slane %v1030, 0
    %1035 = vrot.lane.b32.xlu0 %v1031, 32
    %v1036 = vpop.permute.xlu0 %1035
    %1037 = vrot.lane.b32.xlu0 %v1032, 32
    %v1038 = vpop.permute.xlu0 %1037
    %1039 = vrot.lane.b32.xlu0 %v1033, 32
    %v1040 = vpop.permute.xlu0 %1039
    %1041 = vrot.lane.b32.xlu0 %v1034, 32
    %v1042 = vpop.permute.xlu0 %1041
    %vm1047 = vcmask 254080
    %1048 = vst.msk [vmem:[%s7] sm:$0x1] %vm1047, %v1036
    %1049 = vst.msk [vmem:[%s7 + $0x1] sm:$0x1] %vm1047, %v1038
    %1050 = vst.msk [vmem:[%s7 + $0x2] sm:$0x1] %vm1047, %v1040
    %1051 = vst.msk [vmem:[%s7 + $0x3] sm:$0x1] %vm1047, %v1042
    %1052 = vrot.lane.b32.xlu0 %v1014, 32
    %v1053 = vpop.permute.xlu0 %1052
    %v1055 = vsel %vm892, %v1053, %v1008
    %v1056 = vmul.f32 %v1055, %v662
    %v1057 = vsel %vm664, %v1056, 0.0
    %1058 = vadd.xlane.f32.xlu0 %v1057
    %v1059 = vpop.xlane.xlu0 %1058
    %v1060 = vmul.f32 %v1055, %v668
    %v1061 = vsel %vm664, %v1060, 0.0
    %1062 = vadd.xlane.f32.xlu0 %v1061
    %v1063 = vpop.xlane.xlu0 %1062
    %v1064 = vadd.f32 %v1059, %v685
    %v1065 = vadd.f32 %v1063, %v697
    %1067 = vrot.lane.b32.xlu0 %v1065, 8
    %v1068 = vpop.permute.xlu0 %1067
    %v1070 = vsel %vm704, %v1064, %v1068
    %v1071 = vsel %vm706, %v1070, -inf
    %1072 = vmax.xlane.f32.xlu0 %v1071
    %v1073 = vpop.xlane.xlu0 %1072
    %v1074 = vsel %vm710, %v1070, -inf
    %1075 = vmax.xlane.f32.xlu0 %v1074
    %v1076 = vpop.xlane.xlu0 %1075
    %v1077 = vsel %vm704, %v1073, %v1076
    %v1078 = vsub.f32 %v1070, %v1077
    %v1079 = vmul.f32 %v1078, 1.442695
    %v1080 = vpow.pop %v1079
    %v1081 = vsel %vm706, %v1080, 0.0
    %1082 = vadd.xlane.f32.xlu0 %v1081
    %v1083 = vpop.xlane.xlu0 %1082
    %1085 = vrot.lane.b32.xlu0 %v1080, 120
    %v1086 = vpop.permute.xlu0 %1085
    %v1088 = vsel %vm706, %v1086, 0.0
    %1089 = vadd.xlane.f32.xlu0 %v1088
    %v1090 = vpop.xlane.xlu0 %1089
    %v1091 = vsel %vm728, %v1083, %v1090
    %v1092 = vrcp.pop %v1091
    %1094 = vset.pattern.permute.xlu0 0
    %1095 = vperm.xlu0 %1094, %v1092
    %v1096 = vpop.permute.xlu0 %1095
    %v1098 = vmul.f32 %v1080, %v1096
    %v1099 = vrot.slane %v86, 2
    %v1100 = vrot.slane %v87, 1
    %v1101 = vsel %vm678, %v1100, %v1099
    %v1102 = vsel %vm681, %v88, %v1101
    %v1103 = vrot.slane %v89, 7
    %v1104 = vsel %vm684, %v1103, %v1102
    %v1106 = vmul.f32 %v1098, %v1104
    %1107 = vset.pattern.permute.xlu0 1
    %1108 = vperm.xlu0 %1107, %v1092
    %v1109 = vpop.permute.xlu0 %1108
    %v1111 = vmul.f32 %v1080, %v1109
    %1113 = vrot.lane.b32.xlu0 %v1106, 8
    %v1114 = vpop.permute.xlu0 %1113
    %v1116 = vmul.f32 %v1111, %v1114
    %1117 = vrot.lane.b32.xlu0 %v1014, 48
    %v1118 = vpop.permute.xlu0 %1117
    %v1120 = vsel %vm704, %v1106, %v1116
    %v1121 = vsel %vm760, %v1120, %v1118
    %v1122 = vpack.c.bf16 %v1121, %v1121
    %v1124 = vsel %vm784, %v1122, 0
    %1126 = vmatpush.bf16.msra.mxu0 0
    %1127 = vmatpush.bf16.msra.mxu0 0
    %1128 = vmatpush.bf16.msra.mxu0 0
    %1129 = vmatpush.bf16.msra.mxu0 0
    %1130 = vmatpush.bf16.msra.mxu0 0
    %1131 = vmatpush.bf16.msra.mxu0 %v780
    %1132 = vmatpush.bf16.msra.mxu0 %v779
    %1133 = vmatpush.bf16.msra.mxu0 %v778
    %1134 = vmatmul.bf16.gmra.mxu0 %v1124
    %v1135 = vpop.f32.mrf.mxu0
    %v1136 = vadd.f32 %v764, %v1135
    %v1137 = vpop.f32.mrf.mxu0
    %1138 = vdwg.mxu0
    %v1139 = vxor.u32 %v1136, 2147483648
    %v1140 = vmul.f32 %v1139, 1.442695
    %v1141 = vpow.pop %v1140
    %v1142 = vadd.f32 %v1141, 1.0
    %v1143 = vrcp.pop %v1142
    %v1144 = vmul.f32 %v1142, %v1143
    %v1145 = vsub.f32 1.0, %v1144
    %v1146 = vmul.f32 %v1143, %v1145
    %v1147 = vadd.f32 %v1143, %v1146
    %vm1148 = vweird.f32 %v1142
    %vm1149 = vweird.f32 %v1143
    %vm1150 = vmor %vm1148, %vm1149
    %v1151 = vsel %vm1150, %v1143, %v1147
    %v1152 = vand.u32 2147483647, %v1142
    %vm1153 = vcmp.eq.f32.partialorder %v1152, 8.507059e+37
    %v1154 = vand.u32 %v1142, 2147483648
    %v1155 = vor.u32 1.1754944e-38, %v1154
    %v1156 = vsel %vm1153, %v1155, %v1151
    %v1157 = vmul.f32 1.0, %v1156
    %v1158 = vmul.f32 %v1157, 2.0
    %v1159 = vsub.f32 %v1158, 1.0
    %v1160 = vmul.f32 %v1157, %v1008
    %1162 = vrot.lane.b32.xlu0 %v1159, 64
    %v1163 = vpop.permute.xlu0 %1162
    %v1165 = vmul.f32 %v1157, %v1163
    %1167 = vrot.lane.b32.xlu0 %v1165, 32
    %v1168 = vpop.permute.xlu0 %1167
    %v1170 = vadd.f32 %v1160, %v1168
    %v1171 = vtanh.pop %v1170
    %1173 = vrot.lane.b32.xlu0 %v1171, 64
    %v1174 = vpop.permute.xlu0 %1173
    %v1176 = vmul.f32 %v1157, %v1174
    %v1178 = vrot.slane %v1116, 1
    %v1179 = vrot.slane %v1116, 2
    %v1180 = vrot.slane %v1116, 3
    %v1181 = vperm.slane %v1116, 0
    %v1182 = vperm.slane %v1178, 0
    %v1183 = vperm.slane %v1179, 0
    %v1184 = vperm.slane %v1180, 0
    %1185 = vrot.lane.b32.xlu0 %v1181, 8
    %v1186 = vpop.permute.xlu0 %1185
    %1187 = vrot.lane.b32.xlu0 %v1182, 8
    %v1188 = vpop.permute.xlu0 %1187
    %1189 = vrot.lane.b32.xlu0 %v1183, 8
    %v1190 = vpop.permute.xlu0 %1189
    %1191 = vrot.lane.b32.xlu0 %v1184, 8
    %v1192 = vpop.permute.xlu0 %1191
    %vm1197 = vcmask 188544
    %1198 = vst.msk [vmem:[%s6] sm:$0x1] %vm1197, %v1186
    %1199 = vst.msk [vmem:[%s6 + $0x1] sm:$0x1] %vm1197, %v1188
    %1200 = vst.msk [vmem:[%s6 + $0x2] sm:$0x1] %vm1197, %v1190
    %1201 = vst.msk [vmem:[%s6 + $0x3] sm:$0x1] %vm1197, %v1192
    %v1203 = vrot.slane %v1176, 1
    %v1204 = vrot.slane %v1176, 2
    %v1205 = vrot.slane %v1176, 3
    %v1206 = vperm.slane %v1176, 0
    %v1207 = vperm.slane %v1203, 0
    %v1208 = vperm.slane %v1204, 0
    %v1209 = vperm.slane %v1205, 0
    %1210 = vrot.lane.b32.xlu0 %v1206, 48
    %v1211 = vpop.permute.xlu0 %1210
    %1212 = vrot.lane.b32.xlu0 %v1207, 48
    %v1213 = vpop.permute.xlu0 %1212
    %1214 = vrot.lane.b32.xlu0 %v1208, 48
    %v1215 = vpop.permute.xlu0 %1214
    %1216 = vrot.lane.b32.xlu0 %v1209, 48
    %v1217 = vpop.permute.xlu0 %1216
    %vm1222 = vcmask 385280
    %1223 = vst.msk [vmem:[%s7] sm:$0x1] %vm1222, %v1211
    %1224 = vst.msk [vmem:[%s7 + $0x1] sm:$0x1] %vm1222, %v1213
    %1225 = vst.msk [vmem:[%s7 + $0x2] sm:$0x1] %vm1222, %v1215
    %1226 = vst.msk [vmem:[%s7 + $0x3] sm:$0x1] %vm1222, %v1217
    %1227 = vrot.lane.b32.xlu0 %v1176, 32
    %v1228 = vpop.permute.xlu0 %1227
    %v1230 = vsel %vm892, %v1228, %v1170
    %v1231 = vmul.f32 %v1230, %v662
    %v1232 = vsel %vm664, %v1231, 0.0
    %1233 = vadd.xlane.f32.xlu0 %v1232
    %v1234 = vpop.xlane.xlu0 %1233
    %v1235 = vmul.f32 %v1230, %v668
    %v1236 = vsel %vm664, %v1235, 0.0
    %1237 = vadd.xlane.f32.xlu0 %v1236
    %v1238 = vpop.xlane.xlu0 %1237
    %v1239 = vadd.f32 %v1234, %v685
    %v1240 = vadd.f32 %v1238, %v697
    %1242 = vrot.lane.b32.xlu0 %v1240, 8
    %v1243 = vpop.permute.xlu0 %1242
    %v1245 = vsel %vm704, %v1239, %v1243
    %v1246 = vsel %vm706, %v1245, -inf
    %1247 = vmax.xlane.f32.xlu0 %v1246
    %v1248 = vpop.xlane.xlu0 %1247
    %v1249 = vsel %vm710, %v1245, -inf
    %1250 = vmax.xlane.f32.xlu0 %v1249
    %v1251 = vpop.xlane.xlu0 %1250
    %v1252 = vsel %vm704, %v1248, %v1251
    %v1253 = vsub.f32 %v1245, %v1252
    %v1254 = vmul.f32 %v1253, 1.442695
    %v1255 = vpow.pop %v1254
    %v1256 = vsel %vm706, %v1255, 0.0
    %1257 = vadd.xlane.f32.xlu0 %v1256
    %v1258 = vpop.xlane.xlu0 %1257
    %1260 = vrot.lane.b32.xlu0 %v1255, 120
    %v1261 = vpop.permute.xlu0 %1260
    %v1263 = vsel %vm706, %v1261, 0.0
    %1264 = vadd.xlane.f32.xlu0 %v1263
    %v1265 = vpop.xlane.xlu0 %1264
    %v1266 = vsel %vm728, %v1258, %v1265
    %v1267 = vrcp.pop %v1266
    %1269 = vset.pattern.permute.xlu0 0
    %1270 = vperm.xlu0 %1269, %v1267
    %v1271 = vpop.permute.xlu0 %1270
    %v1273 = vmul.f32 %v1255, %v1271
    %v1274 = vrot.slane %v86, 3
    %v1275 = vrot.slane %v87, 2
    %v1276 = vsel %vm678, %v1275, %v1274
    %v1277 = vrot.slane %v88, 1
    %v1278 = vsel %vm681, %v1277, %v1276
    %v1279 = vsel %vm684, %v89, %v1278
    %v1281 = vmul.f32 %v1273, %v1279
    %1282 = vset.pattern.permute.xlu0 1
    %1283 = vperm.xlu0 %1282, %v1267
    %v1284 = vpop.permute.xlu0 %1283
    %v1286 = vmul.f32 %v1255, %v1284
    %1288 = vrot.lane.b32.xlu0 %v1281, 8
    %v1289 = vpop.permute.xlu0 %1288
    %v1291 = vmul.f32 %v1286, %v1289
    %1292 = vrot.lane.b32.xlu0 %v1176, 48
    %v1293 = vpop.permute.xlu0 %1292
    %v1295 = vsel %vm704, %v1281, %v1291
    %v1296 = vsel %vm760, %v1295, %v1293
    %v1297 = vpack.c.bf16 %v1296, %v1296
    %v1299 = vsel %vm784, %v1297, 0
    %1301 = vmatpush.bf16.msra.mxu0 0
    %1302 = vmatpush.bf16.msra.mxu0 0
    %1303 = vmatpush.bf16.msra.mxu0 0
    %1304 = vmatpush.bf16.msra.mxu0 0
    %1305 = vmatpush.bf16.msra.mxu0 0
    %1306 = vmatpush.bf16.msra.mxu0 %v780
    %1307 = vmatpush.bf16.msra.mxu0 %v779
    %1308 = vmatpush.bf16.msra.mxu0 %v778
    %1309 = vmatmul.bf16.gmra.mxu0 %v1299
    %v1310 = vpop.f32.mrf.mxu0
    %v1311 = vadd.f32 %v764, %v1310
    %v1312 = vpop.f32.mrf.mxu0
    %1313 = vdwg.mxu0
    %v1314 = vxor.u32 %v1311, 2147483648
    %v1315 = vmul.f32 %v1314, 1.442695
    %v1316 = vpow.pop %v1315
    %v1317 = vadd.f32 %v1316, 1.0
    %v1318 = vrcp.pop %v1317
    %v1319 = vmul.f32 %v1317, %v1318
    %v1320 = vsub.f32 1.0, %v1319
    %v1321 = vmul.f32 %v1318, %v1320
    %v1322 = vadd.f32 %v1318, %v1321
    %vm1323 = vweird.f32 %v1317
    %vm1324 = vweird.f32 %v1318
    %vm1325 = vmor %vm1323, %vm1324
    %v1326 = vsel %vm1325, %v1318, %v1322
    %v1327 = vand.u32 2147483647, %v1317
    %vm1328 = vcmp.eq.f32.partialorder %v1327, 8.507059e+37
    %v1329 = vand.u32 %v1317, 2147483648
    %v1330 = vor.u32 1.1754944e-38, %v1329
    %v1331 = vsel %vm1328, %v1330, %v1326
    %v1332 = vmul.f32 1.0, %v1331
    %v1333 = vmul.f32 %v1332, 2.0
    %v1334 = vsub.f32 %v1333, 1.0
    %v1335 = vmul.f32 %v1332, %v1170
    %1337 = vrot.lane.b32.xlu0 %v1334, 64
    %v1338 = vpop.permute.xlu0 %1337
    %v1340 = vmul.f32 %v1332, %v1338
    %1342 = vrot.lane.b32.xlu0 %v1340, 32
    %v1343 = vpop.permute.xlu0 %1342
    %v1345 = vadd.f32 %v1335, %v1343
    %v1346 = vtanh.pop %v1345
    %1348 = vrot.lane.b32.xlu0 %v1346, 64
    %v1349 = vpop.permute.xlu0 %1348
    %v1351 = vmul.f32 %v1332, %v1349
    %v1353 = vrot.slane %v1291, 1
    %v1354 = vrot.slane %v1291, 2
    %v1355 = vrot.slane %v1291, 3
    %v1356 = vperm.slane %v1291, 0
    %v1357 = vperm.slane %v1353, 0
    %v1358 = vperm.slane %v1354, 0
    %v1359 = vperm.slane %v1355, 0
    %1360 = vrot.lane.b32.xlu0 %v1356, 16
    %v1361 = vpop.permute.xlu0 %1360
    %1362 = vrot.lane.b32.xlu0 %v1357, 16
    %v1363 = vpop.permute.xlu0 %1362
    %1364 = vrot.lane.b32.xlu0 %v1358, 16
    %v1365 = vpop.permute.xlu0 %1364
    %1366 = vrot.lane.b32.xlu0 %v1359, 16
    %v1367 = vpop.permute.xlu0 %1366
    %vm1372 = vcmask 254144
    %1373 = vst.msk [vmem:[%s6] sm:$0x1] %vm1372, %v1361
    %1374 = vst.msk [vmem:[%s6 + $0x1] sm:$0x1] %vm1372, %v1363
    %1375 = vst.msk [vmem:[%s6 + $0x2] sm:$0x1] %vm1372, %v1365
    %1376 = vst.msk [vmem:[%s6 + $0x3] sm:$0x1] %vm1372, %v1367
    %v1378 = vrot.slane %v1351, 1
    %v1379 = vrot.slane %v1351, 2
    %v1380 = vrot.slane %v1351, 3
    %v1381 = vperm.slane %v1351, 0
    %v1382 = vperm.slane %v1378, 0
    %v1383 = vperm.slane %v1379, 0
    %v1384 = vperm.slane %v1380, 0
    %1385 = vrot.lane.b32.xlu0 %v1381, 64
    %v1386 = vpop.permute.xlu0 %1385
    %1387 = vrot.lane.b32.xlu0 %v1382, 64
    %v1388 = vpop.permute.xlu0 %1387
    %1389 = vrot.lane.b32.xlu0 %v1383, 64
    %v1390 = vpop.permute.xlu0 %1389
    %1391 = vrot.lane.b32.xlu0 %v1384, 64
    %v1392 = vpop.permute.xlu0 %1391
    %vm1397 = vcmask 516480
    %1398 = vst.msk [vmem:[%s7] sm:$0x1] %vm1397, %v1386
    %1399 = vst.msk [vmem:[%s7 + $0x1] sm:$0x1] %vm1397, %v1388
    %1400 = vst.msk [vmem:[%s7 + $0x2] sm:$0x1] %vm1397, %v1390
    %1401 = vst.msk [vmem:[%s7 + $0x3] sm:$0x1] %vm1397, %v1392
    %1402 = vrot.lane.b32.xlu0 %v1351, 32
    %v1403 = vpop.permute.xlu0 %1402
    %v1405 = vsel %vm892, %v1403, %v1345
    %v1406 = vmul.f32 %v1405, %v662
    %v1407 = vsel %vm664, %v1406, 0.0
    %1408 = vadd.xlane.f32.xlu0 %v1407
    %v1409 = vpop.xlane.xlu0 %1408
    %v1410 = vmul.f32 %v1405, %v668
    %v1411 = vsel %vm664, %v1410, 0.0
    %1412 = vadd.xlane.f32.xlu0 %v1411
    %v1413 = vpop.xlane.xlu0 %1412
    %v1414 = vadd.f32 %v1409, %v685
    %v1415 = vadd.f32 %v1413, %v697
    %1417 = vrot.lane.b32.xlu0 %v1415, 8
    %v1418 = vpop.permute.xlu0 %1417
    %v1420 = vsel %vm704, %v1414, %v1418
    %v1421 = vsel %vm706, %v1420, -inf
    %1422 = vmax.xlane.f32.xlu0 %v1421
    %v1423 = vpop.xlane.xlu0 %1422
    %v1424 = vsel %vm710, %v1420, -inf
    %1425 = vmax.xlane.f32.xlu0 %v1424
    %v1426 = vpop.xlane.xlu0 %1425
    %v1427 = vsel %vm704, %v1423, %v1426
    %v1428 = vsub.f32 %v1420, %v1427
    %v1429 = vmul.f32 %v1428, 1.442695
    %v1430 = vpow.pop %v1429
    %v1431 = vsel %vm706, %v1430, 0.0
    %1432 = vadd.xlane.f32.xlu0 %v1431
    %v1433 = vpop.xlane.xlu0 %1432
    %1435 = vrot.lane.b32.xlu0 %v1430, 120
    %v1436 = vpop.permute.xlu0 %1435
    %v1438 = vsel %vm706, %v1436, 0.0
    %1439 = vadd.xlane.f32.xlu0 %v1438
    %v1440 = vpop.xlane.xlu0 %1439
    %v1441 = vsel %vm728, %v1433, %v1440
    %v1442 = vrcp.pop %v1441
    %1444 = vset.pattern.permute.xlu0 0
    %1445 = vperm.xlu0 %1444, %v1442
    %v1446 = vpop.permute.xlu0 %1445
    %v1448 = vmul.f32 %v1430, %v1446
    %v1449 = vrot.slane %v86, 4
    %v1450 = vrot.slane %v87, 3
    %v1451 = vsel %vm678, %v1450, %v1449
    %v1452 = vrot.slane %v88, 2
    %v1453 = vsel %vm681, %v1452, %v1451
    %v1454 = vrot.slane %v89, 1
    %v1455 = vsel %vm684, %v1454, %v1453
    %v1457 = vmul.f32 %v1448, %v1455
    %1458 = vset.pattern.permute.xlu0 1
    %1459 = vperm.xlu0 %1458, %v1442
    %v1460 = vpop.permute.xlu0 %1459
    %v1462 = vmul.f32 %v1430, %v1460
    %1464 = vrot.lane.b32.xlu0 %v1457, 8
    %v1465 = vpop.permute.xlu0 %1464
    %v1467 = vmul.f32 %v1462, %v1465
    %1468 = vrot.lane.b32.xlu0 %v1351, 48
    %v1469 = vpop.permute.xlu0 %1468
    %v1471 = vsel %vm704, %v1457, %v1467
    %v1472 = vsel %vm760, %v1471, %v1469
    %v1473 = vpack.c.bf16 %v1472, %v1472
    %v1475 = vsel %vm784, %v1473, 0
    %1477 = vmatpush.bf16.msra.mxu0 0
    %1478 = vmatpush.bf16.msra.mxu0 0
    %1479 = vmatpush.bf16.msra.mxu0 0
    %1480 = vmatpush.bf16.msra.mxu0 0
    %1481 = vmatpush.bf16.msra.mxu0 0
    %1482 = vmatpush.bf16.msra.mxu0 %v780
    %1483 = vmatpush.bf16.msra.mxu0 %v779
    %1484 = vmatpush.bf16.msra.mxu0 %v778
    %1485 = vmatmul.bf16.gmra.mxu0 %v1475
    %v1486 = vpop.f32.mrf.mxu0
    %v1487 = vadd.f32 %v764, %v1486
    %v1488 = vpop.f32.mrf.mxu0
    %1489 = vdwg.mxu0
    %v1490 = vxor.u32 %v1487, 2147483648
    %v1491 = vmul.f32 %v1490, 1.442695
    %v1492 = vpow.pop %v1491
    %v1493 = vadd.f32 %v1492, 1.0
    %v1494 = vrcp.pop %v1493
    %v1495 = vmul.f32 %v1493, %v1494
    %v1496 = vsub.f32 1.0, %v1495
    %v1497 = vmul.f32 %v1494, %v1496
    %v1498 = vadd.f32 %v1494, %v1497
    %vm1499 = vweird.f32 %v1493
    %vm1500 = vweird.f32 %v1494
    %vm1501 = vmor %vm1499, %vm1500
    %v1502 = vsel %vm1501, %v1494, %v1498
    %v1503 = vand.u32 2147483647, %v1493
    %vm1504 = vcmp.eq.f32.partialorder %v1503, 8.507059e+37
    %v1505 = vand.u32 %v1493, 2147483648
    %v1506 = vor.u32 1.1754944e-38, %v1505
    %v1507 = vsel %vm1504, %v1506, %v1502
    %v1508 = vmul.f32 1.0, %v1507
    %v1509 = vmul.f32 %v1508, 2.0
    %v1510 = vsub.f32 %v1509, 1.0
    %v1511 = vmul.f32 %v1508, %v1345
    %1513 = vrot.lane.b32.xlu0 %v1510, 64
    %v1514 = vpop.permute.xlu0 %1513
    %v1516 = vmul.f32 %v1508, %v1514
    %1518 = vrot.lane.b32.xlu0 %v1516, 32
    %v1519 = vpop.permute.xlu0 %1518
    %v1521 = vadd.f32 %v1511, %v1519
    %v1522 = vtanh.pop %v1521
    %1524 = vrot.lane.b32.xlu0 %v1522, 64
    %v1525 = vpop.permute.xlu0 %1524
    %v1527 = vmul.f32 %v1508, %v1525
    %v1529 = vrot.slane %v1467, 1
    %v1530 = vrot.slane %v1467, 2
    %v1531 = vrot.slane %v1467, 3
    %v1532 = vperm.slane %v1467, 0
    %v1533 = vperm.slane %v1529, 0
    %v1534 = vperm.slane %v1530, 0
    %v1535 = vperm.slane %v1531, 0
    %1536 = vrot.lane.b32.xlu0 %v1532, 24
    %v1537 = vpop.permute.xlu0 %1536
    %1538 = vrot.lane.b32.xlu0 %v1533, 24
    %v1539 = vpop.permute.xlu0 %1538
    %1540 = vrot.lane.b32.xlu0 %v1534, 24
    %v1541 = vpop.permute.xlu0 %1540
    %1542 = vrot.lane.b32.xlu0 %v1535, 24
    %v1543 = vpop.permute.xlu0 %1542
    %vm1548 = vcmask 319744
    %1549 = vst.msk [vmem:[%s6] sm:$0x1] %vm1548, %v1537
    %1550 = vst.msk [vmem:[%s6 + $0x1] sm:$0x1] %vm1548, %v1539
    %1551 = vst.msk [vmem:[%s6 + $0x2] sm:$0x1] %vm1548, %v1541
    %1552 = vst.msk [vmem:[%s6 + $0x3] sm:$0x1] %vm1548, %v1543
    %v1554 = vrot.slane %v1527, 1
    %v1555 = vrot.slane %v1527, 2
    %v1556 = vrot.slane %v1527, 3
    %v1557 = vperm.slane %v1527, 0
    %v1558 = vperm.slane %v1554, 0
    %v1559 = vperm.slane %v1555, 0
    %v1560 = vperm.slane %v1556, 0
    %1561 = vrot.lane.b32.xlu0 %v1557, 80
    %v1562 = vpop.permute.xlu0 %1561
    %1563 = vrot.lane.b32.xlu0 %v1558, 80
    %v1564 = vpop.permute.xlu0 %1563
    %1565 = vrot.lane.b32.xlu0 %v1559, 80
    %v1566 = vpop.permute.xlu0 %1565
    %1567 = vrot.lane.b32.xlu0 %v1560, 80
    %v1568 = vpop.permute.xlu0 %1567
    %vm1573 = vcmask 647680
    %1574 = vst.msk [vmem:[%s7] sm:$0x1] %vm1573, %v1562
    %1575 = vst.msk [vmem:[%s7 + $0x1] sm:$0x1] %vm1573, %v1564
    %1576 = vst.msk [vmem:[%s7 + $0x2] sm:$0x1] %vm1573, %v1566
    %1577 = vst.msk [vmem:[%s7 + $0x3] sm:$0x1] %vm1573, %v1568
    %1578 = vrot.lane.b32.xlu0 %v1527, 32
    %v1579 = vpop.permute.xlu0 %1578
    %v1581 = vsel %vm892, %v1579, %v1521
    %v1582 = vmul.f32 %v1581, %v662
    %v1583 = vsel %vm664, %v1582, 0.0
    %1584 = vadd.xlane.f32.xlu0 %v1583
    %v1585 = vpop.xlane.xlu0 %1584
    %v1586 = vmul.f32 %v1581, %v668
    %v1587 = vsel %vm664, %v1586, 0.0
    %1588 = vadd.xlane.f32.xlu0 %v1587
    %v1589 = vpop.xlane.xlu0 %1588
    %v1590 = vadd.f32 %v1585, %v685
    %v1591 = vadd.f32 %v1589, %v697
    %1593 = vrot.lane.b32.xlu0 %v1591, 8
    %v1594 = vpop.permute.xlu0 %1593
    %v1596 = vsel %vm704, %v1590, %v1594
    %v1597 = vsel %vm706, %v1596, -inf
    %1598 = vmax.xlane.f32.xlu0 %v1597
    %v1599 = vpop.xlane.xlu0 %1598
    %v1600 = vsel %vm710, %v1596, -inf
    %1601 = vmax.xlane.f32.xlu0 %v1600
    %v1602 = vpop.xlane.xlu0 %1601
    %v1603 = vsel %vm704, %v1599, %v1602
    %v1604 = vsub.f32 %v1596, %v1603
    %v1605 = vmul.f32 %v1604, 1.442695
    %v1606 = vpow.pop %v1605
    %v1607 = vsel %vm706, %v1606, 0.0
    %1608 = vadd.xlane.f32.xlu0 %v1607
    %v1609 = vpop.xlane.xlu0 %1608
    %1611 = vrot.lane.b32.xlu0 %v1606, 120
    %v1612 = vpop.permute.xlu0 %1611
    %v1614 = vsel %vm706, %v1612, 0.0
    %1615 = vadd.xlane.f32.xlu0 %v1614
    %v1616 = vpop.xlane.xlu0 %1615
    %v1617 = vsel %vm728, %v1609, %v1616
    %v1618 = vrcp.pop %v1617
    %1620 = vset.pattern.permute.xlu0 0
    %1621 = vperm.xlu0 %1620, %v1618
    %v1622 = vpop.permute.xlu0 %1621
    %v1624 = vmul.f32 %v1606, %v1622
    %v1625 = vrot.slane %v86, 5
    %v1626 = vrot.slane %v87, 4
    %v1627 = vsel %vm678, %v1626, %v1625
    %v1628 = vrot.slane %v88, 3
    %v1629 = vsel %vm681, %v1628, %v1627
    %v1630 = vrot.slane %v89, 2
    %v1631 = vsel %vm684, %v1630, %v1629
    %v1633 = vmul.f32 %v1624, %v1631
    %1634 = vset.pattern.permute.xlu0 1
    %1635 = vperm.xlu0 %1634, %v1618
    %v1636 = vpop.permute.xlu0 %1635
    %v1638 = vmul.f32 %v1606, %v1636
    %1640 = vrot.lane.b32.xlu0 %v1633, 8
    %v1641 = vpop.permute.xlu0 %1640
    %v1643 = vmul.f32 %v1638, %v1641
    %1644 = vrot.lane.b32.xlu0 %v1527, 48
    %v1645 = vpop.permute.xlu0 %1644
    %v1647 = vsel %vm704, %v1633, %v1643
    %v1648 = vsel %vm760, %v1647, %v1645
    %v1649 = vpack.c.bf16 %v1648, %v1648
    %v1651 = vsel %vm784, %v1649, 0
    %1653 = vmatpush.bf16.msra.mxu0 0
    %1654 = vmatpush.bf16.msra.mxu0 0
    %1655 = vmatpush.bf16.msra.mxu0 0
    %1656 = vmatpush.bf16.msra.mxu0 0
    %1657 = vmatpush.bf16.msra.mxu0 0
    %1658 = vmatpush.bf16.msra.mxu0 %v780
    %1659 = vmatpush.bf16.msra.mxu0 %v779
    %1660 = vmatpush.bf16.msra.mxu0 %v778
    %1661 = vmatmul.bf16.gmra.mxu0 %v1651
    %v1662 = vpop.f32.mrf.mxu0
    %v1663 = vadd.f32 %v764, %v1662
    %v1664 = vpop.f32.mrf.mxu0
    %1665 = vdwg.mxu0
    %v1666 = vxor.u32 %v1663, 2147483648
    %v1667 = vmul.f32 %v1666, 1.442695
    %v1668 = vpow.pop %v1667
    %v1669 = vadd.f32 %v1668, 1.0
    %v1670 = vrcp.pop %v1669
    %v1671 = vmul.f32 %v1669, %v1670
    %v1672 = vsub.f32 1.0, %v1671
    %v1673 = vmul.f32 %v1670, %v1672
    %v1674 = vadd.f32 %v1670, %v1673
    %vm1675 = vweird.f32 %v1669
    %vm1676 = vweird.f32 %v1670
    %vm1677 = vmor %vm1675, %vm1676
    %v1678 = vsel %vm1677, %v1670, %v1674
    %v1679 = vand.u32 2147483647, %v1669
    %vm1680 = vcmp.eq.f32.partialorder %v1679, 8.507059e+37
    %v1681 = vand.u32 %v1669, 2147483648
    %v1682 = vor.u32 1.1754944e-38, %v1681
    %v1683 = vsel %vm1680, %v1682, %v1678
    %v1684 = vmul.f32 1.0, %v1683
    %v1685 = vmul.f32 %v1684, 2.0
    %v1686 = vsub.f32 %v1685, 1.0
    %v1687 = vmul.f32 %v1684, %v1521
    %1689 = vrot.lane.b32.xlu0 %v1686, 64
    %v1690 = vpop.permute.xlu0 %1689
    %v1692 = vmul.f32 %v1684, %v1690
    %1694 = vrot.lane.b32.xlu0 %v1692, 32
    %v1695 = vpop.permute.xlu0 %1694
    %v1697 = vadd.f32 %v1687, %v1695
    %v1698 = vtanh.pop %v1697
    %1700 = vrot.lane.b32.xlu0 %v1698, 64
    %v1701 = vpop.permute.xlu0 %1700
    %v1703 = vmul.f32 %v1684, %v1701
    %v1705 = vrot.slane %v1643, 1
    %v1706 = vrot.slane %v1643, 2
    %v1707 = vrot.slane %v1643, 3
    %v1708 = vperm.slane %v1643, 0
    %v1709 = vperm.slane %v1705, 0
    %v1710 = vperm.slane %v1706, 0
    %v1711 = vperm.slane %v1707, 0
    %1712 = vrot.lane.b32.xlu0 %v1708, 32
    %v1713 = vpop.permute.xlu0 %1712
    %1714 = vrot.lane.b32.xlu0 %v1709, 32
    %v1715 = vpop.permute.xlu0 %1714
    %1716 = vrot.lane.b32.xlu0 %v1710, 32
    %v1717 = vpop.permute.xlu0 %1716
    %1718 = vrot.lane.b32.xlu0 %v1711, 32
    %v1719 = vpop.permute.xlu0 %1718
    %vm1724 = vcmask 385344
    %1725 = vst.msk [vmem:[%s6] sm:$0x1] %vm1724, %v1713
    %1726 = vst.msk [vmem:[%s6 + $0x1] sm:$0x1] %vm1724, %v1715
    %1727 = vst.msk [vmem:[%s6 + $0x2] sm:$0x1] %vm1724, %v1717
    %1728 = vst.msk [vmem:[%s6 + $0x3] sm:$0x1] %vm1724, %v1719
    %v1730 = vrot.slane %v1703, 1
    %v1731 = vrot.slane %v1703, 2
    %v1732 = vrot.slane %v1703, 3
    %v1733 = vperm.slane %v1703, 0
    %v1734 = vperm.slane %v1730, 0
    %v1735 = vperm.slane %v1731, 0
    %v1736 = vperm.slane %v1732, 0
    %1737 = vrot.lane.b32.xlu0 %v1733, 96
    %v1738 = vpop.permute.xlu0 %1737
    %1739 = vrot.lane.b32.xlu0 %v1734, 96
    %v1740 = vpop.permute.xlu0 %1739
    %1741 = vrot.lane.b32.xlu0 %v1735, 96
    %v1742 = vpop.permute.xlu0 %1741
    %1743 = vrot.lane.b32.xlu0 %v1736, 96
    %v1744 = vpop.permute.xlu0 %1743
    %vm1749 = vcmask 778880
    %1750 = vst.msk [vmem:[%s7] sm:$0x1] %vm1749, %v1738
    %1751 = vst.msk [vmem:[%s7 + $0x1] sm:$0x1] %vm1749, %v1740
    %1752 = vst.msk [vmem:[%s7 + $0x2] sm:$0x1] %vm1749, %v1742
    %1753 = vst.msk [vmem:[%s7 + $0x3] sm:$0x1] %vm1749, %v1744
    %1754 = vrot.lane.b32.xlu0 %v1703, 32
    %v1755 = vpop.permute.xlu0 %1754
    %v1757 = vsel %vm892, %v1755, %v1697
    %v1758 = vmul.f32 %v1757, %v662
    %v1759 = vsel %vm664, %v1758, 0.0
    %1760 = vadd.xlane.f32.xlu0 %v1759
    %v1761 = vpop.xlane.xlu0 %1760
    %v1762 = vmul.f32 %v1757, %v668
    %v1763 = vsel %vm664, %v1762, 0.0
    %1764 = vadd.xlane.f32.xlu0 %v1763
    %v1765 = vpop.xlane.xlu0 %1764
    %v1766 = vadd.f32 %v1761, %v685
    %v1767 = vadd.f32 %v1765, %v697
    %1769 = vrot.lane.b32.xlu0 %v1767, 8
    %v1770 = vpop.permute.xlu0 %1769
    %v1772 = vsel %vm704, %v1766, %v1770
    %v1773 = vsel %vm706, %v1772, -inf
    %1774 = vmax.xlane.f32.xlu0 %v1773
    %v1775 = vpop.xlane.xlu0 %1774
    %v1776 = vsel %vm710, %v1772, -inf
    %1777 = vmax.xlane.f32.xlu0 %v1776
    %v1778 = vpop.xlane.xlu0 %1777
    %v1779 = vsel %vm704, %v1775, %v1778
    %v1780 = vsub.f32 %v1772, %v1779
    %v1781 = vmul.f32 %v1780, 1.442695
    %v1782 = vpow.pop %v1781
    %v1783 = vsel %vm706, %v1782, 0.0
    %1784 = vadd.xlane.f32.xlu0 %v1783
    %v1785 = vpop.xlane.xlu0 %1784
    %1787 = vrot.lane.b32.xlu0 %v1782, 120
    %v1788 = vpop.permute.xlu0 %1787
    %v1790 = vsel %vm706, %v1788, 0.0
    %1791 = vadd.xlane.f32.xlu0 %v1790
    %v1792 = vpop.xlane.xlu0 %1791
    %v1793 = vsel %vm728, %v1785, %v1792
    %v1794 = vrcp.pop %v1793
    %1796 = vset.pattern.permute.xlu0 0
    %1797 = vperm.xlu0 %1796, %v1794
    %v1798 = vpop.permute.xlu0 %1797
    %v1800 = vmul.f32 %v1782, %v1798
    %v1801 = vrot.slane %v86, 6
    %v1802 = vrot.slane %v87, 5
    %v1803 = vsel %vm678, %v1802, %v1801
    %v1804 = vrot.slane %v88, 4
    %v1805 = vsel %vm681, %v1804, %v1803
    %v1806 = vrot.slane %v89, 3
    %v1807 = vsel %vm684, %v1806, %v1805
    %v1809 = vmul.f32 %v1800, %v1807
    %1810 = vset.pattern.permute.xlu0 1
    %1811 = vperm.xlu0 %1810, %v1794
    %v1812 = vpop.permute.xlu0 %1811
    %v1814 = vmul.f32 %v1782, %v1812
    %1816 = vrot.lane.b32.xlu0 %v1809, 8
    %v1817 = vpop.permute.xlu0 %1816
    %v1819 = vmul.f32 %v1814, %v1817
    %1820 = vrot.lane.b32.xlu0 %v1703, 48
    %v1821 = vpop.permute.xlu0 %1820
    %v1823 = vsel %vm704, %v1809, %v1819
    %v1824 = vsel %vm760, %v1823, %v1821
    %v1825 = vpack.c.bf16 %v1824, %v1824
    %v1827 = vsel %vm784, %v1825, 0
    %1829 = vmatpush.bf16.msra.mxu0 0
    %1830 = vmatpush.bf16.msra.mxu0 0
    %1831 = vmatpush.bf16.msra.mxu0 0
    %1832 = vmatpush.bf16.msra.mxu0 0
    %1833 = vmatpush.bf16.msra.mxu0 0
    %1834 = vmatpush.bf16.msra.mxu0 %v780
    %1835 = vmatpush.bf16.msra.mxu0 %v779
    %1836 = vmatpush.bf16.msra.mxu0 %v778
    %1837 = vmatmul.bf16.gmra.mxu0 %v1827
    %v1838 = vpop.f32.mrf.mxu0
    %v1839 = vadd.f32 %v764, %v1838
    %v1840 = vpop.f32.mrf.mxu0
    %1841 = vdwg.mxu0
    %v1842 = vxor.u32 %v1839, 2147483648
    %v1843 = vmul.f32 %v1842, 1.442695
    %v1844 = vpow.pop %v1843
    %v1845 = vadd.f32 %v1844, 1.0
    %v1846 = vrcp.pop %v1845
    %v1847 = vmul.f32 %v1845, %v1846
    %v1848 = vsub.f32 1.0, %v1847
    %v1849 = vmul.f32 %v1846, %v1848
    %v1850 = vadd.f32 %v1846, %v1849
    %vm1851 = vweird.f32 %v1845
    %vm1852 = vweird.f32 %v1846
    %vm1853 = vmor %vm1851, %vm1852
    %v1854 = vsel %vm1853, %v1846, %v1850
    %v1855 = vand.u32 2147483647, %v1845
    %vm1856 = vcmp.eq.f32.partialorder %v1855, 8.507059e+37
    %v1857 = vand.u32 %v1845, 2147483648
    %v1858 = vor.u32 1.1754944e-38, %v1857
    %v1859 = vsel %vm1856, %v1858, %v1854
    %v1860 = vmul.f32 1.0, %v1859
    %v1861 = vmul.f32 %v1860, 2.0
    %v1862 = vsub.f32 %v1861, 1.0
    %v1863 = vmul.f32 %v1860, %v1697
    %1865 = vrot.lane.b32.xlu0 %v1862, 64
    %v1866 = vpop.permute.xlu0 %1865
    %v1868 = vmul.f32 %v1860, %v1866
    %1870 = vrot.lane.b32.xlu0 %v1868, 32
    %v1871 = vpop.permute.xlu0 %1870
    %v1873 = vadd.f32 %v1863, %v1871
    %v1874 = vtanh.pop %v1873
    %1876 = vrot.lane.b32.xlu0 %v1874, 64
    %v1877 = vpop.permute.xlu0 %1876
    %v1879 = vmul.f32 %v1860, %v1877
    %v1881 = vrot.slane %v1819, 1
    %v1882 = vrot.slane %v1819, 2
    %v1883 = vrot.slane %v1819, 3
    %v1884 = vperm.slane %v1819, 0
    %v1885 = vperm.slane %v1881, 0
    %v1886 = vperm.slane %v1882, 0
    %v1887 = vperm.slane %v1883, 0
    %1888 = vrot.lane.b32.xlu0 %v1884, 40
    %v1889 = vpop.permute.xlu0 %1888
    %1890 = vrot.lane.b32.xlu0 %v1885, 40
    %v1891 = vpop.permute.xlu0 %1890
    %1892 = vrot.lane.b32.xlu0 %v1886, 40
    %v1893 = vpop.permute.xlu0 %1892
    %1894 = vrot.lane.b32.xlu0 %v1887, 40
    %v1895 = vpop.permute.xlu0 %1894
    %vm1900 = vcmask 450944
    %1901 = vst.msk [vmem:[%s6] sm:$0x1] %vm1900, %v1889
    %1902 = vst.msk [vmem:[%s6 + $0x1] sm:$0x1] %vm1900, %v1891
    %1903 = vst.msk [vmem:[%s6 + $0x2] sm:$0x1] %vm1900, %v1893
    %1904 = vst.msk [vmem:[%s6 + $0x3] sm:$0x1] %vm1900, %v1895
    %v1906 = vrot.slane %v1879, 1
    %v1907 = vrot.slane %v1879, 2
    %v1908 = vrot.slane %v1879, 3
    %v1909 = vperm.slane %v1879, 0
    %v1910 = vperm.slane %v1906, 0
    %v1911 = vperm.slane %v1907, 0
    %v1912 = vperm.slane %v1908, 0
    %1913 = vrot.lane.b32.xlu0 %v1909, 112
    %v1914 = vpop.permute.xlu0 %1913
    %1915 = vrot.lane.b32.xlu0 %v1910, 112
    %v1916 = vpop.permute.xlu0 %1915
    %1917 = vrot.lane.b32.xlu0 %v1911, 112
    %v1918 = vpop.permute.xlu0 %1917
    %1919 = vrot.lane.b32.xlu0 %v1912, 112
    %v1920 = vpop.permute.xlu0 %1919
    %vm1925 = vcmask 910080
    %1926 = vst.msk [vmem:[%s7] sm:$0x1] %vm1925, %v1914
    %1927 = vst.msk [vmem:[%s7 + $0x1] sm:$0x1] %vm1925, %v1916
    %1928 = vst.msk [vmem:[%s7 + $0x2] sm:$0x1] %vm1925, %v1918
    %1929 = vst.msk [vmem:[%s7 + $0x3] sm:$0x1] %vm1925, %v1920
    %1930 = vrot.lane.b32.xlu0 %v1879, 32
    %v1931 = vpop.permute.xlu0 %1930
    %v1933 = vsel %vm892, %v1931, %v1873
    %v1934 = vmul.f32 %v1933, %v662
    %v1935 = vsel %vm664, %v1934, 0.0
    %1936 = vadd.xlane.f32.xlu0 %v1935
    %v1937 = vpop.xlane.xlu0 %1936
    %v1938 = vmul.f32 %v1933, %v668
    %v1939 = vsel %vm664, %v1938, 0.0
    %1940 = vadd.xlane.f32.xlu0 %v1939
    %v1941 = vpop.xlane.xlu0 %1940
    %v1942 = vadd.f32 %v1937, %v685
    %v1943 = vadd.f32 %v1941, %v697
    %1945 = vrot.lane.b32.xlu0 %v1943, 8
    %v1946 = vpop.permute.xlu0 %1945
    %v1948 = vsel %vm704, %v1942, %v1946
    %v1949 = vsel %vm706, %v1948, -inf
    %1950 = vmax.xlane.f32.xlu0 %v1949
    %v1951 = vpop.xlane.xlu0 %1950
    %v1952 = vsel %vm710, %v1948, -inf
    %1953 = vmax.xlane.f32.xlu0 %v1952
    %v1954 = vpop.xlane.xlu0 %1953
    %v1955 = vsel %vm704, %v1951, %v1954
    %v1956 = vsub.f32 %v1948, %v1955
    %v1957 = vmul.f32 %v1956, 1.442695
    %v1958 = vpow.pop %v1957
    %v1959 = vsel %vm706, %v1958, 0.0
    %1960 = vadd.xlane.f32.xlu0 %v1959
    %v1961 = vpop.xlane.xlu0 %1960
    %1963 = vrot.lane.b32.xlu0 %v1958, 120
    %v1964 = vpop.permute.xlu0 %1963
    %v1966 = vsel %vm706, %v1964, 0.0
    %1967 = vadd.xlane.f32.xlu0 %v1966
    %v1968 = vpop.xlane.xlu0 %1967
    %v1969 = vsel %vm728, %v1961, %v1968
    %v1970 = vrcp.pop %v1969
    %1972 = vset.pattern.permute.xlu0 0
    %1973 = vperm.xlu0 %1972, %v1970
    %v1974 = vpop.permute.xlu0 %1973
    %v1976 = vmul.f32 %v1958, %v1974
    %v1977 = vrot.slane %v86, 7
    %v1978 = vrot.slane %v87, 6
    %v1979 = vsel %vm678, %v1978, %v1977
    %v1980 = vrot.slane %v88, 5
    %v1981 = vsel %vm681, %v1980, %v1979
    %v1982 = vrot.slane %v89, 4
    %v1983 = vsel %vm684, %v1982, %v1981
    %v1985 = vmul.f32 %v1976, %v1983
    %1986 = vset.pattern.permute.xlu0 1
    %1987 = vperm.xlu0 %1986, %v1970
    %v1988 = vpop.permute.xlu0 %1987
    %v1990 = vmul.f32 %v1958, %v1988
    %1992 = vrot.lane.b32.xlu0 %v1985, 8
    %v1993 = vpop.permute.xlu0 %1992
    %v1995 = vmul.f32 %v1990, %v1993
    %1996 = vrot.lane.b32.xlu0 %v1879, 48
    %v1997 = vpop.permute.xlu0 %1996
    %v1999 = vsel %vm704, %v1985, %v1995
    %v2000 = vsel %vm760, %v1999, %v1997
    %v2001 = vpack.c.bf16 %v2000, %v2000
    %v2003 = vsel %vm784, %v2001, 0
    %2005 = vmatpush.bf16.msra.mxu0 0
    %2006 = vmatpush.bf16.msra.mxu0 0
    %2007 = vmatpush.bf16.msra.mxu0 0
    %2008 = vmatpush.bf16.msra.mxu0 0
    %2009 = vmatpush.bf16.msra.mxu0 0
    %2010 = vmatpush.bf16.msra.mxu0 %v780
    %2011 = vmatpush.bf16.msra.mxu0 %v779
    %2012 = vmatpush.bf16.msra.mxu0 %v778
    %2013 = vmatmul.bf16.gmra.mxu0 %v2003
    %v2014 = vpop.f32.mrf.mxu0
    %v2015 = vadd.f32 %v764, %v2014
    %v2016 = vpop.f32.mrf.mxu0
    %2017 = vdwg.mxu0
    %v2018 = vxor.u32 %v2015, 2147483648
    %v2019 = vmul.f32 %v2018, 1.442695
    %v2020 = vpow.pop %v2019
    %v2021 = vadd.f32 %v2020, 1.0
    %v2022 = vrcp.pop %v2021
    %v2023 = vmul.f32 %v2021, %v2022
    %v2024 = vsub.f32 1.0, %v2023
    %v2025 = vmul.f32 %v2022, %v2024
    %v2026 = vadd.f32 %v2022, %v2025
    %vm2027 = vweird.f32 %v2021
    %vm2028 = vweird.f32 %v2022
    %vm2029 = vmor %vm2027, %vm2028
    %v2030 = vsel %vm2029, %v2022, %v2026
    %v2031 = vand.u32 2147483647, %v2021
    %vm2032 = vcmp.eq.f32.partialorder %v2031, 8.507059e+37
    %v2033 = vand.u32 %v2021, 2147483648
    %v2034 = vor.u32 1.1754944e-38, %v2033
    %v2035 = vsel %vm2032, %v2034, %v2030
    %v2036 = vmul.f32 1.0, %v2035
    %v2037 = vmul.f32 %v2036, 2.0
    %v2038 = vsub.f32 %v2037, 1.0
    %v2039 = vmul.f32 %v2036, %v1873
    %2041 = vrot.lane.b32.xlu0 %v2038, 64
    %v2042 = vpop.permute.xlu0 %2041
    %v2044 = vmul.f32 %v2036, %v2042
    %2046 = vrot.lane.b32.xlu0 %v2044, 32
    %v2047 = vpop.permute.xlu0 %2046
    %v2049 = vadd.f32 %v2039, %v2047
    %v2050 = vtanh.pop %v2049
    %2052 = vrot.lane.b32.xlu0 %v2050, 64
    %v2053 = vpop.permute.xlu0 %2052
    %v2055 = vmul.f32 %v2036, %v2053
    %v2057 = vrot.slane %v1995, 1
    %v2058 = vrot.slane %v1995, 2
    %v2059 = vrot.slane %v1995, 3
    %v2060 = vperm.slane %v1995, 0
    %v2061 = vperm.slane %v2057, 0
    %v2062 = vperm.slane %v2058, 0
    %v2063 = vperm.slane %v2059, 0
    %2064 = vrot.lane.b32.xlu0 %v2060, 48
    %v2065 = vpop.permute.xlu0 %2064
    %2066 = vrot.lane.b32.xlu0 %v2061, 48
    %v2067 = vpop.permute.xlu0 %2066
    %2068 = vrot.lane.b32.xlu0 %v2062, 48
    %v2069 = vpop.permute.xlu0 %2068
    %2070 = vrot.lane.b32.xlu0 %v2063, 48
    %v2071 = vpop.permute.xlu0 %2070
    %vm2076 = vcmask 516544
    %2077 = vst.msk [vmem:[%s6] sm:$0x1] %vm2076, %v2065
    %2078 = vst.msk [vmem:[%s6 + $0x1] sm:$0x1] %vm2076, %v2067
    %2079 = vst.msk [vmem:[%s6 + $0x2] sm:$0x1] %vm2076, %v2069
    %2080 = vst.msk [vmem:[%s6 + $0x3] sm:$0x1] %vm2076, %v2071
    %v2082 = vrot.slane %v2055, 1
    %v2083 = vrot.slane %v2055, 2
    %v2084 = vrot.slane %v2055, 3
    %vm2088 = vcmask 1041280
    %2089 = vst.msk [vmem:[%s7] sm:$0x1] %vm2088, %v2055
    %2090 = vst.msk [vmem:[%s7 + $0x1] sm:$0x1] %vm2088, %v2082
    %2091 = vst.msk [vmem:[%s7 + $0x2] sm:$0x1] %vm2088, %v2083
    %2092 = vst.msk [vmem:[%s7 + $0x3] sm:$0x1] %vm2088, %v2084
    // Predicated region
    $region42: #{encoder_forward.1} parent=1 // pred_check
      _
    $region43: #{encoder_forward.1} parent=1 // pred_check_branch
      %2094 = sbr.rel (0) target = $region45
    $region44: #{encoder_forward.1} parent=1 // pred_region
      _
    $region45: #{encoder_forward.1} parent=1 // pred_fallthru
      _
    // Predicated region
    $region46: #{encoder_forward.1} parent=1 // pred_check
      _
    $region47: #{encoder_forward.1} parent=1 // pred_check_branch
      %2096 = sbr.rel (0) target = $region49
    $region48: #{encoder_forward.1} parent=1 // pred_region
      _
    $region49: #{encoder_forward.1} parent=1 // pred_fallthru
      _
    // Predicated region
    $region50: #{encoder_forward.1} parent=1 // pred_check
      _
    $region51: #{encoder_forward.1} parent=1 // pred_check_branch
      %2098 = sbr.rel (0) target = $region53
    $region52: #{encoder_forward.1} parent=1 // pred_region
      _
    $region53: #{encoder_forward.1} parent=1 // pred_fallthru
      _
    // Predicated region
    $region54: #{encoder_forward.1} parent=1 // pred_check
      _
    $region55: #{encoder_forward.1} parent=1 // pred_check_branch
      %2100 = sbr.rel (0) target = $region57
    $region56: #{encoder_forward.1} parent=1 // pred_region
      _
    $region57: #{encoder_forward.1} parent=1 // pred_fallthru
      _
    %2101 = vsyncpa [#allocation3], 1
    %2102 = vsyncpa [#allocation6], 1
    %2103 = vsyncpa [#allocation4], 1

</llo_original>
